<compile_context>
chip_gen: v7x
topology: tpu7x:2x2x1
jax: 0.10.0
libtpu: 0.0.40
codegen_flags: <defaults>
</compile_context>

<pallas_src>
import functools

import jax
import jax.numpy as jnp
from jax.experimental import pallas as pl
from jax.experimental.pallas import tpu as pltpu

_VMEM = pl.BlockSpec(memory_space=pltpu.MemorySpace.VMEM)


def _round_up(x, m):
    return (x + m - 1) // m * m


# ------------------------------------------------------------------ fused kernel

def _fused_lstm_model_kernel(x_ref, w1_ref, b1_ref, wih_ref, whh_ref, bl_ref,
                             w2_ref, b2_ref, out_ref):
    # x_ref   : (S*B, Din) bf16, time-major flattened (row t*B+b == (t, b))
    # w1_ref  : (Din, Hp) bf16, b1_ref: (1, Hp) f32
    # wih_ref : (L, Hp, 4*Hp) bf16, whh_ref: (L, Hp, 4*Hp) bf16
    # bl_ref  : (L, 1, 4*Hp) f32  (b_ih + b_hh combined)
    #           gate order [i, f, o, g], each gate zero-padded to Hp lanes.
    # w2_ref  : (Hp, Dp) bf16, b2_ref: (1, Dp) f32
    # out_ref : (B, Dp) f32
    B = out_ref.shape[0]
    S = x_ref.shape[0] // B
    L, Hp, _ = wih_ref.shape
    H3 = 3 * Hp

    # Dropout is identity at inference.
    # Linear1 + ReLU for all timesteps in a single MXU matmul (bf16 in, f32 acc).
    h_all = jnp.maximum(
        jnp.dot(x_ref[...], w1_ref[...], preferred_element_type=jnp.float32)
        + b1_ref[...],
        0.0)                                                    # (S*B, Hp) f32

    # Layer-0 input projection (+bias) hoisted out of the recurrence.
    ih0_all = (jnp.dot(h_all.astype(jnp.bfloat16), wih_ref[0],
                       preferred_element_type=jnp.float32)
               + bl_ref[0])                                     # (S*B, 4*Hp) f32

    h = [jnp.zeros((B, Hp), jnp.float32) for _ in range(L)]
    c = [jnp.zeros((B, Hp), jnp.float32) for _ in range(L)]

    # Single fully-unrolled time loop, wavefronted over layers: layer l+1's
    # input projection (and its step) is issued right after h[l] at time t is
    # produced, so layer l+1 step t can overlap layer l step t+1 (no
    # data dependency between them) -> dependent chain ~ S + L - 1 steps.
    for t in range(S):
        inp = ih0_all[t * B:(t + 1) * B]                        # (B, 4*Hp)
        for l in range(L):
            gates = inp + jnp.dot(h[l].astype(jnp.bfloat16), whh_ref[l],
                                  preferred_element_type=jnp.float32)
            sig = jax.nn.sigmoid(gates[:, :H3])                 # one EUP slab [i|f|o]
            g_g = jnp.tanh(gates[:, H3:])                       # one EUP slab  g
            i_g = sig[:, 0 * Hp:1 * Hp]
            f_g = sig[:, 1 * Hp:2 * Hp]
            o_g = sig[:, 2 * Hp:3 * Hp]
            c[l] = f_g * c[l] + i_g * g_g
            h[l] = o_g * jnp.tanh(c[l])
            if l + 1 < L:
                # Next layer's input projection, immediately after h[l] is
                # available: no full-sequence barrier, no VMEM scratch.
                inp = (jnp.dot(h[l].astype(jnp.bfloat16), wih_ref[l + 1],
                               preferred_element_type=jnp.float32)
                       + bl_ref[l + 1])

    # Linear2 on the last timestep (padded rows/cols of w2 are zero, so pad
    # lanes of h contribute nothing and extra output lanes are zero).
    out_ref[...] = (jnp.dot(h[L - 1].astype(jnp.bfloat16), w2_ref[...],
                            preferred_element_type=jnp.float32) + b2_ref[...])


# ------------------------------------------------------------------ wrapper

def lstm_model_forward(x, padded, n_output):
    """x: (B, S, n_input) float32, batch-first like the PyTorch module."""
    B, S, Din = x.shape
    Dp = padded["w2"].shape[1]

    # Layout plumbing only: time-major + flatten, cast to bf16 MXU operand dtype.
    x_tm = jnp.transpose(x, (1, 0, 2)).reshape(S * B, Din).astype(jnp.bfloat16)

    out_p = pl.pallas_call(
        _fused_lstm_model_kernel,
        out_shape=jax.ShapeDtypeStruct((B, Dp), jnp.float32),
        in_specs=[_VMEM] * 8,
        out_specs=_VMEM,
    )(x_tm, padded["w1"], padded["b1"], padded["wih"], padded["whh"],
      padded["b"], padded["w2"], padded["b2"])
    return out_p[:, :n_output]


# ------------------------------------------------------------------ params

def init_params(key, n_input, n_hidden, n_output, n_lstm_layer):
    """PyTorch-equivalent parameters, stored pre-transposed as (in, out)."""
    keys = jax.random.split(key, 4 + 4 * n_lstm_layer)
    scale = 0.1
    params = {
        "w1": scale * jax.random.normal(keys[0], (n_input, n_hidden), jnp.float32),
        "b1": scale * jax.random.normal(keys[1], (1, n_hidden), jnp.float32),
        "w2": scale * jax.random.normal(keys[2], (n_hidden, n_output), jnp.float32),
        "b2": scale * jax.random.normal(keys[3], (1, n_output), jnp.float32),
        "lstm": [],
    }
    for l in range(n_lstm_layer):
        k = keys[4 + 4 * l: 4 + 4 * (l + 1)]
        # nn.LSTM(n_hidden, n_hidden, L): every layer's input size is n_hidden.
        wih = scale * jax.random.normal(k[0], (n_hidden, 4 * n_hidden), jnp.float32)
        whh = scale * jax.random.normal(k[1], (n_hidden, 4 * n_hidden), jnp.float32)
        b_ih = scale * jax.random.normal(k[2], (1, 4 * n_hidden), jnp.float32)
        b_hh = scale * jax.random.normal(k[3], (1, 4 * n_hidden), jnp.float32)
        params["lstm"].append({"wih": wih, "whh": whh, "b": b_ih + b_hh})
    return params


def _pad_gates(m, H, Hp):
    # (R, 4*H) in PyTorch gate order [i,f,g,o]  ->  (R, 4*Hp) reordered to
    # [i,f,o,g] (so one sigmoid covers 3*Hp contiguous lanes), each gate
    # zero-padded to Hp lanes.
    R = m.shape[0]
    m4 = m.reshape(R, 4, H)[:, (0, 1, 3, 2), :]
    m4 = jnp.pad(m4, ((0, 0), (0, 0), (0, Hp - H)))
    return m4.reshape(R, 4 * Hp)


def prepare_padded_params(params, lane=128):
    """Pad hidden/output dims to lane multiples (exact — pads are zero), reorder
    gates to [i,f,o,g], stack per-layer LSTM weights, and cast matmul weights
    to bf16 (biases stay f32; accumulation in-kernel is f32)."""
    H = params["w1"].shape[1]
    Dout = params["w2"].shape[1]
    Hp = _round_up(H, lane)
    Dp = _round_up(Dout, lane)
    pad_h = Hp - H

    wih, whh, b = [], [], []
    for layer in params["lstm"]:
        wih.append(jnp.pad(_pad_gates(layer["wih"], H, Hp), ((0, pad_h), (0, 0))))
        whh.append(jnp.pad(_pad_gates(layer["whh"], H, Hp), ((0, pad_h), (0, 0))))
        b.append(_pad_gates(layer["b"], H, Hp))
    return {
        "w1": jnp.pad(params["w1"], ((0, 0), (0, pad_h))).astype(jnp.bfloat16),
        "b1": jnp.pad(params["b1"], ((0, 0), (0, pad_h))),
        "wih": jnp.stack(wih, 0).astype(jnp.bfloat16),       # (L, Hp, 4*Hp)
        "whh": jnp.stack(whh, 0).astype(jnp.bfloat16),       # (L, Hp, 4*Hp)
        "b": jnp.stack(b, 0),                                # (L, 1, 4*Hp) f32
        "w2": jnp.pad(params["w2"],
                      ((0, pad_h), (0, Dp - Dout))).astype(jnp.bfloat16),
        "b2": jnp.pad(params["b2"], ((0, 0), (0, Dp - Dout))),
    }


# ------------------------------------------------------------------ reference

def reference_forward(x, params):
    """Pure-JAX reference (unpadded, f32 weights, HIGHEST-precision matmuls)."""
    dot = functools.partial(jnp.dot, precision=jax.lax.Precision.HIGHEST)
    B, S, Din = x.shape
    H = params["w1"].shape[1]
    h = jax.nn.relu(dot(x.reshape(B * S, Din), params["w1"]) + params["b1"])
    x_tm = jnp.transpose(h.reshape(B, S, H), (1, 0, 2))
    for layer in params["lstm"]:
        h_t = jnp.zeros((B, H), jnp.float32)
        c_t = jnp.zeros((B, H), jnp.float32)
        outs = []
        for t in range(S):
            gates = dot(x_tm[t], layer["wih"]) + dot(h_t, layer["whh"]) + layer["b"]
            i_g = jax.nn.sigmoid(gates[:, 0 * H:1 * H])
            f_g = jax.nn.sigmoid(gates[:, 1 * H:2 * H])
            g_g = jnp.tanh(gates[:, 2 * H:3 * H])
            o_g = jax.nn.sigmoid(gates[:, 3 * H:4 * H])
            c_t = f_g * c_t + i_g * g_g
            h_t = o_g * jnp.tanh(c_t)
            outs.append(h_t)
        x_tm = jnp.stack(outs, 0)
    return dot(x_tm[-1], params["w2"]) + params["b2"]


# ------------------------------------------------------------------ main

if __name__ == "__main__":
    n_input, n_hidden, n_output, n_lstm_layer = 16, 32, 8, 2
    batch, seq = 2, 8

    key = jax.random.PRNGKey(0)
    k_x, k_p = jax.random.split(key)
    x = jax.random.normal(k_x, (batch, seq, n_input), jnp.float32)
    params = init_params(k_p, n_input, n_hidden, n_output, n_lstm_layer)
    padded = prepare_padded_params(params)

    fwd = jax.jit(functools.partial(lstm_model_forward, n_output=n_output))
    out = fwd(x, padded)
    jax.block_until_ready(out)

    assert out.shape == (batch, n_output), out.shape
    assert jnp.all(jnp.isfinite(out))

    # Tolerance relaxed from 1e-3 to 5e-3 because the kernel now uses bf16 MXU
    # operands (per perf review) vs. the f32 HIGHEST-precision reference.
    ref = reference_forward(x, params)
    err = float(jnp.max(jnp.abs(out - ref)))
    assert jnp.allclose(out, ref, atol=5e-3, rtol=5e-3), err

    print("KERNEL_OK")
</pallas_src>

<mosaic_0001>
module attributes {stable_mosaic.version = 11 : i64} {
  func.func @_fused_lstm_model_kernel(%arg0: memref<16x16xbf16, #tpu.memory_space<vmem>>, %arg1: memref<16x128xbf16, #tpu.memory_space<vmem>>, %arg2: memref<1x128xf32, #tpu.memory_space<vmem>>, %arg3: memref<2x128x512xbf16, #tpu.memory_space<vmem>>, %arg4: memref<2x128x512xbf16, #tpu.memory_space<vmem>>, %arg5: memref<2x1x512xf32, #tpu.memory_space<vmem>>, %arg6: memref<128x128xbf16, #tpu.memory_space<vmem>>, %arg7: memref<1x128xf32, #tpu.memory_space<vmem>>, %arg8: memref<2x128xf32, #tpu.memory_space<vmem>>) attributes {dimension_semantics = [], scalar_prefetch = 0 : i64, scratch_operands = 0 : i64, tpu.core_type = #tpu.core_type<tc>} {
    %c0 = arith.constant 0 : index
    %c0_0 = arith.constant 0 : index
    %0 = vector.load %arg0[%c0, %c0_0] : memref<16x16xbf16, #tpu.memory_space<vmem>>, vector<16x16xbf16>
    %c0_1 = arith.constant 0 : index
    %c0_2 = arith.constant 0 : index
    %1 = vector.load %arg1[%c0_1, %c0_2] : memref<16x128xbf16, #tpu.memory_space<vmem>>, vector<16x128xbf16>
    %cst = arith.constant dense<0.000000e+00> : vector<16x128xf32>
    %2 = tpu.matmul %0, %1, %cst {dimension_numbers = #tpu.dot_dimension_numbers<[1], [0], [0], [1], [0, 0, 1, 1], [], []>} : vector<16x16xbf16>, vector<16x128xbf16>, vector<16x128xf32> -> vector<16x128xf32>
    %c0_3 = arith.constant 0 : index
    %c0_4 = arith.constant 0 : index
    %3 = vector.load %arg2[%c0_3, %c0_4] : memref<1x128xf32, #tpu.memory_space<vmem>>, vector<1x128xf32>
    %4 = vector.broadcast %3 : vector<1x128xf32> to vector<16x128xf32>
    %5 = arith.addf %2, %4 : vector<16x128xf32>
    %cst_5 = arith.constant 0.000000e+00 : f32
    %6 = vector.broadcast %cst_5 : f32 to vector<16x128xf32>
    %7 = arith.maximumf %5, %6 : vector<16x128xf32>
    %8 = arith.truncf %7 : vector<16x128xf32> to vector<16x128xbf16>
    %c0_6 = arith.constant 0 : index
    %c0_7 = arith.constant 0 : index
    %c0_8 = arith.constant 0 : index
    %9 = vector.load %arg3[%c0_6, %c0_7, %c0_8] : memref<2x128x512xbf16, #tpu.memory_space<vmem>>, vector<1x128x512xbf16>
    %10 = vector.shape_cast %9 : vector<1x128x512xbf16> to vector<128x512xbf16>
    %cst_9 = arith.constant dense<0.000000e+00> : vector<16x512xf32>
    %11 = tpu.matmul %8, %10, %cst_9 {dimension_numbers = #tpu.dot_dimension_numbers<[1], [0], [0], [1], [0, 0, 1, 1], [], []>} : vector<16x128xbf16>, vector<128x512xbf16>, vector<16x512xf32> -> vector<16x512xf32>
    %c0_10 = arith.constant 0 : index
    %c0_11 = arith.constant 0 : index
    %c0_12 = arith.constant 0 : index
    %12 = vector.load %arg5[%c0_10, %c0_11, %c0_12] : memref<2x1x512xf32, #tpu.memory_space<vmem>>, vector<1x1x512xf32>
    %13 = vector.shape_cast %12 : vector<1x1x512xf32> to vector<1x512xf32>
    %14 = vector.broadcast %13 : vector<1x512xf32> to vector<16x512xf32>
    %15 = arith.addf %11, %14 : vector<16x512xf32>
    %cst_13 = arith.constant 0.000000e+00 : f32
    %16 = vector.broadcast %cst_13 : f32 to vector<2x128xf32>
    %cst_14 = arith.constant 0.000000e+00 : f32
    %17 = vector.broadcast %cst_14 : f32 to vector<2x128xf32>
    %cst_15 = arith.constant 0.000000e+00 : f32
    %18 = vector.broadcast %cst_15 : f32 to vector<2x128xf32>
    %cst_16 = arith.constant 0.000000e+00 : f32
    %19 = vector.broadcast %cst_16 : f32 to vector<2x128xf32>
    %20 = vector.extract_strided_slice %15 {offsets = [0, 0], sizes = [2, 512], strides = [1, 1]} : vector<16x512xf32> to vector<2x512xf32>
    %21 = arith.truncf %16 : vector<2x128xf32> to vector<2x128xbf16>
    %c0_17 = arith.constant 0 : index
    %c0_18 = arith.constant 0 : index
    %c0_19 = arith.constant 0 : index
    %22 = vector.load %arg4[%c0_17, %c0_18, %c0_19] : memref<2x128x512xbf16, #tpu.memory_space<vmem>>, vector<1x128x512xbf16>
    %23 = vector.shape_cast %22 : vector<1x128x512xbf16> to vector<128x512xbf16>
    %cst_20 = arith.constant dense<0.000000e+00> : vector<2x512xf32>
    %24 = tpu.matmul %21, %23, %cst_20 {dimension_numbers = #tpu.dot_dimension_numbers<[1], [0], [0], [1], [0, 0, 1, 1], [], []>} : vector<2x128xbf16>, vector<128x512xbf16>, vector<2x512xf32> -> vector<2x512xf32>
    %25 = arith.addf %20, %24 : vector<2x512xf32>
    %26 = vector.extract_strided_slice %25 {offsets = [0, 0], sizes = [2, 384], strides = [1, 1]} : vector<2x512xf32> to vector<2x384xf32>
    %27 = arith.negf %26 : vector<2x384xf32>
    %28 = math.exp %27 : vector<2x384xf32>
    %cst_21 = arith.constant 1.000000e+00 : f32
    %29 = vector.broadcast %cst_21 : f32 to vector<2x384xf32>
    %30 = arith.addf %29, %28 : vector<2x384xf32>
    %31 = arith.divf %29, %30 : vector<2x384xf32>
    %32 = vector.extract_strided_slice %25 {offsets = [0, 384], sizes = [2, 128], strides = [1, 1]} : vector<2x512xf32> to vector<2x128xf32>
    %33 = math.tanh %32 : vector<2x128xf32>
    %34 = vector.extract_strided_slice %31 {offsets = [0, 0], sizes = [2, 128], strides = [1, 1]} : vector<2x384xf32> to vector<2x128xf32>
    %35 = vector.extract_strided_slice %31 {offsets = [0, 128], sizes = [2, 128], strides = [1, 1]} : vector<2x384xf32> to vector<2x128xf32>
    %36 = vector.extract_strided_slice %31 {offsets = [0, 256], sizes = [2, 128], strides = [1, 1]} : vector<2x384xf32> to vector<2x128xf32>
    %37 = arith.mulf %35, %18 : vector<2x128xf32>
    %38 = arith.mulf %34, %33 : vector<2x128xf32>
    %39 = arith.addf %37, %38 : vector<2x128xf32>
    %40 = math.tanh %39 : vector<2x128xf32>
    %41 = arith.mulf %36, %40 : vector<2x128xf32>
    %42 = arith.truncf %41 : vector<2x128xf32> to vector<2x128xbf16>
    %c1 = arith.constant 1 : index
    %c0_22 = arith.constant 0 : index
    %c0_23 = arith.constant 0 : index
    %43 = vector.load %arg3[%c1, %c0_22, %c0_23] : memref<2x128x512xbf16, #tpu.memory_space<vmem>>, vector<1x128x512xbf16>
    %44 = vector.shape_cast %43 : vector<1x128x512xbf16> to vector<128x512xbf16>
    %cst_24 = arith.constant dense<0.000000e+00> : vector<2x512xf32>
    %45 = tpu.matmul %42, %44, %cst_24 {dimension_numbers = #tpu.dot_dimension_numbers<[1], [0], [0], [1], [0, 0, 1, 1], [], []>} : vector<2x128xbf16>, vector<128x512xbf16>, vector<2x512xf32> -> vector<2x512xf32>
    %c1_25 = arith.constant 1 : index
    %c0_26 = arith.constant 0 : index
    %c0_27 = arith.constant 0 : index
    %46 = vector.load %arg5[%c1_25, %c0_26, %c0_27] : memref<2x1x512xf32, #tpu.memory_space<vmem>>, vector<1x1x512xf32>
    %47 = vector.shape_cast %46 : vector<1x1x512xf32> to vector<1x512xf32>
    %48 = vector.broadcast %47 : vector<1x512xf32> to vector<2x512xf32>
    %49 = arith.addf %45, %48 : vector<2x512xf32>
    %50 = arith.truncf %17 : vector<2x128xf32> to vector<2x128xbf16>
    %c1_28 = arith.constant 1 : index
    %c0_29 = arith.constant 0 : index
    %c0_30 = arith.constant 0 : index
    %51 = vector.load %arg4[%c1_28, %c0_29, %c0_30] : memref<2x128x512xbf16, #tpu.memory_space<vmem>>, vector<1x128x512xbf16>
    %52 = vector.shape_cast %51 : vector<1x128x512xbf16> to vector<128x512xbf16>
    %cst_31 = arith.constant dense<0.000000e+00> : vector<2x512xf32>
    %53 = tpu.matmul %50, %52, %cst_31 {dimension_numbers = #tpu.dot_dimension_numbers<[1], [0], [0], [1], [0, 0, 1, 1], [], []>} : vector<2x128xbf16>, vector<128x512xbf16>, vector<2x512xf32> -> vector<2x512xf32>
    %54 = arith.addf %49, %53 : vector<2x512xf32>
    %55 = vector.extract_strided_slice %54 {offsets = [0, 0], sizes = [2, 384], strides = [1, 1]} : vector<2x512xf32> to vector<2x384xf32>
    %56 = arith.negf %55 : vector<2x384xf32>
    %57 = math.exp %56 : vector<2x384xf32>
    %cst_32 = arith.constant 1.000000e+00 : f32
    %58 = vector.broadcast %cst_32 : f32 to vector<2x384xf32>
    %59 = arith.addf %58, %57 : vector<2x384xf32>
    %60 = arith.divf %58, %59 : vector<2x384xf32>
    %61 = vector.extract_strided_slice %54 {offsets = [0, 384], sizes = [2, 128], strides = [1, 1]} : vector<2x512xf32> to vector<2x128xf32>
    %62 = math.tanh %61 : vector<2x128xf32>
    %63 = vector.extract_strided_slice %60 {offsets = [0, 0], sizes = [2, 128], strides = [1, 1]} : vector<2x384xf32> to vector<2x128xf32>
    %64 = vector.extract_strided_slice %60 {offsets = [0, 128], sizes = [2, 128], strides = [1, 1]} : vector<2x384xf32> to vector<2x128xf32>
    %65 = vector.extract_strided_slice %60 {offsets = [0, 256], sizes = [2, 128], strides = [1, 1]} : vector<2x384xf32> to vector<2x128xf32>
    %66 = arith.mulf %64, %19 : vector<2x128xf32>
    %67 = arith.mulf %63, %62 : vector<2x128xf32>
    %68 = arith.addf %66, %67 : vector<2x128xf32>
    %69 = math.tanh %68 : vector<2x128xf32>
    %70 = arith.mulf %65, %69 : vector<2x128xf32>
    %71 = vector.extract_strided_slice %15 {offsets = [2, 0], sizes = [2, 512], strides = [1, 1]} : vector<16x512xf32> to vector<2x512xf32>
    %72 = arith.truncf %41 : vector<2x128xf32> to vector<2x128xbf16>
    %c0_33 = arith.constant 0 : index
    %c0_34 = arith.constant 0 : index
    %c0_35 = arith.constant 0 : index
    %73 = vector.load %arg4[%c0_33, %c0_34, %c0_35] : memref<2x128x512xbf16, #tpu.memory_space<vmem>>, vector<1x128x512xbf16>
    %74 = vector.shape_cast %73 : vector<1x128x512xbf16> to vector<128x512xbf16>
    %cst_36 = arith.constant dense<0.000000e+00> : vector<2x512xf32>
    %75 = tpu.matmul %72, %74, %cst_36 {dimension_numbers = #tpu.dot_dimension_numbers<[1], [0], [0], [1], [0, 0, 1, 1], [], []>} : vector<2x128xbf16>, vector<128x512xbf16>, vector<2x512xf32> -> vector<2x512xf32>
    %76 = arith.addf %71, %75 : vector<2x512xf32>
    %77 = vector.extract_strided_slice %76 {offsets = [0, 0], sizes = [2, 384], strides = [1, 1]} : vector<2x512xf32> to vector<2x384xf32>
    %78 = arith.negf %77 : vector<2x384xf32>
    %79 = math.exp %78 : vector<2x384xf32>
    %cst_37 = arith.constant 1.000000e+00 : f32
    %80 = vector.broadcast %cst_37 : f32 to vector<2x384xf32>
    %81 = arith.addf %80, %79 : vector<2x384xf32>
    %82 = arith.divf %80, %81 : vector<2x384xf32>
    %83 = vector.extract_strided_slice %76 {offsets = [0, 384], sizes = [2, 128], strides = [1, 1]} : vector<2x512xf32> to vector<2x128xf32>
    %84 = math.tanh %83 : vector<2x128xf32>
    %85 = vector.extract_strided_slice %82 {offsets = [0, 0], sizes = [2, 128], strides = [1, 1]} : vector<2x384xf32> to vector<2x128xf32>
    %86 = vector.extract_strided_slice %82 {offsets = [0, 128], sizes = [2, 128], strides = [1, 1]} : vector<2x384xf32> to vector<2x128xf32>
    %87 = vector.extract_strided_slice %82 {offsets = [0, 256], sizes = [2, 128], strides = [1, 1]} : vector<2x384xf32> to vector<2x128xf32>
    %88 = arith.mulf %86, %39 : vector<2x128xf32>
    %89 = arith.mulf %85, %84 : vector<2x128xf32>
    %90 = arith.addf %88, %89 : vector<2x128xf32>
    %91 = math.tanh %90 : vector<2x128xf32>
    %92 = arith.mulf %87, %91 : vector<2x128xf32>
    %93 = arith.truncf %92 : vector<2x128xf32> to vector<2x128xbf16>
    %c1_38 = arith.constant 1 : index
    %c0_39 = arith.constant 0 : index
    %c0_40 = arith.constant 0 : index
    %94 = vector.load %arg3[%c1_38, %c0_39, %c0_40] : memref<2x128x512xbf16, #tpu.memory_space<vmem>>, vector<1x128x512xbf16>
    %95 = vector.shape_cast %94 : vector<1x128x512xbf16> to vector<128x512xbf16>
    %cst_41 = arith.constant dense<0.000000e+00> : vector<2x512xf32>
    %96 = tpu.matmul %93, %95, %cst_41 {dimension_numbers = #tpu.dot_dimension_numbers<[1], [0], [0], [1], [0, 0, 1, 1], [], []>} : vector<2x128xbf16>, vector<128x512xbf16>, vector<2x512xf32> -> vector<2x512xf32>
    %c1_42 = arith.constant 1 : index
    %c0_43 = arith.constant 0 : index
    %c0_44 = arith.constant 0 : index
    %97 = vector.load %arg5[%c1_42, %c0_43, %c0_44] : memref<2x1x512xf32, #tpu.memory_space<vmem>>, vector<1x1x512xf32>
    %98 = vector.shape_cast %97 : vector<1x1x512xf32> to vector<1x512xf32>
    %99 = vector.broadcast %98 : vector<1x512xf32> to vector<2x512xf32>
    %100 = arith.addf %96, %99 : vector<2x512xf32>
    %101 = arith.truncf %70 : vector<2x128xf32> to vector<2x128xbf16>
    %c1_45 = arith.constant 1 : index
    %c0_46 = arith.constant 0 : index
    %c0_47 = arith.constant 0 : index
    %102 = vector.load %arg4[%c1_45, %c0_46, %c0_47] : memref<2x128x512xbf16, #tpu.memory_space<vmem>>, vector<1x128x512xbf16>
    %103 = vector.shape_cast %102 : vector<1x128x512xbf16> to vector<128x512xbf16>
    %cst_48 = arith.constant dense<0.000000e+00> : vector<2x512xf32>
    %104 = tpu.matmul %101, %103, %cst_48 {dimension_numbers = #tpu.dot_dimension_numbers<[1], [0], [0], [1], [0, 0, 1, 1], [], []>} : vector<2x128xbf16>, vector<128x512xbf16>, vector<2x512xf32> -> vector<2x512xf32>
    %105 = arith.addf %100, %104 : vector<2x512xf32>
    %106 = vector.extract_strided_slice %105 {offsets = [0, 0], sizes = [2, 384], strides = [1, 1]} : vector<2x512xf32> to vector<2x384xf32>
    %107 = arith.negf %106 : vector<2x384xf32>
    %108 = math.exp %107 : vector<2x384xf32>
    %cst_49 = arith.constant 1.000000e+00 : f32
    %109 = vector.broadcast %cst_49 : f32 to vector<2x384xf32>
    %110 = arith.addf %109, %108 : vector<2x384xf32>
    %111 = arith.divf %109, %110 : vector<2x384xf32>
    %112 = vector.extract_strided_slice %105 {offsets = [0, 384], sizes = [2, 128], strides = [1, 1]} : vector<2x512xf32> to vector<2x128xf32>
    %113 = math.tanh %112 : vector<2x128xf32>
    %114 = vector.extract_strided_slice %111 {offsets = [0, 0], sizes = [2, 128], strides = [1, 1]} : vector<2x384xf32> to vector<2x128xf32>
    %115 = vector.extract_strided_slice %111 {offsets = [0, 128], sizes = [2, 128], strides = [1, 1]} : vector<2x384xf32> to vector<2x128xf32>
    %116 = vector.extract_strided_slice %111 {offsets = [0, 256], sizes = [2, 128], strides = [1, 1]} : vector<2x384xf32> to vector<2x128xf32>
    %117 = arith.mulf %115, %68 : vector<2x128xf32>
    %118 = arith.mulf %114, %113 : vector<2x128xf32>
    %119 = arith.addf %117, %118 : vector<2x128xf32>
    %120 = math.tanh %119 : vector<2x128xf32>
    %121 = arith.mulf %116, %120 : vector<2x128xf32>
    %122 = vector.extract_strided_slice %15 {offsets = [4, 0], sizes = [2, 512], strides = [1, 1]} : vector<16x512xf32> to vector<2x512xf32>
    %123 = arith.truncf %92 : vector<2x128xf32> to vector<2x128xbf16>
    %c0_50 = arith.constant 0 : index
    %c0_51 = arith.constant 0 : index
    %c0_52 = arith.constant 0 : index
    %124 = vector.load %arg4[%c0_50, %c0_51, %c0_52] : memref<2x128x512xbf16, #tpu.memory_space<vmem>>, vector<1x128x512xbf16>
    %125 = vector.shape_cast %124 : vector<1x128x512xbf16> to vector<128x512xbf16>
    %cst_53 = arith.constant dense<0.000000e+00> : vector<2x512xf32>
    %126 = tpu.matmul %123, %125, %cst_53 {dimension_numbers = #tpu.dot_dimension_numbers<[1], [0], [0], [1], [0, 0, 1, 1], [], []>} : vector<2x128xbf16>, vector<128x512xbf16>, vector<2x512xf32> -> vector<2x512xf32>
    %127 = arith.addf %122, %126 : vector<2x512xf32>
    %128 = vector.extract_strided_slice %127 {offsets = [0, 0], sizes = [2, 384], strides = [1, 1]} : vector<2x512xf32> to vector<2x384xf32>
    %129 = arith.negf %128 : vector<2x384xf32>
    %130 = math.exp %129 : vector<2x384xf32>
    %cst_54 = arith.constant 1.000000e+00 : f32
    %131 = vector.broadcast %cst_54 : f32 to vector<2x384xf32>
    %132 = arith.addf %131, %130 : vector<2x384xf32>
    %133 = arith.divf %131, %132 : vector<2x384xf32>
    %134 = vector.extract_strided_slice %127 {offsets = [0, 384], sizes = [2, 128], strides = [1, 1]} : vector<2x512xf32> to vector<2x128xf32>
    %135 = math.tanh %134 : vector<2x128xf32>
    %136 = vector.extract_strided_slice %133 {offsets = [0, 0], sizes = [2, 128], strides = [1, 1]} : vector<2x384xf32> to vector<2x128xf32>
    %137 = vector.extract_strided_slice %133 {offsets = [0, 128], sizes = [2, 128], strides = [1, 1]} : vector<2x384xf32> to vector<2x128xf32>
    %138 = vector.extract_strided_slice %133 {offsets = [0, 256], sizes = [2, 128], strides = [1, 1]} : vector<2x384xf32> to vector<2x128xf32>
    %139 = arith.mulf %137, %90 : vector<2x128xf32>
    %140 = arith.mulf %136, %135 : vector<2x128xf32>
    %141 = arith.addf %139, %140 : vector<2x128xf32>
    %142 = math.tanh %141 : vector<2x128xf32>
    %143 = arith.mulf %138, %142 : vector<2x128xf32>
    %144 = arith.truncf %143 : vector<2x128xf32> to vector<2x128xbf16>
    %c1_55 = arith.constant 1 : index
    %c0_56 = arith.constant 0 : index
    %c0_57 = arith.constant 0 : index
    %145 = vector.load %arg3[%c1_55, %c0_56, %c0_57] : memref<2x128x512xbf16, #tpu.memory_space<vmem>>, vector<1x128x512xbf16>
    %146 = vector.shape_cast %145 : vector<1x128x512xbf16> to vector<128x512xbf16>
    %cst_58 = arith.constant dense<0.000000e+00> : vector<2x512xf32>
    %147 = tpu.matmul %144, %146, %cst_58 {dimension_numbers = #tpu.dot_dimension_numbers<[1], [0], [0], [1], [0, 0, 1, 1], [], []>} : vector<2x128xbf16>, vector<128x512xbf16>, vector<2x512xf32> -> vector<2x512xf32>
    %c1_59 = arith.constant 1 : index
    %c0_60 = arith.constant 0 : index
    %c0_61 = arith.constant 0 : index
    %148 = vector.load %arg5[%c1_59, %c0_60, %c0_61] : memref<2x1x512xf32, #tpu.memory_space<vmem>>, vector<1x1x512xf32>
    %149 = vector.shape_cast %148 : vector<1x1x512xf32> to vector<1x512xf32>
    %150 = vector.broadcast %149 : vector<1x512xf32> to vector<2x512xf32>
    %151 = arith.addf %147, %150 : vector<2x512xf32>
    %152 = arith.truncf %121 : vector<2x128xf32> to vector<2x128xbf16>
    %c1_62 = arith.constant 1 : index
    %c0_63 = arith.constant 0 : index
    %c0_64 = arith.constant 0 : index
    %153 = vector.load %arg4[%c1_62, %c0_63, %c0_64] : memref<2x128x512xbf16, #tpu.memory_space<vmem>>, vector<1x128x512xbf16>
    %154 = vector.shape_cast %153 : vector<1x128x512xbf16> to vector<128x512xbf16>
    %cst_65 = arith.constant dense<0.000000e+00> : vector<2x512xf32>
    %155 = tpu.matmul %152, %154, %cst_65 {dimension_numbers = #tpu.dot_dimension_numbers<[1], [0], [0], [1], [0, 0, 1, 1], [], []>} : vector<2x128xbf16>, vector<128x512xbf16>, vector<2x512xf32> -> vector<2x512xf32>
    %156 = arith.addf %151, %155 : vector<2x512xf32>
    %157 = vector.extract_strided_slice %156 {offsets = [0, 0], sizes = [2, 384], strides = [1, 1]} : vector<2x512xf32> to vector<2x384xf32>
    %158 = arith.negf %157 : vector<2x384xf32>
    %159 = math.exp %158 : vector<2x384xf32>
    %cst_66 = arith.constant 1.000000e+00 : f32
    %160 = vector.broadcast %cst_66 : f32 to vector<2x384xf32>
    %161 = arith.addf %160, %159 : vector<2x384xf32>
    %162 = arith.divf %160, %161 : vector<2x384xf32>
    %163 = vector.extract_strided_slice %156 {offsets = [0, 384], sizes = [2, 128], strides = [1, 1]} : vector<2x512xf32> to vector<2x128xf32>
    %164 = math.tanh %163 : vector<2x128xf32>
    %165 = vector.extract_strided_slice %162 {offsets = [0, 0], sizes = [2, 128], strides = [1, 1]} : vector<2x384xf32> to vector<2x128xf32>
    %166 = vector.extract_strided_slice %162 {offsets = [0, 128], sizes = [2, 128], strides = [1, 1]} : vector<2x384xf32> to vector<2x128xf32>
    %167 = vector.extract_strided_slice %162 {offsets = [0, 256], sizes = [2, 128], strides = [1, 1]} : vector<2x384xf32> to vector<2x128xf32>
    %168 = arith.mulf %166, %119 : vector<2x128xf32>
    %169 = arith.mulf %165, %164 : vector<2x128xf32>
    %170 = arith.addf %168, %169 : vector<2x128xf32>
    %171 = math.tanh %170 : vector<2x128xf32>
    %172 = arith.mulf %167, %171 : vector<2x128xf32>
    %173 = vector.extract_strided_slice %15 {offsets = [6, 0], sizes = [2, 512], strides = [1, 1]} : vector<16x512xf32> to vector<2x512xf32>
    %174 = arith.truncf %143 : vector<2x128xf32> to vector<2x128xbf16>
    %c0_67 = arith.constant 0 : index
    %c0_68 = arith.constant 0 : index
    %c0_69 = arith.constant 0 : index
    %175 = vector.load %arg4[%c0_67, %c0_68, %c0_69] : memref<2x128x512xbf16, #tpu.memory_space<vmem>>, vector<1x128x512xbf16>
    %176 = vector.shape_cast %175 : vector<1x128x512xbf16> to vector<128x512xbf16>
    %cst_70 = arith.constant dense<0.000000e+00> : vector<2x512xf32>
    %177 = tpu.matmul %174, %176, %cst_70 {dimension_numbers = #tpu.dot_dimension_numbers<[1], [0], [0], [1], [0, 0, 1, 1], [], []>} : vector<2x128xbf16>, vector<128x512xbf16>, vector<2x512xf32> -> vector<2x512xf32>
    %178 = arith.addf %173, %177 : vector<2x512xf32>
    %179 = vector.extract_strided_slice %178 {offsets = [0, 0], sizes = [2, 384], strides = [1, 1]} : vector<2x512xf32> to vector<2x384xf32>
    %180 = arith.negf %179 : vector<2x384xf32>
    %181 = math.exp %180 : vector<2x384xf32>
    %cst_71 = arith.constant 1.000000e+00 : f32
    %182 = vector.broadcast %cst_71 : f32 to vector<2x384xf32>
    %183 = arith.addf %182, %181 : vector<2x384xf32>
    %184 = arith.divf %182, %183 : vector<2x384xf32>
    %185 = vector.extract_strided_slice %178 {offsets = [0, 384], sizes = [2, 128], strides = [1, 1]} : vector<2x512xf32> to vector<2x128xf32>
    %186 = math.tanh %185 : vector<2x128xf32>
    %187 = vector.extract_strided_slice %184 {offsets = [0, 0], sizes = [2, 128], strides = [1, 1]} : vector<2x384xf32> to vector<2x128xf32>
    %188 = vector.extract_strided_slice %184 {offsets = [0, 128], sizes = [2, 128], strides = [1, 1]} : vector<2x384xf32> to vector<2x128xf32>
    %189 = vector.extract_strided_slice %184 {offsets = [0, 256], sizes = [2, 128], strides = [1, 1]} : vector<2x384xf32> to vector<2x128xf32>
    %190 = arith.mulf %188, %141 : vector<2x128xf32>
    %191 = arith.mulf %187, %186 : vector<2x128xf32>
    %192 = arith.addf %190, %191 : vector<2x128xf32>
    %193 = math.tanh %192 : vector<2x128xf32>
    %194 = arith.mulf %189, %193 : vector<2x128xf32>
    %195 = arith.truncf %194 : vector<2x128xf32> to vector<2x128xbf16>
    %c1_72 = arith.constant 1 : index
    %c0_73 = arith.constant 0 : index
    %c0_74 = arith.constant 0 : index
    %196 = vector.load %arg3[%c1_72, %c0_73, %c0_74] : memref<2x128x512xbf16, #tpu.memory_space<vmem>>, vector<1x128x512xbf16>
    %197 = vector.shape_cast %196 : vector<1x128x512xbf16> to vector<128x512xbf16>
    %cst_75 = arith.constant dense<0.000000e+00> : vector<2x512xf32>
    %198 = tpu.matmul %195, %197, %cst_75 {dimension_numbers = #tpu.dot_dimension_numbers<[1], [0], [0], [1], [0, 0, 1, 1], [], []>} : vector<2x128xbf16>, vector<128x512xbf16>, vector<2x512xf32> -> vector<2x512xf32>
    %c1_76 = arith.constant 1 : index
    %c0_77 = arith.constant 0 : index
    %c0_78 = arith.constant 0 : index
    %199 = vector.load %arg5[%c1_76, %c0_77, %c0_78] : memref<2x1x512xf32, #tpu.memory_space<vmem>>, vector<1x1x512xf32>
    %200 = vector.shape_cast %199 : vector<1x1x512xf32> to vector<1x512xf32>
    %201 = vector.broadcast %200 : vector<1x512xf32> to vector<2x512xf32>
    %202 = arith.addf %198, %201 : vector<2x512xf32>
    %203 = arith.truncf %172 : vector<2x128xf32> to vector<2x128xbf16>
    %c1_79 = arith.constant 1 : index
    %c0_80 = arith.constant 0 : index
    %c0_81 = arith.constant 0 : index
    %204 = vector.load %arg4[%c1_79, %c0_80, %c0_81] : memref<2x128x512xbf16, #tpu.memory_space<vmem>>, vector<1x128x512xbf16>
    %205 = vector.shape_cast %204 : vector<1x128x512xbf16> to vector<128x512xbf16>
    %cst_82 = arith.constant dense<0.000000e+00> : vector<2x512xf32>
    %206 = tpu.matmul %203, %205, %cst_82 {dimension_numbers = #tpu.dot_dimension_numbers<[1], [0], [0], [1], [0, 0, 1, 1], [], []>} : vector<2x128xbf16>, vector<128x512xbf16>, vector<2x512xf32> -> vector<2x512xf32>
    %207 = arith.addf %202, %206 : vector<2x512xf32>
    %208 = vector.extract_strided_slice %207 {offsets = [0, 0], sizes = [2, 384], strides = [1, 1]} : vector<2x512xf32> to vector<2x384xf32>
    %209 = arith.negf %208 : vector<2x384xf32>
    %210 = math.exp %209 : vector<2x384xf32>
    %cst_83 = arith.constant 1.000000e+00 : f32
    %211 = vector.broadcast %cst_83 : f32 to vector<2x384xf32>
    %212 = arith.addf %211, %210 : vector<2x384xf32>
    %213 = arith.divf %211, %212 : vector<2x384xf32>
    %214 = vector.extract_strided_slice %207 {offsets = [0, 384], sizes = [2, 128], strides = [1, 1]} : vector<2x512xf32> to vector<2x128xf32>
    %215 = math.tanh %214 : vector<2x128xf32>
    %216 = vector.extract_strided_slice %213 {offsets = [0, 0], sizes = [2, 128], strides = [1, 1]} : vector<2x384xf32> to vector<2x128xf32>
    %217 = vector.extract_strided_slice %213 {offsets = [0, 128], sizes = [2, 128], strides = [1, 1]} : vector<2x384xf32> to vector<2x128xf32>
    %218 = vector.extract_strided_slice %213 {offsets = [0, 256], sizes = [2, 128], strides = [1, 1]} : vector<2x384xf32> to vector<2x128xf32>
    %219 = arith.mulf %217, %170 : vector<2x128xf32>
    %220 = arith.mulf %216, %215 : vector<2x128xf32>
    %221 = arith.addf %219, %220 : vector<2x128xf32>
    %222 = math.tanh %221 : vector<2x128xf32>
    %223 = arith.mulf %218, %222 : vector<2x128xf32>
    %224 = vector.extract_strided_slice %15 {offsets = [8, 0], sizes = [2, 512], strides = [1, 1]} : vector<16x512xf32> to vector<2x512xf32>
    %225 = arith.truncf %194 : vector<2x128xf32> to vector<2x128xbf16>
    %c0_84 = arith.constant 0 : index
    %c0_85 = arith.constant 0 : index
    %c0_86 = arith.constant 0 : index
    %226 = vector.load %arg4[%c0_84, %c0_85, %c0_86] : memref<2x128x512xbf16, #tpu.memory_space<vmem>>, vector<1x128x512xbf16>
    %227 = vector.shape_cast %226 : vector<1x128x512xbf16> to vector<128x512xbf16>
    %cst_87 = arith.constant dense<0.000000e+00> : vector<2x512xf32>
    %228 = tpu.matmul %225, %227, %cst_87 {dimension_numbers = #tpu.dot_dimension_numbers<[1], [0], [0], [1], [0, 0, 1, 1], [], []>} : vector<2x128xbf16>, vector<128x512xbf16>, vector<2x512xf32> -> vector<2x512xf32>
    %229 = arith.addf %224, %228 : vector<2x512xf32>
    %230 = vector.extract_strided_slice %229 {offsets = [0, 0], sizes = [2, 384], strides = [1, 1]} : vector<2x512xf32> to vector<2x384xf32>
    %231 = arith.negf %230 : vector<2x384xf32>
    %232 = math.exp %231 : vector<2x384xf32>
    %cst_88 = arith.constant 1.000000e+00 : f32
    %233 = vector.broadcast %cst_88 : f32 to vector<2x384xf32>
    %234 = arith.addf %233, %232 : vector<2x384xf32>
    %235 = arith.divf %233, %234 : vector<2x384xf32>
    %236 = vector.extract_strided_slice %229 {offsets = [0, 384], sizes = [2, 128], strides = [1, 1]} : vector<2x512xf32> to vector<2x128xf32>
    %237 = math.tanh %236 : vector<2x128xf32>
    %238 = vector.extract_strided_slice %235 {offsets = [0, 0], sizes = [2, 128], strides = [1, 1]} : vector<2x384xf32> to vector<2x128xf32>
    %239 = vector.extract_strided_slice %235 {offsets = [0, 128], sizes = [2, 128], strides = [1, 1]} : vector<2x384xf32> to vector<2x128xf32>
    %240 = vector.extract_strided_slice %235 {offsets = [0, 256], sizes = [2, 128], strides = [1, 1]} : vector<2x384xf32> to vector<2x128xf32>
    %241 = arith.mulf %239, %192 : vector<2x128xf32>
    %242 = arith.mulf %238, %237 : vector<2x128xf32>
    %243 = arith.addf %241, %242 : vector<2x128xf32>
    %244 = math.tanh %243 : vector<2x128xf32>
    %245 = arith.mulf %240, %244 : vector<2x128xf32>
    %246 = arith.truncf %245 : vector<2x128xf32> to vector<2x128xbf16>
    %c1_89 = arith.constant 1 : index
    %c0_90 = arith.constant 0 : index
    %c0_91 = arith.constant 0 : index
    %247 = vector.load %arg3[%c1_89, %c0_90, %c0_91] : memref<2x128x512xbf16, #tpu.memory_space<vmem>>, vector<1x128x512xbf16>
    %248 = vector.shape_cast %247 : vector<1x128x512xbf16> to vector<128x512xbf16>
    %cst_92 = arith.constant dense<0.000000e+00> : vector<2x512xf32>
    %249 = tpu.matmul %246, %248, %cst_92 {dimension_numbers = #tpu.dot_dimension_numbers<[1], [0], [0], [1], [0, 0, 1, 1], [], []>} : vector<2x128xbf16>, vector<128x512xbf16>, vector<2x512xf32> -> vector<2x512xf32>
    %c1_93 = arith.constant 1 : index
    %c0_94 = arith.constant 0 : index
    %c0_95 = arith.constant 0 : index
    %250 = vector.load %arg5[%c1_93, %c0_94, %c0_95] : memref<2x1x512xf32, #tpu.memory_space<vmem>>, vector<1x1x512xf32>
    %251 = vector.shape_cast %250 : vector<1x1x512xf32> to vector<1x512xf32>
    %252 = vector.broadcast %251 : vector<1x512xf32> to vector<2x512xf32>
    %253 = arith.addf %249, %252 : vector<2x512xf32>
    %254 = arith.truncf %223 : vector<2x128xf32> to vector<2x128xbf16>
    %c1_96 = arith.constant 1 : index
    %c0_97 = arith.constant 0 : index
    %c0_98 = arith.constant 0 : index
    %255 = vector.load %arg4[%c1_96, %c0_97, %c0_98] : memref<2x128x512xbf16, #tpu.memory_space<vmem>>, vector<1x128x512xbf16>
    %256 = vector.shape_cast %255 : vector<1x128x512xbf16> to vector<128x512xbf16>
    %cst_99 = arith.constant dense<0.000000e+00> : vector<2x512xf32>
    %257 = tpu.matmul %254, %256, %cst_99 {dimension_numbers = #tpu.dot_dimension_numbers<[1], [0], [0], [1], [0, 0, 1, 1], [], []>} : vector<2x128xbf16>, vector<128x512xbf16>, vector<2x512xf32> -> vector<2x512xf32>
    %258 = arith.addf %253, %257 : vector<2x512xf32>
    %259 = vector.extract_strided_slice %258 {offsets = [0, 0], sizes = [2, 384], strides = [1, 1]} : vector<2x512xf32> to vector<2x384xf32>
    %260 = arith.negf %259 : vector<2x384xf32>
    %261 = math.exp %260 : vector<2x384xf32>
    %cst_100 = arith.constant 1.000000e+00 : f32
    %262 = vector.broadcast %cst_100 : f32 to vector<2x384xf32>
    %263 = arith.addf %262, %261 : vector<2x384xf32>
    %264 = arith.divf %262, %263 : vector<2x384xf32>
    %265 = vector.extract_strided_slice %258 {offsets = [0, 384], sizes = [2, 128], strides = [1, 1]} : vector<2x512xf32> to vector<2x128xf32>
    %266 = math.tanh %265 : vector<2x128xf32>
    %267 = vector.extract_strided_slice %264 {offsets = [0, 0], sizes = [2, 128], strides = [1, 1]} : vector<2x384xf32> to vector<2x128xf32>
    %268 = vector.extract_strided_slice %264 {offsets = [0, 128], sizes = [2, 128], strides = [1, 1]} : vector<2x384xf32> to vector<2x128xf32>
    %269 = vector.extract_strided_slice %264 {offsets = [0, 256], sizes = [2, 128], strides = [1, 1]} : vector<2x384xf32> to vector<2x128xf32>
    %270 = arith.mulf %268, %221 : vector<2x128xf32>
    %271 = arith.mulf %267, %266 : vector<2x128xf32>
    %272 = arith.addf %270, %271 : vector<2x128xf32>
    %273 = math.tanh %272 : vector<2x128xf32>
    %274 = arith.mulf %269, %273 : vector<2x128xf32>
    %275 = vector.extract_strided_slice %15 {offsets = [10, 0], sizes = [2, 512], strides = [1, 1]} : vector<16x512xf32> to vector<2x512xf32>
    %276 = arith.truncf %245 : vector<2x128xf32> to vector<2x128xbf16>
    %c0_101 = arith.constant 0 : index
    %c0_102 = arith.constant 0 : index
    %c0_103 = arith.constant 0 : index
    %277 = vector.load %arg4[%c0_101, %c0_102, %c0_103] : memref<2x128x512xbf16, #tpu.memory_space<vmem>>, vector<1x128x512xbf16>
    %278 = vector.shape_cast %277 : vector<1x128x512xbf16> to vector<128x512xbf16>
    %cst_104 = arith.constant dense<0.000000e+00> : vector<2x512xf32>
    %279 = tpu.matmul %276, %278, %cst_104 {dimension_numbers = #tpu.dot_dimension_numbers<[1], [0], [0], [1], [0, 0, 1, 1], [], []>} : vector<2x128xbf16>, vector<128x512xbf16>, vector<2x512xf32> -> vector<2x512xf32>
    %280 = arith.addf %275, %279 : vector<2x512xf32>
    %281 = vector.extract_strided_slice %280 {offsets = [0, 0], sizes = [2, 384], strides = [1, 1]} : vector<2x512xf32> to vector<2x384xf32>
    %282 = arith.negf %281 : vector<2x384xf32>
    %283 = math.exp %282 : vector<2x384xf32>
    %cst_105 = arith.constant 1.000000e+00 : f32
    %284 = vector.broadcast %cst_105 : f32 to vector<2x384xf32>
    %285 = arith.addf %284, %283 : vector<2x384xf32>
    %286 = arith.divf %284, %285 : vector<2x384xf32>
    %287 = vector.extract_strided_slice %280 {offsets = [0, 384], sizes = [2, 128], strides = [1, 1]} : vector<2x512xf32> to vector<2x128xf32>
    %288 = math.tanh %287 : vector<2x128xf32>
    %289 = vector.extract_strided_slice %286 {offsets = [0, 0], sizes = [2, 128], strides = [1, 1]} : vector<2x384xf32> to vector<2x128xf32>
    %290 = vector.extract_strided_slice %286 {offsets = [0, 128], sizes = [2, 128], strides = [1, 1]} : vector<2x384xf32> to vector<2x128xf32>
    %291 = vector.extract_strided_slice %286 {offsets = [0, 256], sizes = [2, 128], strides = [1, 1]} : vector<2x384xf32> to vector<2x128xf32>
    %292 = arith.mulf %290, %243 : vector<2x128xf32>
    %293 = arith.mulf %289, %288 : vector<2x128xf32>
    %294 = arith.addf %292, %293 : vector<2x128xf32>
    %295 = math.tanh %294 : vector<2x128xf32>
    %296 = arith.mulf %291, %295 : vector<2x128xf32>
    %297 = arith.truncf %296 : vector<2x128xf32> to vector<2x128xbf16>
    %c1_106 = arith.constant 1 : index
    %c0_107 = arith.constant 0 : index
    %c0_108 = arith.constant 0 : index
    %298 = vector.load %arg3[%c1_106, %c0_107, %c0_108] : memref<2x128x512xbf16, #tpu.memory_space<vmem>>, vector<1x128x512xbf16>
    %299 = vector.shape_cast %298 : vector<1x128x512xbf16> to vector<128x512xbf16>
    %cst_109 = arith.constant dense<0.000000e+00> : vector<2x512xf32>
    %300 = tpu.matmul %297, %299, %cst_109 {dimension_numbers = #tpu.dot_dimension_numbers<[1], [0], [0], [1], [0, 0, 1, 1], [], []>} : vector<2x128xbf16>, vector<128x512xbf16>, vector<2x512xf32> -> vector<2x512xf32>
    %c1_110 = arith.constant 1 : index
    %c0_111 = arith.constant 0 : index
    %c0_112 = arith.constant 0 : index
    %301 = vector.load %arg5[%c1_110, %c0_111, %c0_112] : memref<2x1x512xf32, #tpu.memory_space<vmem>>, vector<1x1x512xf32>
    %302 = vector.shape_cast %301 : vector<1x1x512xf32> to vector<1x512xf32>
    %303 = vector.broadcast %302 : vector<1x512xf32> to vector<2x512xf32>
    %304 = arith.addf %300, %303 : vector<2x512xf32>
    %305 = arith.truncf %274 : vector<2x128xf32> to vector<2x128xbf16>
    %c1_113 = arith.constant 1 : index
    %c0_114 = arith.constant 0 : index
    %c0_115 = arith.constant 0 : index
    %306 = vector.load %arg4[%c1_113, %c0_114, %c0_115] : memref<2x128x512xbf16, #tpu.memory_space<vmem>>, vector<1x128x512xbf16>
    %307 = vector.shape_cast %306 : vector<1x128x512xbf16> to vector<128x512xbf16>
    %cst_116 = arith.constant dense<0.000000e+00> : vector<2x512xf32>
    %308 = tpu.matmul %305, %307, %cst_116 {dimension_numbers = #tpu.dot_dimension_numbers<[1], [0], [0], [1], [0, 0, 1, 1], [], []>} : vector<2x128xbf16>, vector<128x512xbf16>, vector<2x512xf32> -> vector<2x512xf32>
    %309 = arith.addf %304, %308 : vector<2x512xf32>
    %310 = vector.extract_strided_slice %309 {offsets = [0, 0], sizes = [2, 384], strides = [1, 1]} : vector<2x512xf32> to vector<2x384xf32>
    %311 = arith.negf %310 : vector<2x384xf32>
    %312 = math.exp %311 : vector<2x384xf32>
    %cst_117 = arith.constant 1.000000e+00 : f32
    %313 = vector.broadcast %cst_117 : f32 to vector<2x384xf32>
    %314 = arith.addf %313, %312 : vector<2x384xf32>
    %315 = arith.divf %313, %314 : vector<2x384xf32>
    %316 = vector.extract_strided_slice %309 {offsets = [0, 384], sizes = [2, 128], strides = [1, 1]} : vector<2x512xf32> to vector<2x128xf32>
    %317 = math.tanh %316 : vector<2x128xf32>
    %318 = vector.extract_strided_slice %315 {offsets = [0, 0], sizes = [2, 128], strides = [1, 1]} : vector<2x384xf32> to vector<2x128xf32>
    %319 = vector.extract_strided_slice %315 {offsets = [0, 128], sizes = [2, 128], strides = [1, 1]} : vector<2x384xf32> to vector<2x128xf32>
    %320 = vector.extract_strided_slice %315 {offsets = [0, 256], sizes = [2, 128], strides = [1, 1]} : vector<2x384xf32> to vector<2x128xf32>
    %321 = arith.mulf %319, %272 : vector<2x128xf32>
    %322 = arith.mulf %318, %317 : vector<2x128xf32>
    %323 = arith.addf %321, %322 : vector<2x128xf32>
    %324 = math.tanh %323 : vector<2x128xf32>
    %325 = arith.mulf %320, %324 : vector<2x128xf32>
    %326 = vector.extract_strided_slice %15 {offsets = [12, 0], sizes = [2, 512], strides = [1, 1]} : vector<16x512xf32> to vector<2x512xf32>
    %327 = arith.truncf %296 : vector<2x128xf32> to vector<2x128xbf16>
    %c0_118 = arith.constant 0 : index
    %c0_119 = arith.constant 0 : index
    %c0_120 = arith.constant 0 : index
    %328 = vector.load %arg4[%c0_118, %c0_119, %c0_120] : memref<2x128x512xbf16, #tpu.memory_space<vmem>>, vector<1x128x512xbf16>
    %329 = vector.shape_cast %328 : vector<1x128x512xbf16> to vector<128x512xbf16>
    %cst_121 = arith.constant dense<0.000000e+00> : vector<2x512xf32>
    %330 = tpu.matmul %327, %329, %cst_121 {dimension_numbers = #tpu.dot_dimension_numbers<[1], [0], [0], [1], [0, 0, 1, 1], [], []>} : vector<2x128xbf16>, vector<128x512xbf16>, vector<2x512xf32> -> vector<2x512xf32>
    %331 = arith.addf %326, %330 : vector<2x512xf32>
    %332 = vector.extract_strided_slice %331 {offsets = [0, 0], sizes = [2, 384], strides = [1, 1]} : vector<2x512xf32> to vector<2x384xf32>
    %333 = arith.negf %332 : vector<2x384xf32>
    %334 = math.exp %333 : vector<2x384xf32>
    %cst_122 = arith.constant 1.000000e+00 : f32
    %335 = vector.broadcast %cst_122 : f32 to vector<2x384xf32>
    %336 = arith.addf %335, %334 : vector<2x384xf32>
    %337 = arith.divf %335, %336 : vector<2x384xf32>
    %338 = vector.extract_strided_slice %331 {offsets = [0, 384], sizes = [2, 128], strides = [1, 1]} : vector<2x512xf32> to vector<2x128xf32>
    %339 = math.tanh %338 : vector<2x128xf32>
    %340 = vector.extract_strided_slice %337 {offsets = [0, 0], sizes = [2, 128], strides = [1, 1]} : vector<2x384xf32> to vector<2x128xf32>
    %341 = vector.extract_strided_slice %337 {offsets = [0, 128], sizes = [2, 128], strides = [1, 1]} : vector<2x384xf32> to vector<2x128xf32>
    %342 = vector.extract_strided_slice %337 {offsets = [0, 256], sizes = [2, 128], strides = [1, 1]} : vector<2x384xf32> to vector<2x128xf32>
    %343 = arith.mulf %341, %294 : vector<2x128xf32>
    %344 = arith.mulf %340, %339 : vector<2x128xf32>
    %345 = arith.addf %343, %344 : vector<2x128xf32>
    %346 = math.tanh %345 : vector<2x128xf32>
    %347 = arith.mulf %342, %346 : vector<2x128xf32>
    %348 = arith.truncf %347 : vector<2x128xf32> to vector<2x128xbf16>
    %c1_123 = arith.constant 1 : index
    %c0_124 = arith.constant 0 : index
    %c0_125 = arith.constant 0 : index
    %349 = vector.load %arg3[%c1_123, %c0_124, %c0_125] : memref<2x128x512xbf16, #tpu.memory_space<vmem>>, vector<1x128x512xbf16>
    %350 = vector.shape_cast %349 : vector<1x128x512xbf16> to vector<128x512xbf16>
    %cst_126 = arith.constant dense<0.000000e+00> : vector<2x512xf32>
    %351 = tpu.matmul %348, %350, %cst_126 {dimension_numbers = #tpu.dot_dimension_numbers<[1], [0], [0], [1], [0, 0, 1, 1], [], []>} : vector<2x128xbf16>, vector<128x512xbf16>, vector<2x512xf32> -> vector<2x512xf32>
    %c1_127 = arith.constant 1 : index
    %c0_128 = arith.constant 0 : index
    %c0_129 = arith.constant 0 : index
    %352 = vector.load %arg5[%c1_127, %c0_128, %c0_129] : memref<2x1x512xf32, #tpu.memory_space<vmem>>, vector<1x1x512xf32>
    %353 = vector.shape_cast %352 : vector<1x1x512xf32> to vector<1x512xf32>
    %354 = vector.broadcast %353 : vector<1x512xf32> to vector<2x512xf32>
    %355 = arith.addf %351, %354 : vector<2x512xf32>
    %356 = arith.truncf %325 : vector<2x128xf32> to vector<2x128xbf16>
    %c1_130 = arith.constant 1 : index
    %c0_131 = arith.constant 0 : index
    %c0_132 = arith.constant 0 : index
    %357 = vector.load %arg4[%c1_130, %c0_131, %c0_132] : memref<2x128x512xbf16, #tpu.memory_space<vmem>>, vector<1x128x512xbf16>
    %358 = vector.shape_cast %357 : vector<1x128x512xbf16> to vector<128x512xbf16>
    %cst_133 = arith.constant dense<0.000000e+00> : vector<2x512xf32>
    %359 = tpu.matmul %356, %358, %cst_133 {dimension_numbers = #tpu.dot_dimension_numbers<[1], [0], [0], [1], [0, 0, 1, 1], [], []>} : vector<2x128xbf16>, vector<128x512xbf16>, vector<2x512xf32> -> vector<2x512xf32>
    %360 = arith.addf %355, %359 : vector<2x512xf32>
    %361 = vector.extract_strided_slice %360 {offsets = [0, 0], sizes = [2, 384], strides = [1, 1]} : vector<2x512xf32> to vector<2x384xf32>
    %362 = arith.negf %361 : vector<2x384xf32>
    %363 = math.exp %362 : vector<2x384xf32>
    %cst_134 = arith.constant 1.000000e+00 : f32
    %364 = vector.broadcast %cst_134 : f32 to vector<2x384xf32>
    %365 = arith.addf %364, %363 : vector<2x384xf32>
    %366 = arith.divf %364, %365 : vector<2x384xf32>
    %367 = vector.extract_strided_slice %360 {offsets = [0, 384], sizes = [2, 128], strides = [1, 1]} : vector<2x512xf32> to vector<2x128xf32>
    %368 = math.tanh %367 : vector<2x128xf32>
    %369 = vector.extract_strided_slice %366 {offsets = [0, 0], sizes = [2, 128], strides = [1, 1]} : vector<2x384xf32> to vector<2x128xf32>
    %370 = vector.extract_strided_slice %366 {offsets = [0, 128], sizes = [2, 128], strides = [1, 1]} : vector<2x384xf32> to vector<2x128xf32>
    %371 = vector.extract_strided_slice %366 {offsets = [0, 256], sizes = [2, 128], strides = [1, 1]} : vector<2x384xf32> to vector<2x128xf32>
    %372 = arith.mulf %370, %323 : vector<2x128xf32>
    %373 = arith.mulf %369, %368 : vector<2x128xf32>
    %374 = arith.addf %372, %373 : vector<2x128xf32>
    %375 = math.tanh %374 : vector<2x128xf32>
    %376 = arith.mulf %371, %375 : vector<2x128xf32>
    %377 = vector.extract_strided_slice %15 {offsets = [14, 0], sizes = [2, 512], strides = [1, 1]} : vector<16x512xf32> to vector<2x512xf32>
    %378 = arith.truncf %347 : vector<2x128xf32> to vector<2x128xbf16>
    %c0_135 = arith.constant 0 : index
    %c0_136 = arith.constant 0 : index
    %c0_137 = arith.constant 0 : index
    %379 = vector.load %arg4[%c0_135, %c0_136, %c0_137] : memref<2x128x512xbf16, #tpu.memory_space<vmem>>, vector<1x128x512xbf16>
    %380 = vector.shape_cast %379 : vector<1x128x512xbf16> to vector<128x512xbf16>
    %cst_138 = arith.constant dense<0.000000e+00> : vector<2x512xf32>
    %381 = tpu.matmul %378, %380, %cst_138 {dimension_numbers = #tpu.dot_dimension_numbers<[1], [0], [0], [1], [0, 0, 1, 1], [], []>} : vector<2x128xbf16>, vector<128x512xbf16>, vector<2x512xf32> -> vector<2x512xf32>
    %382 = arith.addf %377, %381 : vector<2x512xf32>
    %383 = vector.extract_strided_slice %382 {offsets = [0, 0], sizes = [2, 384], strides = [1, 1]} : vector<2x512xf32> to vector<2x384xf32>
    %384 = arith.negf %383 : vector<2x384xf32>
    %385 = math.exp %384 : vector<2x384xf32>
    %cst_139 = arith.constant 1.000000e+00 : f32
    %386 = vector.broadcast %cst_139 : f32 to vector<2x384xf32>
    %387 = arith.addf %386, %385 : vector<2x384xf32>
    %388 = arith.divf %386, %387 : vector<2x384xf32>
    %389 = vector.extract_strided_slice %382 {offsets = [0, 384], sizes = [2, 128], strides = [1, 1]} : vector<2x512xf32> to vector<2x128xf32>
    %390 = math.tanh %389 : vector<2x128xf32>
    %391 = vector.extract_strided_slice %388 {offsets = [0, 0], sizes = [2, 128], strides = [1, 1]} : vector<2x384xf32> to vector<2x128xf32>
    %392 = vector.extract_strided_slice %388 {offsets = [0, 128], sizes = [2, 128], strides = [1, 1]} : vector<2x384xf32> to vector<2x128xf32>
    %393 = vector.extract_strided_slice %388 {offsets = [0, 256], sizes = [2, 128], strides = [1, 1]} : vector<2x384xf32> to vector<2x128xf32>
    %394 = arith.mulf %392, %345 : vector<2x128xf32>
    %395 = arith.mulf %391, %390 : vector<2x128xf32>
    %396 = arith.addf %394, %395 : vector<2x128xf32>
    %397 = math.tanh %396 : vector<2x128xf32>
    %398 = arith.mulf %393, %397 : vector<2x128xf32>
    %399 = arith.truncf %398 : vector<2x128xf32> to vector<2x128xbf16>
    %c1_140 = arith.constant 1 : index
    %c0_141 = arith.constant 0 : index
    %c0_142 = arith.constant 0 : index
    %400 = vector.load %arg3[%c1_140, %c0_141, %c0_142] : memref<2x128x512xbf16, #tpu.memory_space<vmem>>, vector<1x128x512xbf16>
    %401 = vector.shape_cast %400 : vector<1x128x512xbf16> to vector<128x512xbf16>
    %cst_143 = arith.constant dense<0.000000e+00> : vector<2x512xf32>
    %402 = tpu.matmul %399, %401, %cst_143 {dimension_numbers = #tpu.dot_dimension_numbers<[1], [0], [0], [1], [0, 0, 1, 1], [], []>} : vector<2x128xbf16>, vector<128x512xbf16>, vector<2x512xf32> -> vector<2x512xf32>
    %c1_144 = arith.constant 1 : index
    %c0_145 = arith.constant 0 : index
    %c0_146 = arith.constant 0 : index
    %403 = vector.load %arg5[%c1_144, %c0_145, %c0_146] : memref<2x1x512xf32, #tpu.memory_space<vmem>>, vector<1x1x512xf32>
    %404 = vector.shape_cast %403 : vector<1x1x512xf32> to vector<1x512xf32>
    %405 = vector.broadcast %404 : vector<1x512xf32> to vector<2x512xf32>
    %406 = arith.addf %402, %405 : vector<2x512xf32>
    %407 = arith.truncf %376 : vector<2x128xf32> to vector<2x128xbf16>
    %c1_147 = arith.constant 1 : index
    %c0_148 = arith.constant 0 : index
    %c0_149 = arith.constant 0 : index
    %408 = vector.load %arg4[%c1_147, %c0_148, %c0_149] : memref<2x128x512xbf16, #tpu.memory_space<vmem>>, vector<1x128x512xbf16>
    %409 = vector.shape_cast %408 : vector<1x128x512xbf16> to vector<128x512xbf16>
    %cst_150 = arith.constant dense<0.000000e+00> : vector<2x512xf32>
    %410 = tpu.matmul %407, %409, %cst_150 {dimension_numbers = #tpu.dot_dimension_numbers<[1], [0], [0], [1], [0, 0, 1, 1], [], []>} : vector<2x128xbf16>, vector<128x512xbf16>, vector<2x512xf32> -> vector<2x512xf32>
    %411 = arith.addf %406, %410 : vector<2x512xf32>
    %412 = vector.extract_strided_slice %411 {offsets = [0, 0], sizes = [2, 384], strides = [1, 1]} : vector<2x512xf32> to vector<2x384xf32>
    %413 = arith.negf %412 : vector<2x384xf32>
    %414 = math.exp %413 : vector<2x384xf32>
    %cst_151 = arith.constant 1.000000e+00 : f32
    %415 = vector.broadcast %cst_151 : f32 to vector<2x384xf32>
    %416 = arith.addf %415, %414 : vector<2x384xf32>
    %417 = arith.divf %415, %416 : vector<2x384xf32>
    %418 = vector.extract_strided_slice %411 {offsets = [0, 384], sizes = [2, 128], strides = [1, 1]} : vector<2x512xf32> to vector<2x128xf32>
    %419 = math.tanh %418 : vector<2x128xf32>
    %420 = vector.extract_strided_slice %417 {offsets = [0, 0], sizes = [2, 128], strides = [1, 1]} : vector<2x384xf32> to vector<2x128xf32>
    %421 = vector.extract_strided_slice %417 {offsets = [0, 128], sizes = [2, 128], strides = [1, 1]} : vector<2x384xf32> to vector<2x128xf32>
    %422 = vector.extract_strided_slice %417 {offsets = [0, 256], sizes = [2, 128], strides = [1, 1]} : vector<2x384xf32> to vector<2x128xf32>
    %423 = arith.mulf %421, %374 : vector<2x128xf32>
    %424 = arith.mulf %420, %419 : vector<2x128xf32>
    %425 = arith.addf %423, %424 : vector<2x128xf32>
    %426 = math.tanh %425 : vector<2x128xf32>
    %427 = arith.mulf %422, %426 : vector<2x128xf32>
    %428 = arith.truncf %427 : vector<2x128xf32> to vector<2x128xbf16>
    %c0_152 = arith.constant 0 : index
    %c0_153 = arith.constant 0 : index
    %429 = vector.load %arg6[%c0_152, %c0_153] : memref<128x128xbf16, #tpu.memory_space<vmem>>, vector<128x128xbf16>
    %cst_154 = arith.constant dense<0.000000e+00> : vector<2x128xf32>
    %430 = tpu.matmul %428, %429, %cst_154 {dimension_numbers = #tpu.dot_dimension_numbers<[1], [0], [0], [1], [0, 0, 1, 1], [], []>} : vector<2x128xbf16>, vector<128x128xbf16>, vector<2x128xf32> -> vector<2x128xf32>
    %c0_155 = arith.constant 0 : index
    %c0_156 = arith.constant 0 : index
    %431 = vector.load %arg7[%c0_155, %c0_156] : memref<1x128xf32, #tpu.memory_space<vmem>>, vector<1x128xf32>
    %432 = vector.broadcast %431 : vector<1x128xf32> to vector<2x128xf32>
    %433 = arith.addf %430, %432 : vector<2x128xf32>
    %c0_157 = arith.constant 0 : index
    %c0_158 = arith.constant 0 : index
    %434 = vector.load %arg8[%c0_157, %c0_158] : memref<2x128xf32, #tpu.memory_space<vmem>>, vector<2x128xf32>
    tpu.vector_store %arg8[%c0_157, %c0_158], %433 {strides = array<i32>} : memref<2x128xf32, #tpu.memory_space<vmem>>, vector<2x128xf32>,
    return
  }
}

</mosaic_0001>

<llo_original>
// kernel: lstm_model_forward.1
$region0: #{lstm_model_forward.1}
  #allocation0 [shape = 'u32[]', space=smem, size = 0x4, offset = 0x4, fixed_abs, tag = 'smem constant byte address 0x4 - core index']
  #allocation1 [shape = 'u32[144,128]{1,0:T(1,128)}', space=vmem, size = 0x12000, scoped, tag = 'internal scratch']
  %s0 = inlined_call_operand.vmem [shape: bf16[16,16], index: 0, kind: input, shape index: {}]
  %s1 = inlined_call_operand.vmem [shape: bf16[16,128], index: 1, kind: input, shape index: {}]
  %s2 = inlined_call_operand.vmem [shape: f32[1,128], index: 2, kind: input, shape index: {}]
  %s3 = inlined_call_operand.hbm [shape: bf16[2,128,512], index: 3, kind: input, shape index: {}]
  %s4 = inlined_call_operand.hbm [shape: bf16[2,128,512], index: 4, kind: input, shape index: {}]
  %s5 = inlined_call_operand.vmem [shape: f32[2,1,512], index: 5, kind: input, shape index: {}]
  %s6 = inlined_call_operand.hbm [shape: bf16[128,128], index: 6, kind: input, shape index: {}]
  %s7 = inlined_call_operand.vmem [shape: f32[1,128], index: 7, kind: input, shape index: {}]
  %s8 = inlined_call_operand.hbm [shape: f32[2,128], index: 8, kind: output, shape index: {}]
  %s9 = sld [smem:[#allocation0]]
  $region54: #{lstm_model_forward.1} parent=0
    _
  %s11 = ssub.s32 1, %s9
  %s12 = scalar_select 0, %s11, %s9
  $region1: #{lstm_model_forward.1} parent=0
    #allocation2 [shape = 'u8[262144]{0}', space=vmem, size = 0x40000, scoped, tag = 'input window, operand 3, single buffered']
    #allocation3 [shape = 's32[1]{0}', space=sflag, size = 0x4, scoped, tag = 'scoped memory for lstm_model_forward.1']
    #allocation4 [shape = 's32[1]{0}', space=sflag, size = 0x4, scoped, tag = 'scoped memory for lstm_model_forward.1']
    #allocation5 [shape = 'u8[262144]{0}', space=vmem, size = 0x40000, scoped, tag = 'input window, operand 4, single buffered']
    #allocation6 [shape = 's32[1]{0}', space=sflag, size = 0x4, scoped, tag = 'scoped memory for lstm_model_forward.1']
    #allocation7 [shape = 'u8[32768]{0}', space=vmem, size = 0x8000, scoped, tag = 'input window, operand 6, single buffered']
    #allocation8 [shape = 'u8[1024]{0}', space=vmem, size = 0x400, scoped, tag = 'output window, operand 0, single buffered']
    %13 = vsyncpa [#allocation3], 0
    %14 = vsyncpa [#allocation6], 0
    %15 = vsyncpa [#allocation4], 0
    // Predicated region
    $region2: #{lstm_model_forward.1} parent=1 // pred_check
      _
    $region3: #{lstm_model_forward.1} parent=1 // pred_check_branch
      %17 = sbr.rel (0) target = $region5
    $region4: #{lstm_model_forward.1} parent=1 // pred_region
      _
    $region5: #{lstm_model_forward.1} parent=1 // pred_fallthru
      _
    // Predicated region
    $region6: #{lstm_model_forward.1} parent=1 // pred_check
      _
    $region7: #{lstm_model_forward.1} parent=1 // pred_check_branch
      %19 = sbr.rel (0) target = $region9
    $region8: #{lstm_model_forward.1} parent=1 // pred_region
      _
    $region9: #{lstm_model_forward.1} parent=1 // pred_fallthru
      _
    // Predicated region
    $region10: #{lstm_model_forward.1} parent=1 // pred_check
      _
    $region11: #{lstm_model_forward.1} parent=1 // pred_check_branch
      %21 = sbr.rel (0) target = $region13
    $region12: #{lstm_model_forward.1} parent=1 // pred_region
      _
    $region13: #{lstm_model_forward.1} parent=1 // pred_fallthru
      _
    // Predicated region
    $region14: #{lstm_model_forward.1} parent=1 // pred_check
      _
    $region15: #{lstm_model_forward.1} parent=1 // pred_check_branch
      %23 = sbr.rel (0) target = $region17
    $region16: #{lstm_model_forward.1} parent=1 // pred_region
      %s25 = ssub.s32 8192, 8192
      %26 = vsyncadd [#allocation3], %s25
      %s27 = sshll.u32 [#allocation2], 4
      %s28 = int_to_ptr.vmem [resolvable:$true] %s27
      %33 = dma.hbm_to_vmem [thread:$0]  %s3, 8192, %s28, [#allocation3], 256, 256, 16
    $region17: #{lstm_model_forward.1} parent=1 // pred_fallthru
      _
    // Predicated region
    $region18: #{lstm_model_forward.1} parent=1 // pred_check
      _
    $region19: #{lstm_model_forward.1} parent=1 // pred_check_branch
      %35 = sbr.rel (0) target = $region21
    $region20: #{lstm_model_forward.1} parent=1 // pred_region
      %s37 = ssub.s32 8192, 8192
      %38 = vsyncadd [#allocation6], %s37
      %s39 = sshll.u32 [#allocation5], 4
      %s40 = int_to_ptr.vmem [resolvable:$true] %s39
      %45 = dma.hbm_to_vmem [thread:$0]  %s4, 8192, %s40, [#allocation6], 256, 256, 16
    $region21: #{lstm_model_forward.1} parent=1 // pred_fallthru
      _
    // Predicated region
    $region22: #{lstm_model_forward.1} parent=1 // pred_check
      _
    $region23: #{lstm_model_forward.1} parent=1 // pred_check_branch
      %47 = sbr.rel (0) target = $region25
    $region24: #{lstm_model_forward.1} parent=1 // pred_region
      _
    $region25: #{lstm_model_forward.1} parent=1 // pred_fallthru
      _
    // Predicated region
    $region26: #{lstm_model_forward.1} parent=1 // pred_check
      _
    $region27: #{lstm_model_forward.1} parent=1 // pred_check_branch
      %49 = sbr.rel (0) target = $region29
    $region28: #{lstm_model_forward.1} parent=1 // pred_region
      %s51 = ssub.s32 1024, 1024
      %52 = vsyncadd [#allocation6], %s51
      %s53 = sshll.u32 [#allocation7], 4
      %s54 = int_to_ptr.vmem [resolvable:$true] %s53
      %59 = dma.hbm_to_vmem [thread:$0]  %s6, 1024, %s54, [#allocation6], 64, 64, 4
    $region29: #{lstm_model_forward.1} parent=1 // pred_fallthru
      _
    // Predicated region
    $region30: #{lstm_model_forward.1} parent=1 // pred_check
      _
    $region31: #{lstm_model_forward.1} parent=1 // pred_check_branch
      %61 = sbr.rel (0) target = $region33
    $region32: #{lstm_model_forward.1} parent=1 // pred_region
      _
    $region33: #{lstm_model_forward.1} parent=1 // pred_fallthru
      _
    // Predicated region
    $region34: #{lstm_model_forward.1} parent=1 // pred_check
      _
    $region35: #{lstm_model_forward.1} parent=1 // pred_check_branch
      %63 = sbr.rel (0) target = $region37
    $region36: #{lstm_model_forward.1} parent=1 // pred_region
      %64 = dma.done [#allocation3], 8192
    $region37: #{lstm_model_forward.1} parent=1 // pred_fallthru
      _
    // Predicated region
    $region38: #{lstm_model_forward.1} parent=1 // pred_check
      _
    $region39: #{lstm_model_forward.1} parent=1 // pred_check_branch
      %66 = sbr.rel (0) target = $region41
    $region40: #{lstm_model_forward.1} parent=1 // pred_region
      %67 = dma.done [#allocation6], 8192
    $region41: #{lstm_model_forward.1} parent=1 // pred_fallthru
      _
    // Predicated region
    $region42: #{lstm_model_forward.1} parent=1 // pred_check
      _
    $region43: #{lstm_model_forward.1} parent=1 // pred_check_branch
      %69 = sbr.rel (0) target = $region45
    $region44: #{lstm_model_forward.1} parent=1 // pred_region
      %70 = dma.done [#allocation6], 1024
    $region45: #{lstm_model_forward.1} parent=1 // pred_fallthru
      _
    %v72 = vld [vmem:[%s0] sm:$0xf]
    %v73 = vld [vmem:[%s0 + $0x4] sm:$0xf]
    %v74 = vld [vmem:[%s1] sm:$0xf]
    %v75 = vld [vmem:[%s1 + $0x4] sm:$0xf]
    %v76 = vld [vmem:[%s2] sm:$0x1]
    %v78 = vlaneseq
    %v79 = vshrl.u32 %v78, 7
    %v80 = vsub.s32 0, %v79
    %v81 = vrot.slane %v76, %v80
    %v85 = vunpack.c.l.b16 %v72
    %v86 = vunpack.c.l.b16 %v73
    %v87 = vpack.c.b16 %v86, %v85
    %v90 = vunpack.c.l.b16 %v74
    %v91 = vunpack.c.l.b16 %v75
    %v92 = vpack.c.b16 %v91, %v90
    %vm94 = vcmask 130048
    %v96 = vsel %vm94, %v87, 0
    %98 = vmatprep.subr.bf16.mxu0 0
    %99 = vmatpush1.bf16.msra.mxu0 %v92
    %100 = vmatprep.subr.bf16.mxu0 0
    %101 = vmatpush1.bf16.msra.mxu0 0
    %102 = vmatprep.subr.bf16.mxu0 0
    %103 = vmatpush1.bf16.msra.mxu0 0
    %104 = vmatprep.subr.bf16.mxu0 0
    %105 = vmatpush1.bf16.msra.mxu0 0
    %106 = vmatprep.subr.bf16.mxu0 0
    %107 = vmatpush1.bf16.msra.mxu0 0
    %108 = vmatprep.subr.bf16.mxu0 0
    %109 = vmatpush1.bf16.msra.mxu0 0
    %110 = vmatprep.subr.bf16.mxu0 0
    %111 = vmatpush1.bf16.msra.mxu0 0
    %112 = vmatprep.subr.bf16.mxu0 0
    %113 = vmatpush1.bf16.msra.mxu0 0
    %114 = vmatprep.subr.bf16.mxu0 0
    %115 = vmatpush1.bf16.msra.mxu0 0
    %116 = vmatprep.subr.bf16.mxu0 0
    %117 = vmatpush1.bf16.msra.mxu0 0
    %118 = vmatprep.subr.bf16.mxu0 0
    %119 = vmatpush1.bf16.msra.mxu0 0
    %120 = vmatprep.subr.bf16.mxu0 0
    %121 = vmatpush1.bf16.msra.mxu0 0
    %122 = vmatprep.subr.bf16.mxu0 0
    %123 = vmatpush1.bf16.msra.mxu0 0
    %124 = vmatprep.subr.bf16.mxu0 0
    %125 = vmatpush1.bf16.msra.mxu0 0
    %126 = vmatprep.subr.bf16.mxu0 0
    %127 = vmatpush1.bf16.msra.mxu0 0
    %128 = vmatprep.subr.bf16.mxu0 0
    %129 = vmatpush1.bf16.msra.mxu0 0
    %130 = vmatprep.mubr.bf16.mxu0 0
    %131 = vmatmul.mubr.bf16.gmra.mrb[0].mxu0 %v96
    %v132 = vpop.f32.mrb[0].mxu0
    %v133 = vadd.f32 %v81, %v132
    %v134 = vpop.f32.mrb[0].mxu0
    %v135 = vpop.f32.mrb[0].mxu0
    %v136 = vadd.f32 %v81, %v135
    %v137 = vpop.f32.mrb[0].mxu0
    %138 = vdwg.mxu0
    %v139 = vmax.f32 %v133, 0.0
    %v140 = vmax.f32 %v136, 0.0
    %v141 = vpack.c.bf16 %v140, %v139
    %v142 = vld [vmem:[#allocation2] sm:$0xff]
    %v143 = vld [vmem:[#allocation2 + $0x8] sm:$0xff]
    %v144 = vld [vmem:[#allocation2 + $0x10] sm:$0xff]
    %v145 = vld [vmem:[#allocation2 + $0x18] sm:$0xff]
    %v146 = vld [vmem:[#allocation2 + $0x20] sm:$0xff]
    %v147 = vld [vmem:[#allocation2 + $0x28] sm:$0xff]
    %v148 = vld [vmem:[#allocation2 + $0x30] sm:$0xff]
    %v149 = vld [vmem:[#allocation2 + $0x38] sm:$0xff]
    %v150 = vld [vmem:[#allocation2 + $0x40] sm:$0xff]
    %v151 = vld [vmem:[#allocation2 + $0x48] sm:$0xff]
    %v152 = vld [vmem:[#allocation2 + $0x50] sm:$0xff]
    %v153 = vld [vmem:[#allocation2 + $0x58] sm:$0xff]
    %v154 = vld [vmem:[#allocation2 + $0x60] sm:$0xff]
    %v155 = vld [vmem:[#allocation2 + $0x68] sm:$0xff]
    %v156 = vld [vmem:[#allocation2 + $0x70] sm:$0xff]
    %v157 = vld [vmem:[#allocation2 + $0x78] sm:$0xff]
    %v158 = vld [vmem:[#allocation2 + $0x80] sm:$0xff]
    %v159 = vld [vmem:[#allocation2 + $0x88] sm:$0xff]
    %v160 = vld [vmem:[#allocation2 + $0x90] sm:$0xff]
    %v161 = vld [vmem:[#allocation2 + $0x98] sm:$0xff]
    %v162 = vld [vmem:[#allocation2 + $0xa0] sm:$0xff]
    %v163 = vld [vmem:[#allocation2 + $0xa8] sm:$0xff]
    %v164 = vld [vmem:[#allocation2 + $0xb0] sm:$0xff]
    %v165 = vld [vmem:[#allocation2 + $0xb8] sm:$0xff]
    %v166 = vld [vmem:[#allocation2 + $0xc0] sm:$0xff]
    %v167 = vld [vmem:[#allocation2 + $0xc8] sm:$0xff]
    %v168 = vld [vmem:[#allocation2 + $0xd0] sm:$0xff]
    %v169 = vld [vmem:[#allocation2 + $0xd8] sm:$0xff]
    %v170 = vld [vmem:[#allocation2 + $0xe0] sm:$0xff]
    %v171 = vld [vmem:[#allocation2 + $0xe8] sm:$0xff]
    %v172 = vld [vmem:[#allocation2 + $0xf0] sm:$0xff]
    %v173 = vld [vmem:[#allocation2 + $0xf8] sm:$0xff]
    %v174 = vld [vmem:[%s5] sm:$0xf]
    %v176 = vlaneseq
    %v177 = vshrl.u32 %v176, 7
    %v178 = vsub.s32 0, %v177
    %v179 = vrot.slane %v174, %v178
    %v180 = vlaneseq
    %v181 = vshrl.u32 %v180, 7
    %v182 = vsub.s32 1, %v181
    %v183 = vrot.slane %v174, %v182
    %v184 = vlaneseq
    %v185 = vshrl.u32 %v184, 7
    %v186 = vsub.s32 2, %v185
    %v187 = vrot.slane %v174, %v186
    %v188 = vlaneseq
    %v189 = vshrl.u32 %v188, 7
    %v190 = vsub.s32 3, %v189
    %v191 = vrot.slane %v174, %v190
    %v228 = vunpack.c.l.b16 %v142
    %v229 = vunpack.c.h.b16 %v142
    %v230 = vunpack.c.l.b16 %v143
    %v231 = vunpack.c.h.b16 %v143
    %v232 = vunpack.c.l.b16 %v144
    %v233 = vunpack.c.h.b16 %v144
    %v234 = vunpack.c.l.b16 %v145
    %v235 = vunpack.c.h.b16 %v145
    %v236 = vunpack.c.l.b16 %v146
    %v237 = vunpack.c.h.b16 %v146
    %v238 = vunpack.c.l.b16 %v147
    %v239 = vunpack.c.h.b16 %v147
    %v240 = vunpack.c.l.b16 %v148
    %v241 = vunpack.c.h.b16 %v148
    %v242 = vunpack.c.l.b16 %v149
    %v243 = vunpack.c.h.b16 %v149
    %v244 = vunpack.c.l.b16 %v150
    %v245 = vunpack.c.h.b16 %v150
    %v246 = vunpack.c.l.b16 %v151
    %v247 = vunpack.c.h.b16 %v151
    %v248 = vunpack.c.l.b16 %v152
    %v249 = vunpack.c.h.b16 %v152
    %v250 = vunpack.c.l.b16 %v153
    %v251 = vunpack.c.h.b16 %v153
    %v252 = vunpack.c.l.b16 %v154
    %v253 = vunpack.c.h.b16 %v154
    %v254 = vunpack.c.l.b16 %v155
    %v255 = vunpack.c.h.b16 %v155
    %v256 = vunpack.c.l.b16 %v156
    %v257 = vunpack.c.h.b16 %v156
    %v258 = vunpack.c.l.b16 %v157
    %v259 = vunpack.c.h.b16 %v157
    %v260 = vunpack.c.l.b16 %v158
    %v261 = vunpack.c.h.b16 %v158
    %v262 = vunpack.c.l.b16 %v159
    %v263 = vunpack.c.h.b16 %v159
    %v264 = vunpack.c.l.b16 %v160
    %v265 = vunpack.c.h.b16 %v160
    %v266 = vunpack.c.l.b16 %v161
    %v267 = vunpack.c.h.b16 %v161
    %v268 = vunpack.c.l.b16 %v162
    %v269 = vunpack.c.h.b16 %v162
    %v270 = vunpack.c.l.b16 %v163
    %v271 = vunpack.c.h.b16 %v163
    %v272 = vunpack.c.l.b16 %v164
    %v273 = vunpack.c.h.b16 %v164
    %v274 = vunpack.c.l.b16 %v165
    %v275 = vunpack.c.h.b16 %v165
    %v276 = vunpack.c.l.b16 %v166
    %v277 = vunpack.c.h.b16 %v166
    %v278 = vunpack.c.l.b16 %v167
    %v279 = vunpack.c.h.b16 %v167
    %v280 = vunpack.c.l.b16 %v168
    %v281 = vunpack.c.h.b16 %v168
    %v282 = vunpack.c.l.b16 %v169
    %v283 = vunpack.c.h.b16 %v169
    %v284 = vunpack.c.l.b16 %v170
    %v285 = vunpack.c.h.b16 %v170
    %v286 = vunpack.c.l.b16 %v171
    %v287 = vunpack.c.h.b16 %v171
    %v288 = vunpack.c.l.b16 %v172
    %v289 = vunpack.c.h.b16 %v172
    %v290 = vunpack.c.l.b16 %v173
    %v291 = vunpack.c.h.b16 %v173
    %v292 = vpack.c.b16 %v232, %v228
    %v293 = vpack.c.b16 %v233, %v229
    %v294 = vpack.c.b16 %v234, %v230
    %v295 = vpack.c.b16 %v235, %v231
    %v296 = vpack.c.b16 %v240, %v236
    %v297 = vpack.c.b16 %v241, %v237
    %v298 = vpack.c.b16 %v242, %v238
    %v299 = vpack.c.b16 %v243, %v239
    %v300 = vpack.c.b16 %v248, %v244
    %v301 = vpack.c.b16 %v249, %v245
    %v302 = vpack.c.b16 %v250, %v246
    %v303 = vpack.c.b16 %v251, %v247
    %v304 = vpack.c.b16 %v256, %v252
    %v305 = vpack.c.b16 %v257, %v253
    %v306 = vpack.c.b16 %v258, %v254
    %v307 = vpack.c.b16 %v259, %v255
    %v308 = vpack.c.b16 %v264, %v260
    %v309 = vpack.c.b16 %v265, %v261
    %v310 = vpack.c.b16 %v266, %v262
    %v311 = vpack.c.b16 %v267, %v263
    %v312 = vpack.c.b16 %v272, %v268
    %v313 = vpack.c.b16 %v273, %v269
    %v314 = vpack.c.b16 %v274, %v270
    %v315 = vpack.c.b16 %v275, %v271
    %v316 = vpack.c.b16 %v280, %v276
    %v317 = vpack.c.b16 %v281, %v277
    %v318 = vpack.c.b16 %v282, %v278
    %v319 = vpack.c.b16 %v283, %v279
    %v320 = vpack.c.b16 %v288, %v284
    %v321 = vpack.c.b16 %v289, %v285
    %v322 = vpack.c.b16 %v290, %v286
    %v323 = vpack.c.b16 %v291, %v287
    %356 = vmatprep.subr.bf16.mxu0 %v293
    %357 = vmatpush1.bf16.msra.mxu0 %v292
    %358 = vmatprep.subr.bf16.mxu0 %v297
    %359 = vmatpush1.bf16.msra.mxu0 %v296
    %360 = vmatprep.subr.bf16.mxu0 %v301
    %361 = vmatpush1.bf16.msra.mxu0 %v300
    %362 = vmatprep.subr.bf16.mxu0 %v305
    %363 = vmatpush1.bf16.msra.mxu0 %v304
    %364 = vmatprep.subr.bf16.mxu0 %v309
    %365 = vmatpush1.bf16.msra.mxu0 %v308
    %366 = vmatprep.subr.bf16.mxu0 %v313
    %367 = vmatpush1.bf16.msra.mxu0 %v312
    %368 = vmatprep.subr.bf16.mxu0 %v317
    %369 = vmatpush1.bf16.msra.mxu0 %v316
    %370 = vmatprep.subr.bf16.mxu0 %v321
    %371 = vmatpush1.bf16.msra.mxu0 %v320
    %372 = vmatprep.subr.bf16.mxu0 0
    %373 = vmatpush1.bf16.msra.mxu0 0
    %374 = vmatprep.subr.bf16.mxu0 0
    %375 = vmatpush1.bf16.msra.mxu0 0
    %376 = vmatprep.subr.bf16.mxu0 0
    %377 = vmatpush1.bf16.msra.mxu0 0
    %378 = vmatprep.subr.bf16.mxu0 0
    %379 = vmatpush1.bf16.msra.mxu0 0
    %380 = vmatprep.subr.bf16.mxu0 0
    %381 = vmatpush1.bf16.msra.mxu0 0
    %382 = vmatprep.subr.bf16.mxu0 0
    %383 = vmatpush1.bf16.msra.mxu0 0
    %384 = vmatprep.subr.bf16.mxu0 0
    %385 = vmatpush1.bf16.msra.mxu0 0
    %386 = vmatprep.subr.bf16.mxu0 0
    %387 = vmatpush1.bf16.msra.mxu0 0
    %388 = vmatprep.mubr.bf16.mxu0 0
    %389 = vmatmul.mubr.bf16.gmra.mrb[0].mxu0 %v141
    %v390 = vpop.f32.mrb[0].mxu0
    %v391 = vadd.f32 %v179, %v390
    %v392 = vpop.f32.mrb[0].mxu0
    %v393 = vadd.f32 %v183, %v392
    %v394 = vpop.f32.mrb[0].mxu0
    %v395 = vadd.f32 %v179, %v394
    %v396 = vpop.f32.mrb[0].mxu0
    %v397 = vadd.f32 %v183, %v396
    %398 = vdwg.mxu0
    %399 = vmatprep.subr.bf16.mxu0 %v295
    %400 = vmatpush1.bf16.msra.mxu0 %v294
    %401 = vmatprep.subr.bf16.mxu0 %v299
    %402 = vmatpush1.bf16.msra.mxu0 %v298
    %403 = vmatprep.subr.bf16.mxu0 %v303
    %404 = vmatpush1.bf16.msra.mxu0 %v302
    %405 = vmatprep.subr.bf16.mxu0 %v307
    %406 = vmatpush1.bf16.msra.mxu0 %v306
    %407 = vmatprep.subr.bf16.mxu0 %v311
    %408 = vmatpush1.bf16.msra.mxu0 %v310
    %409 = vmatprep.subr.bf16.mxu0 %v315
    %410 = vmatpush1.bf16.msra.mxu0 %v314
    %411 = vmatprep.subr.bf16.mxu0 %v319
    %412 = vmatpush1.bf16.msra.mxu0 %v318
    %413 = vmatprep.subr.bf16.mxu0 %v323
    %414 = vmatpush1.bf16.msra.mxu0 %v322
    %415 = vmatprep.subr.bf16.mxu0 0
    %416 = vmatpush1.bf16.msra.mxu0 0
    %417 = vmatprep.subr.bf16.mxu0 0
    %418 = vmatpush1.bf16.msra.mxu0 0
    %419 = vmatprep.subr.bf16.mxu0 0
    %420 = vmatpush1.bf16.msra.mxu0 0
    %421 = vmatprep.subr.bf16.mxu0 0
    %422 = vmatpush1.bf16.msra.mxu0 0
    %423 = vmatprep.subr.bf16.mxu0 0
    %424 = vmatpush1.bf16.msra.mxu0 0
    %425 = vmatprep.subr.bf16.mxu0 0
    %426 = vmatpush1.bf16.msra.mxu0 0
    %427 = vmatprep.subr.bf16.mxu0 0
    %428 = vmatpush1.bf16.msra.mxu0 0
    %429 = vmatprep.subr.bf16.mxu0 0
    %430 = vmatpush1.bf16.msra.mxu0 0
    %431 = vmatprep.mubr.bf16.mxu0 0
    %432 = vmatmul.mubr.bf16.gmra.mrb[0].mxu0 %v141
    %v433 = vpop.f32.mrb[0].mxu0
    %v434 = vadd.f32 %v187, %v433
    %v435 = vpop.f32.mrb[0].mxu0
    %v436 = vadd.f32 %v191, %v435
    %v437 = vpop.f32.mrb[0].mxu0
    %v438 = vadd.f32 %v187, %v437
    %v439 = vpop.f32.mrb[0].mxu0
    %v440 = vadd.f32 %v191, %v439
    %441 = vdwg.mxu0
    %v442 = vld [vmem:[#allocation5] sm:$0xff]
    %v443 = vld [vmem:[#allocation5 + $0x8] sm:$0xff]
    %v444 = vld [vmem:[#allocation5 + $0x10] sm:$0xff]
    %v445 = vld [vmem:[#allocation5 + $0x18] sm:$0xff]
    %v446 = vld [vmem:[#allocation5 + $0x20] sm:$0xff]
    %v447 = vld [vmem:[#allocation5 + $0x28] sm:$0xff]
    %v448 = vld [vmem:[#allocation5 + $0x30] sm:$0xff]
    %v449 = vld [vmem:[#allocation5 + $0x38] sm:$0xff]
    %v450 = vld [vmem:[#allocation5 + $0x40] sm:$0xff]
    %v451 = vld [vmem:[#allocation5 + $0x48] sm:$0xff]
    %v452 = vld [vmem:[#allocation5 + $0x50] sm:$0xff]
    %v453 = vld [vmem:[#allocation5 + $0x58] sm:$0xff]
    %v454 = vld [vmem:[#allocation5 + $0x60] sm:$0xff]
    %v455 = vld [vmem:[#allocation5 + $0x68] sm:$0xff]
    %v456 = vld [vmem:[#allocation5 + $0x70] sm:$0xff]
    %v457 = vld [vmem:[#allocation5 + $0x78] sm:$0xff]
    %v458 = vld [vmem:[#allocation5 + $0x80] sm:$0xff]
    %v459 = vld [vmem:[#allocation5 + $0x88] sm:$0xff]
    %v460 = vld [vmem:[#allocation5 + $0x90] sm:$0xff]
    %v461 = vld [vmem:[#allocation5 + $0x98] sm:$0xff]
    %v462 = vld [vmem:[#allocation5 + $0xa0] sm:$0xff]
    %v463 = vld [vmem:[#allocation5 + $0xa8] sm:$0xff]
    %v464 = vld [vmem:[#allocation5 + $0xb0] sm:$0xff]
    %v465 = vld [vmem:[#allocation5 + $0xb8] sm:$0xff]
    %v466 = vld [vmem:[#allocation5 + $0xc0] sm:$0xff]
    %v467 = vld [vmem:[#allocation5 + $0xc8] sm:$0xff]
    %v468 = vld [vmem:[#allocation5 + $0xd0] sm:$0xff]
    %v469 = vld [vmem:[#allocation5 + $0xd8] sm:$0xff]
    %v470 = vld [vmem:[#allocation5 + $0xe0] sm:$0xff]
    %v471 = vld [vmem:[#allocation5 + $0xe8] sm:$0xff]
    %v472 = vld [vmem:[#allocation5 + $0xf0] sm:$0xff]
    %v473 = vld [vmem:[#allocation5 + $0xf8] sm:$0xff]
    %v506 = vunpack.c.l.b16 %v442
    %v507 = vunpack.c.h.b16 %v442
    %v508 = vunpack.c.l.b16 %v443
    %v509 = vunpack.c.h.b16 %v443
    %v510 = vunpack.c.l.b16 %v444
    %v511 = vunpack.c.h.b16 %v444
    %v512 = vunpack.c.l.b16 %v445
    %v513 = vunpack.c.h.b16 %v445
    %v514 = vunpack.c.l.b16 %v446
    %v515 = vunpack.c.h.b16 %v446
    %v516 = vunpack.c.l.b16 %v447
    %v517 = vunpack.c.h.b16 %v447
    %v518 = vunpack.c.l.b16 %v448
    %v519 = vunpack.c.h.b16 %v448
    %v520 = vunpack.c.l.b16 %v449
    %v521 = vunpack.c.h.b16 %v449
    %v522 = vunpack.c.l.b16 %v450
    %v523 = vunpack.c.h.b16 %v450
    %v524 = vunpack.c.l.b16 %v451
    %v525 = vunpack.c.h.b16 %v451
    %v526 = vunpack.c.l.b16 %v452
    %v527 = vunpack.c.h.b16 %v452
    %v528 = vunpack.c.l.b16 %v453
    %v529 = vunpack.c.h.b16 %v453
    %v530 = vunpack.c.l.b16 %v454
    %v531 = vunpack.c.h.b16 %v454
    %v532 = vunpack.c.l.b16 %v455
    %v533 = vunpack.c.h.b16 %v455
    %v534 = vunpack.c.l.b16 %v456
    %v535 = vunpack.c.h.b16 %v456
    %v536 = vunpack.c.l.b16 %v457
    %v537 = vunpack.c.h.b16 %v457
    %v538 = vunpack.c.l.b16 %v458
    %v539 = vunpack.c.h.b16 %v458
    %v540 = vunpack.c.l.b16 %v459
    %v541 = vunpack.c.h.b16 %v459
    %v542 = vunpack.c.l.b16 %v460
    %v543 = vunpack.c.h.b16 %v460
    %v544 = vunpack.c.l.b16 %v461
    %v545 = vunpack.c.h.b16 %v461
    %v546 = vunpack.c.l.b16 %v462
    %v547 = vunpack.c.h.b16 %v462
    %v548 = vunpack.c.l.b16 %v463
    %v549 = vunpack.c.h.b16 %v463
    %v550 = vunpack.c.l.b16 %v464
    %v551 = vunpack.c.h.b16 %v464
    %v552 = vunpack.c.l.b16 %v465
    %v553 = vunpack.c.h.b16 %v465
    %v554 = vunpack.c.l.b16 %v466
    %v555 = vunpack.c.h.b16 %v466
    %v556 = vunpack.c.l.b16 %v467
    %v557 = vunpack.c.h.b16 %v467
    %v558 = vunpack.c.l.b16 %v468
    %v559 = vunpack.c.h.b16 %v468
    %v560 = vunpack.c.l.b16 %v469
    %v561 = vunpack.c.h.b16 %v469
    %v562 = vunpack.c.l.b16 %v470
    %v563 = vunpack.c.h.b16 %v470
    %v564 = vunpack.c.l.b16 %v471
    %v565 = vunpack.c.h.b16 %v471
    %v566 = vunpack.c.l.b16 %v472
    %v567 = vunpack.c.h.b16 %v472
    %v568 = vunpack.c.l.b16 %v473
    %v569 = vunpack.c.h.b16 %v473
    %v570 = vpack.c.b16 %v510, %v506
    %v571 = vpack.c.b16 %v511, %v507
    %v572 = vpack.c.b16 %v512, %v508
    %v573 = vpack.c.b16 %v513, %v509
    %v574 = vpack.c.b16 %v518, %v514
    %v575 = vpack.c.b16 %v519, %v515
    %v576 = vpack.c.b16 %v520, %v516
    %v577 = vpack.c.b16 %v521, %v517
    %v578 = vpack.c.b16 %v526, %v522
    %v579 = vpack.c.b16 %v527, %v523
    %v580 = vpack.c.b16 %v528, %v524
    %v581 = vpack.c.b16 %v529, %v525
    %v582 = vpack.c.b16 %v534, %v530
    %v583 = vpack.c.b16 %v535, %v531
    %v584 = vpack.c.b16 %v536, %v532
    %v585 = vpack.c.b16 %v537, %v533
    %v586 = vpack.c.b16 %v542, %v538
    %v587 = vpack.c.b16 %v543, %v539
    %v588 = vpack.c.b16 %v544, %v540
    %v589 = vpack.c.b16 %v545, %v541
    %v590 = vpack.c.b16 %v550, %v546
    %v591 = vpack.c.b16 %v551, %v547
    %v592 = vpack.c.b16 %v552, %v548
    %v593 = vpack.c.b16 %v553, %v549
    %v594 = vpack.c.b16 %v558, %v554
    %v595 = vpack.c.b16 %v559, %v555
    %v596 = vpack.c.b16 %v560, %v556
    %v597 = vpack.c.b16 %v561, %v557
    %v598 = vpack.c.b16 %v566, %v562
    %v599 = vpack.c.b16 %v567, %v563
    %v600 = vpack.c.b16 %v568, %v564
    %v601 = vpack.c.b16 %v569, %v565
    %634 = vmatprep.subr.bf16.mxu0 %v571
    %635 = vmatpush1.bf16.msra.mxu0 %v570
    %636 = vmatprep.subr.bf16.mxu0 %v575
    %637 = vmatpush1.bf16.msra.mxu0 %v574
    %638 = vmatprep.subr.bf16.mxu0 %v579
    %639 = vmatpush1.bf16.msra.mxu0 %v578
    %640 = vmatprep.subr.bf16.mxu0 %v583
    %641 = vmatpush1.bf16.msra.mxu0 %v582
    %642 = vmatprep.subr.bf16.mxu0 %v587
    %643 = vmatpush1.bf16.msra.mxu0 %v586
    %644 = vmatprep.subr.bf16.mxu0 %v591
    %645 = vmatpush1.bf16.msra.mxu0 %v590
    %646 = vmatprep.subr.bf16.mxu0 %v595
    %647 = vmatpush1.bf16.msra.mxu0 %v594
    %648 = vmatprep.subr.bf16.mxu0 %v599
    %649 = vmatpush1.bf16.msra.mxu0 %v598
    %650 = vmatprep.subr.bf16.mxu0 0
    %651 = vmatpush1.bf16.msra.mxu0 0
    %652 = vmatprep.subr.bf16.mxu0 0
    %653 = vmatpush1.bf16.msra.mxu0 0
    %654 = vmatprep.subr.bf16.mxu0 0
    %655 = vmatpush1.bf16.msra.mxu0 0
    %656 = vmatprep.subr.bf16.mxu0 0
    %657 = vmatpush1.bf16.msra.mxu0 0
    %658 = vmatprep.subr.bf16.mxu0 0
    %659 = vmatpush1.bf16.msra.mxu0 0
    %660 = vmatprep.subr.bf16.mxu0 0
    %661 = vmatpush1.bf16.msra.mxu0 0
    %662 = vmatprep.subr.bf16.mxu0 0
    %663 = vmatpush1.bf16.msra.mxu0 0
    %664 = vmatprep.subr.bf16.mxu0 0
    %665 = vmatpush1.bf16.msra.mxu0 0
    %666 = vmatprep.mubr.bf16.mxu0 0
    %667 = vmatmul.mubr.bf16.gmra.mrb[0].mxu0 0
    %v668 = vpop.f32.mrb[0].mxu0
    %v669 = vadd.f32 0.0, %v668
    %v670 = vpop.f32.mrb[0].mxu0
    %v671 = vadd.f32 0.0, %v670
    %v672 = vpop.f32.mrb[0].mxu0
    %v673 = vpop.f32.mrb[0].mxu0
    %674 = vdwg.mxu0
    %675 = vmatprep.subr.bf16.mxu0 %v573
    %676 = vmatpush1.bf16.msra.mxu0 %v572
    %677 = vmatprep.subr.bf16.mxu0 %v577
    %678 = vmatpush1.bf16.msra.mxu0 %v576
    %679 = vmatprep.subr.bf16.mxu0 %v581
    %680 = vmatpush1.bf16.msra.mxu0 %v580
    %681 = vmatprep.subr.bf16.mxu0 %v585
    %682 = vmatpush1.bf16.msra.mxu0 %v584
    %683 = vmatprep.subr.bf16.mxu0 %v589
    %684 = vmatpush1.bf16.msra.mxu0 %v588
    %685 = vmatprep.subr.bf16.mxu0 %v593
    %686 = vmatpush1.bf16.msra.mxu0 %v592
    %687 = vmatprep.subr.bf16.mxu0 %v597
    %688 = vmatpush1.bf16.msra.mxu0 %v596
    %689 = vmatprep.subr.bf16.mxu0 %v601
    %690 = vmatpush1.bf16.msra.mxu0 %v600
    %691 = vmatprep.subr.bf16.mxu0 0
    %692 = vmatpush1.bf16.msra.mxu0 0
    %693 = vmatprep.subr.bf16.mxu0 0
    %694 = vmatpush1.bf16.msra.mxu0 0
    %695 = vmatprep.subr.bf16.mxu0 0
    %696 = vmatpush1.bf16.msra.mxu0 0
    %697 = vmatprep.subr.bf16.mxu0 0
    %698 = vmatpush1.bf16.msra.mxu0 0
    %699 = vmatprep.subr.bf16.mxu0 0
    %700 = vmatpush1.bf16.msra.mxu0 0
    %701 = vmatprep.subr.bf16.mxu0 0
    %702 = vmatpush1.bf16.msra.mxu0 0
    %703 = vmatprep.subr.bf16.mxu0 0
    %704 = vmatpush1.bf16.msra.mxu0 0
    %705 = vmatprep.subr.bf16.mxu0 0
    %706 = vmatpush1.bf16.msra.mxu0 0
    %707 = vmatprep.mubr.bf16.mxu0 0
    %708 = vmatmul.mubr.bf16.gmra.mrb[0].mxu0 0
    %v709 = vpop.f32.mrb[0].mxu0
    %v710 = vadd.f32 0.0, %v709
    %v711 = vpop.f32.mrb[0].mxu0
    %v712 = vadd.f32 0.0, %v711
    %v713 = vpop.f32.mrb[0].mxu0
    %v714 = vpop.f32.mrb[0].mxu0
    %715 = vdwg.mxu0
    %v716 = vadd.f32 %v391, %v669
    %v717 = vadd.f32 %v393, %v671
    %v718 = vadd.f32 %v434, %v710
    %v719 = vadd.f32 %v436, %v712
    %v720 = vxor.u32 %v716, 2147483648
    %v721 = vxor.u32 %v717, 2147483648
    %v722 = vxor.u32 %v718, 2147483648
    %v723 = vmul.f32 %v720, 1.442695
    %v724 = vpow.pop %v723
    %v725 = vmul.f32 %v721, 1.442695
    %v726 = vpow.pop %v725
    %v727 = vmul.f32 %v722, 1.442695
    %v728 = vpow.pop %v727
    %v729 = vadd.f32 %v724, 1.0
    %v730 = vadd.f32 %v726, 1.0
    %v731 = vadd.f32 %v728, 1.0
    %v732 = vrcp.pop %v729
    %v733 = vmul.f32 1.0, %v732
    %v734 = vrcp.pop %v730
    %v735 = vmul.f32 1.0, %v734
    %v736 = vrcp.pop %v731
    %v737 = vmul.f32 1.0, %v736
    %v738 = vtanh.pop %v719
    %v739 = vmul.f32 %v735, 0.0
    %v740 = vmul.f32 %v733, %v738
    %v741 = vadd.f32 %v739, %v740
    %v742 = vtanh.pop %v741
    %v743 = vmul.f32 %v737, %v742
    %v744 = vpack.c.bf16 %v743, %v743
    %s745 = scalar_lea.vmem [#allocation2], 256
    %v746 = vld [vmem:[%s745] sm:$0xff]
    %v747 = vld [vmem:[%s745 + $0x8] sm:$0xff]
    %v748 = vld [vmem:[%s745 + $0x10] sm:$0xff]
    %v749 = vld [vmem:[%s745 + $0x18] sm:$0xff]
    %v750 = vld [vmem:[%s745 + $0x20] sm:$0xff]
    %v751 = vld [vmem:[%s745 + $0x28] sm:$0xff]
    %v752 = vld [vmem:[%s745 + $0x30] sm:$0xff]
    %v753 = vld [vmem:[%s745 + $0x38] sm:$0xff]
    %v754 = vld [vmem:[%s745 + $0x40] sm:$0xff]
    %v755 = vld [vmem:[%s745 + $0x48] sm:$0xff]
    %v756 = vld [vmem:[%s745 + $0x50] sm:$0xff]
    %v757 = vld [vmem:[%s745 + $0x58] sm:$0xff]
    %v758 = vld [vmem:[%s745 + $0x60] sm:$0xff]
    %v759 = vld [vmem:[%s745 + $0x68] sm:$0xff]
    %v760 = vld [vmem:[%s745 + $0x70] sm:$0xff]
    %v761 = vld [vmem:[%s745 + $0x78] sm:$0xff]
    %v762 = vld [vmem:[%s745 + $0x80] sm:$0xff]
    %v763 = vld [vmem:[%s745 + $0x88] sm:$0xff]
    %v764 = vld [vmem:[%s745 + $0x90] sm:$0xff]
    %v765 = vld [vmem:[%s745 + $0x98] sm:$0xff]
    %v766 = vld [vmem:[%s745 + $0xa0] sm:$0xff]
    %v767 = vld [vmem:[%s745 + $0xa8] sm:$0xff]
    %v768 = vld [vmem:[%s745 + $0xb0] sm:$0xff]
    %v769 = vld [vmem:[%s745 + $0xb8] sm:$0xff]
    %v770 = vld [vmem:[%s745 + $0xc0] sm:$0xff]
    %v771 = vld [vmem:[%s745 + $0xc8] sm:$0xff]
    %v772 = vld [vmem:[%s745 + $0xd0] sm:$0xff]
    %v773 = vld [vmem:[%s745 + $0xd8] sm:$0xff]
    %v774 = vld [vmem:[%s745 + $0xe0] sm:$0xff]
    %v775 = vld [vmem:[%s745 + $0xe8] sm:$0xff]
    %v776 = vld [vmem:[%s745 + $0xf0] sm:$0xff]
    %v777 = vld [vmem:[%s745 + $0xf8] sm:$0xff]
    %s778 = scalar_lea.vmem %s5, 4
    %v779 = vld [vmem:[%s778] sm:$0xf]
    %v781 = vlaneseq
    %v782 = vshrl.u32 %v781, 7
    %v783 = vsub.s32 0, %v782
    %v784 = vrot.slane %v779, %v783
    %v785 = vlaneseq
    %v786 = vshrl.u32 %v785, 7
    %v787 = vsub.s32 1, %v786
    %v788 = vrot.slane %v779, %v787
    %v789 = vlaneseq
    %v790 = vshrl.u32 %v789, 7
    %v791 = vsub.s32 2, %v790
    %v792 = vrot.slane %v779, %v791
    %v793 = vlaneseq
    %v794 = vshrl.u32 %v793, 7
    %v795 = vsub.s32 3, %v794
    %v796 = vrot.slane %v779, %v795
    %v833 = vunpack.c.l.b16 %v746
    %v834 = vunpack.c.h.b16 %v746
    %v835 = vunpack.c.l.b16 %v747
    %v836 = vunpack.c.h.b16 %v747
    %v837 = vunpack.c.l.b16 %v748
    %v838 = vunpack.c.h.b16 %v748
    %v839 = vunpack.c.l.b16 %v749
    %v840 = vunpack.c.h.b16 %v749
    %v841 = vunpack.c.l.b16 %v750
    %v842 = vunpack.c.h.b16 %v750
    %v843 = vunpack.c.l.b16 %v751
    %v844 = vunpack.c.h.b16 %v751
    %v845 = vunpack.c.l.b16 %v752
    %v846 = vunpack.c.h.b16 %v752
    %v847 = vunpack.c.l.b16 %v753
    %v848 = vunpack.c.h.b16 %v753
    %v849 = vunpack.c.l.b16 %v754
    %v850 = vunpack.c.h.b16 %v754
    %v851 = vunpack.c.l.b16 %v755
    %v852 = vunpack.c.h.b16 %v755
    %v853 = vunpack.c.l.b16 %v756
    %v854 = vunpack.c.h.b16 %v756
    %v855 = vunpack.c.l.b16 %v757
    %v856 = vunpack.c.h.b16 %v757
    %v857 = vunpack.c.l.b16 %v758
    %v858 = vunpack.c.h.b16 %v758
    %v859 = vunpack.c.l.b16 %v759
    %v860 = vunpack.c.h.b16 %v759
    %v861 = vunpack.c.l.b16 %v760
    %v862 = vunpack.c.h.b16 %v760
    %v863 = vunpack.c.l.b16 %v761
    %v864 = vunpack.c.h.b16 %v761
    %v865 = vunpack.c.l.b16 %v762
    %v866 = vunpack.c.h.b16 %v762
    %v867 = vunpack.c.l.b16 %v763
    %v868 = vunpack.c.h.b16 %v763
    %v869 = vunpack.c.l.b16 %v764
    %v870 = vunpack.c.h.b16 %v764
    %v871 = vunpack.c.l.b16 %v765
    %v872 = vunpack.c.h.b16 %v765
    %v873 = vunpack.c.l.b16 %v766
    %v874 = vunpack.c.h.b16 %v766
    %v875 = vunpack.c.l.b16 %v767
    %v876 = vunpack.c.h.b16 %v767
    %v877 = vunpack.c.l.b16 %v768
    %v878 = vunpack.c.h.b16 %v768
    %v879 = vunpack.c.l.b16 %v769
    %v880 = vunpack.c.h.b16 %v769
    %v881 = vunpack.c.l.b16 %v770
    %v882 = vunpack.c.h.b16 %v770
    %v883 = vunpack.c.l.b16 %v771
    %v884 = vunpack.c.h.b16 %v771
    %v885 = vunpack.c.l.b16 %v772
    %v886 = vunpack.c.h.b16 %v772
    %v887 = vunpack.c.l.b16 %v773
    %v888 = vunpack.c.h.b16 %v773
    %v889 = vunpack.c.l.b16 %v774
    %v890 = vunpack.c.h.b16 %v774
    %v891 = vunpack.c.l.b16 %v775
    %v892 = vunpack.c.h.b16 %v775
    %v893 = vunpack.c.l.b16 %v776
    %v894 = vunpack.c.h.b16 %v776
    %v895 = vunpack.c.l.b16 %v777
    %v896 = vunpack.c.h.b16 %v777
    %v897 = vpack.c.b16 %v837, %v833
    %v898 = vpack.c.b16 %v838, %v834
    %v899 = vpack.c.b16 %v839, %v835
    %v900 = vpack.c.b16 %v840, %v836
    %v901 = vpack.c.b16 %v845, %v841
    %v902 = vpack.c.b16 %v846, %v842
    %v903 = vpack.c.b16 %v847, %v843
    %v904 = vpack.c.b16 %v848, %v844
    %v905 = vpack.c.b16 %v853, %v849
    %v906 = vpack.c.b16 %v854, %v850
    %v907 = vpack.c.b16 %v855, %v851
    %v908 = vpack.c.b16 %v856, %v852
    %v909 = vpack.c.b16 %v861, %v857
    %v910 = vpack.c.b16 %v862, %v858
    %v911 = vpack.c.b16 %v863, %v859
    %v912 = vpack.c.b16 %v864, %v860
    %v913 = vpack.c.b16 %v869, %v865
    %v914 = vpack.c.b16 %v870, %v866
    %v915 = vpack.c.b16 %v871, %v867
    %v916 = vpack.c.b16 %v872, %v868
    %v917 = vpack.c.b16 %v877, %v873
    %v918 = vpack.c.b16 %v878, %v874
    %v919 = vpack.c.b16 %v879, %v875
    %v920 = vpack.c.b16 %v880, %v876
    %v921 = vpack.c.b16 %v885, %v881
    %v922 = vpack.c.b16 %v886, %v882
    %v923 = vpack.c.b16 %v887, %v883
    %v924 = vpack.c.b16 %v888, %v884
    %v925 = vpack.c.b16 %v893, %v889
    %v926 = vpack.c.b16 %v894, %v890
    %v927 = vpack.c.b16 %v895, %v891
    %v928 = vpack.c.b16 %v896, %v892
    %961 = vmatprep.subr.bf16.mxu0 %v898
    %962 = vmatpush1.bf16.msra.mxu0 %v897
    %963 = vmatprep.subr.bf16.mxu0 %v902
    %964 = vmatpush1.bf16.msra.mxu0 %v901
    %965 = vmatprep.subr.bf16.mxu0 %v906
    %966 = vmatpush1.bf16.msra.mxu0 %v905
    %967 = vmatprep.subr.bf16.mxu0 %v910
    %968 = vmatpush1.bf16.msra.mxu0 %v909
    %969 = vmatprep.subr.bf16.mxu0 %v914
    %970 = vmatpush1.bf16.msra.mxu0 %v913
    %971 = vmatprep.subr.bf16.mxu0 %v918
    %972 = vmatpush1.bf16.msra.mxu0 %v917
    %973 = vmatprep.subr.bf16.mxu0 %v922
    %974 = vmatpush1.bf16.msra.mxu0 %v921
    %975 = vmatprep.subr.bf16.mxu0 %v926
    %976 = vmatpush1.bf16.msra.mxu0 %v925
    %977 = vmatprep.subr.bf16.mxu0 0
    %978 = vmatpush1.bf16.msra.mxu0 0
    %979 = vmatprep.subr.bf16.mxu0 0
    %980 = vmatpush1.bf16.msra.mxu0 0
    %981 = vmatprep.subr.bf16.mxu0 0
    %982 = vmatpush1.bf16.msra.mxu0 0
    %983 = vmatprep.subr.bf16.mxu0 0
    %984 = vmatpush1.bf16.msra.mxu0 0
    %985 = vmatprep.subr.bf16.mxu0 0
    %986 = vmatpush1.bf16.msra.mxu0 0
    %987 = vmatprep.subr.bf16.mxu0 0
    %988 = vmatpush1.bf16.msra.mxu0 0
    %989 = vmatprep.subr.bf16.mxu0 0
    %990 = vmatpush1.bf16.msra.mxu0 0
    %991 = vmatprep.subr.bf16.mxu0 0
    %992 = vmatpush1.bf16.msra.mxu0 0
    %993 = vmatprep.mubr.bf16.mxu0 0
    %994 = vmatmul.mubr.bf16.gmra.mrb[0].mxu0 %v744
    %v995 = vpop.f32.mrb[0].mxu0
    %v996 = vadd.f32 %v784, %v995
    %v997 = vpop.f32.mrb[0].mxu0
    %v998 = vadd.f32 %v788, %v997
    %v999 = vpop.f32.mrb[0].mxu0
    %v1000 = vpop.f32.mrb[0].mxu0
    %1001 = vdwg.mxu0
    %1002 = vmatprep.subr.bf16.mxu0 %v900
    %1003 = vmatpush1.bf16.msra.mxu0 %v899
    %1004 = vmatprep.subr.bf16.mxu0 %v904
    %1005 = vmatpush1.bf16.msra.mxu0 %v903
    %1006 = vmatprep.subr.bf16.mxu0 %v908
    %1007 = vmatpush1.bf16.msra.mxu0 %v907
    %1008 = vmatprep.subr.bf16.mxu0 %v912
    %1009 = vmatpush1.bf16.msra.mxu0 %v911
    %1010 = vmatprep.subr.bf16.mxu0 %v916
    %1011 = vmatpush1.bf16.msra.mxu0 %v915
    %1012 = vmatprep.subr.bf16.mxu0 %v920
    %1013 = vmatpush1.bf16.msra.mxu0 %v919
    %1014 = vmatprep.subr.bf16.mxu0 %v924
    %1015 = vmatpush1.bf16.msra.mxu0 %v923
    %1016 = vmatprep.subr.bf16.mxu0 %v928
    %1017 = vmatpush1.bf16.msra.mxu0 %v927
    %1018 = vmatprep.subr.bf16.mxu0 0
    %1019 = vmatpush1.bf16.msra.mxu0 0
    %1020 = vmatprep.subr.bf16.mxu0 0
    %1021 = vmatpush1.bf16.msra.mxu0 0
    %1022 = vmatprep.subr.bf16.mxu0 0
    %1023 = vmatpush1.bf16.msra.mxu0 0
    %1024 = vmatprep.subr.bf16.mxu0 0
    %1025 = vmatpush1.bf16.msra.mxu0 0
    %1026 = vmatprep.subr.bf16.mxu0 0
    %1027 = vmatpush1.bf16.msra.mxu0 0
    %1028 = vmatprep.subr.bf16.mxu0 0
    %1029 = vmatpush1.bf16.msra.mxu0 0
    %1030 = vmatprep.subr.bf16.mxu0 0
    %1031 = vmatpush1.bf16.msra.mxu0 0
    %1032 = vmatprep.subr.bf16.mxu0 0
    %1033 = vmatpush1.bf16.msra.mxu0 0
    %1034 = vmatprep.mubr.bf16.mxu0 0
    %1035 = vmatmul.mubr.bf16.gmra.mrb[0].mxu0 %v744
    %v1036 = vpop.f32.mrb[0].mxu0
    %v1037 = vadd.f32 %v792, %v1036
    %v1038 = vpop.f32.mrb[0].mxu0
    %v1039 = vadd.f32 %v796, %v1038
    %v1040 = vpop.f32.mrb[0].mxu0
    %v1041 = vpop.f32.mrb[0].mxu0
    %1042 = vdwg.mxu0
    %s1043 = scalar_lea.vmem [#allocation5], 256
    %v1044 = vld [vmem:[%s1043] sm:$0xff]
    %v1045 = vld [vmem:[%s1043 + $0x8] sm:$0xff]
    %v1046 = vld [vmem:[%s1043 + $0x10] sm:$0xff]
    %v1047 = vld [vmem:[%s1043 + $0x18] sm:$0xff]
    %v1048 = vld [vmem:[%s1043 + $0x20] sm:$0xff]
    %v1049 = vld [vmem:[%s1043 + $0x28] sm:$0xff]
    %v1050 = vld [vmem:[%s1043 + $0x30] sm:$0xff]
    %v1051 = vld [vmem:[%s1043 + $0x38] sm:$0xff]
    %v1052 = vld [vmem:[%s1043 + $0x40] sm:$0xff]
    %v1053 = vld [vmem:[%s1043 + $0x48] sm:$0xff]
    %v1054 = vld [vmem:[%s1043 + $0x50] sm:$0xff]
    %v1055 = vld [vmem:[%s1043 + $0x58] sm:$0xff]
    %v1056 = vld [vmem:[%s1043 + $0x60] sm:$0xff]
    %v1057 = vld [vmem:[%s1043 + $0x68] sm:$0xff]
    %v1058 = vld [vmem:[%s1043 + $0x70] sm:$0xff]
    %v1059 = vld [vmem:[%s1043 + $0x78] sm:$0xff]
    %v1060 = vld [vmem:[%s1043 + $0x80] sm:$0xff]
    %v1061 = vld [vmem:[%s1043 + $0x88] sm:$0xff]
    %v1062 = vld [vmem:[%s1043 + $0x90] sm:$0xff]
    %v1063 = vld [vmem:[%s1043 + $0x98] sm:$0xff]
    %v1064 = vld [vmem:[%s1043 + $0xa0] sm:$0xff]
    %v1065 = vld [vmem:[%s1043 + $0xa8] sm:$0xff]
    %v1066 = vld [vmem:[%s1043 + $0xb0] sm:$0xff]
    %v1067 = vld [vmem:[%s1043 + $0xb8] sm:$0xff]
    %v1068 = vld [vmem:[%s1043 + $0xc0] sm:$0xff]
    %v1069 = vld [vmem:[%s1043 + $0xc8] sm:$0xff]
    %v1070 = vld [vmem:[%s1043 + $0xd0] sm:$0xff]
    %v1071 = vld [vmem:[%s1043 + $0xd8] sm:$0xff]
    %v1072 = vld [vmem:[%s1043 + $0xe0] sm:$0xff]
    %v1073 = vld [vmem:[%s1043 + $0xe8] sm:$0xff]
    %v1074 = vld [vmem:[%s1043 + $0xf0] sm:$0xff]
    %v1075 = vld [vmem:[%s1043 + $0xf8] sm:$0xff]
    %v1108 = vunpack.c.l.b16 %v1044
    %v1109 = vunpack.c.h.b16 %v1044
    %v1110 = vunpack.c.l.b16 %v1045
    %v1111 = vunpack.c.h.b16 %v1045
    %v1112 = vunpack.c.l.b16 %v1046
    %v1113 = vunpack.c.h.b16 %v1046
    %v1114 = vunpack.c.l.b16 %v1047
    %v1115 = vunpack.c.h.b16 %v1047
    %v1116 = vunpack.c.l.b16 %v1048
    %v1117 = vunpack.c.h.b16 %v1048
    %v1118 = vunpack.c.l.b16 %v1049
    %v1119 = vunpack.c.h.b16 %v1049
    %v1120 = vunpack.c.l.b16 %v1050
    %v1121 = vunpack.c.h.b16 %v1050
    %v1122 = vunpack.c.l.b16 %v1051
    %v1123 = vunpack.c.h.b16 %v1051
    %v1124 = vunpack.c.l.b16 %v1052
    %v1125 = vunpack.c.h.b16 %v1052
    %v1126 = vunpack.c.l.b16 %v1053
    %v1127 = vunpack.c.h.b16 %v1053
    %v1128 = vunpack.c.l.b16 %v1054
    %v1129 = vunpack.c.h.b16 %v1054
    %v1130 = vunpack.c.l.b16 %v1055
    %v1131 = vunpack.c.h.b16 %v1055
    %v1132 = vunpack.c.l.b16 %v1056
    %v1133 = vunpack.c.h.b16 %v1056
    %v1134 = vunpack.c.l.b16 %v1057
    %v1135 = vunpack.c.h.b16 %v1057
    %v1136 = vunpack.c.l.b16 %v1058
    %v1137 = vunpack.c.h.b16 %v1058
    %v1138 = vunpack.c.l.b16 %v1059
    %v1139 = vunpack.c.h.b16 %v1059
    %v1140 = vunpack.c.l.b16 %v1060
    %v1141 = vunpack.c.h.b16 %v1060
    %v1142 = vunpack.c.l.b16 %v1061
    %v1143 = vunpack.c.h.b16 %v1061
    %v1144 = vunpack.c.l.b16 %v1062
    %v1145 = vunpack.c.h.b16 %v1062
    %v1146 = vunpack.c.l.b16 %v1063
    %v1147 = vunpack.c.h.b16 %v1063
    %v1148 = vunpack.c.l.b16 %v1064
    %v1149 = vunpack.c.h.b16 %v1064
    %v1150 = vunpack.c.l.b16 %v1065
    %v1151 = vunpack.c.h.b16 %v1065
    %v1152 = vunpack.c.l.b16 %v1066
    %v1153 = vunpack.c.h.b16 %v1066
    %v1154 = vunpack.c.l.b16 %v1067
    %v1155 = vunpack.c.h.b16 %v1067
    %v1156 = vunpack.c.l.b16 %v1068
    %v1157 = vunpack.c.h.b16 %v1068
    %v1158 = vunpack.c.l.b16 %v1069
    %v1159 = vunpack.c.h.b16 %v1069
    %v1160 = vunpack.c.l.b16 %v1070
    %v1161 = vunpack.c.h.b16 %v1070
    %v1162 = vunpack.c.l.b16 %v1071
    %v1163 = vunpack.c.h.b16 %v1071
    %v1164 = vunpack.c.l.b16 %v1072
    %v1165 = vunpack.c.h.b16 %v1072
    %v1166 = vunpack.c.l.b16 %v1073
    %v1167 = vunpack.c.h.b16 %v1073
    %v1168 = vunpack.c.l.b16 %v1074
    %v1169 = vunpack.c.h.b16 %v1074
    %v1170 = vunpack.c.l.b16 %v1075
    %v1171 = vunpack.c.h.b16 %v1075
    %v1172 = vpack.c.b16 %v1112, %v1108
    %v1173 = vpack.c.b16 %v1113, %v1109
    %v1174 = vpack.c.b16 %v1114, %v1110
    %v1175 = vpack.c.b16 %v1115, %v1111
    %v1176 = vpack.c.b16 %v1120, %v1116
    %v1177 = vpack.c.b16 %v1121, %v1117
    %v1178 = vpack.c.b16 %v1122, %v1118
    %v1179 = vpack.c.b16 %v1123, %v1119
    %v1180 = vpack.c.b16 %v1128, %v1124
    %v1181 = vpack.c.b16 %v1129, %v1125
    %v1182 = vpack.c.b16 %v1130, %v1126
    %v1183 = vpack.c.b16 %v1131, %v1127
    %v1184 = vpack.c.b16 %v1136, %v1132
    %v1185 = vpack.c.b16 %v1137, %v1133
    %v1186 = vpack.c.b16 %v1138, %v1134
    %v1187 = vpack.c.b16 %v1139, %v1135
    %v1188 = vpack.c.b16 %v1144, %v1140
    %v1189 = vpack.c.b16 %v1145, %v1141
    %v1190 = vpack.c.b16 %v1146, %v1142
    %v1191 = vpack.c.b16 %v1147, %v1143
    %v1192 = vpack.c.b16 %v1152, %v1148
    %v1193 = vpack.c.b16 %v1153, %v1149
    %v1194 = vpack.c.b16 %v1154, %v1150
    %v1195 = vpack.c.b16 %v1155, %v1151
    %v1196 = vpack.c.b16 %v1160, %v1156
    %v1197 = vpack.c.b16 %v1161, %v1157
    %v1198 = vpack.c.b16 %v1162, %v1158
    %v1199 = vpack.c.b16 %v1163, %v1159
    %v1200 = vpack.c.b16 %v1168, %v1164
    %v1201 = vpack.c.b16 %v1169, %v1165
    %v1202 = vpack.c.b16 %v1170, %v1166
    %v1203 = vpack.c.b16 %v1171, %v1167
    %1236 = vmatprep.subr.bf16.mxu0 %v1173
    %1237 = vmatpush1.bf16.msra.mxu0 %v1172
    %1238 = vmatprep.subr.bf16.mxu0 %v1177
    %1239 = vmatpush1.bf16.msra.mxu0 %v1176
    %1240 = vmatprep.subr.bf16.mxu0 %v1181
    %1241 = vmatpush1.bf16.msra.mxu0 %v1180
    %1242 = vmatprep.subr.bf16.mxu0 %v1185
    %1243 = vmatpush1.bf16.msra.mxu0 %v1184
    %1244 = vmatprep.subr.bf16.mxu0 %v1189
    %1245 = vmatpush1.bf16.msra.mxu0 %v1188
    %1246 = vmatprep.subr.bf16.mxu0 %v1193
    %1247 = vmatpush1.bf16.msra.mxu0 %v1192
    %1248 = vmatprep.subr.bf16.mxu0 %v1197
    %1249 = vmatpush1.bf16.msra.mxu0 %v1196
    %1250 = vmatprep.subr.bf16.mxu0 %v1201
    %1251 = vmatpush1.bf16.msra.mxu0 %v1200
    %1252 = vmatprep.subr.bf16.mxu0 0
    %1253 = vmatpush1.bf16.msra.mxu0 0
    %1254 = vmatprep.subr.bf16.mxu0 0
    %1255 = vmatpush1.bf16.msra.mxu0 0
    %1256 = vmatprep.subr.bf16.mxu0 0
    %1257 = vmatpush1.bf16.msra.mxu0 0
    %1258 = vmatprep.subr.bf16.mxu0 0
    %1259 = vmatpush1.bf16.msra.mxu0 0
    %1260 = vmatprep.subr.bf16.mxu0 0
    %1261 = vmatpush1.bf16.msra.mxu0 0
    %1262 = vmatprep.subr.bf16.mxu0 0
    %1263 = vmatpush1.bf16.msra.mxu0 0
    %1264 = vmatprep.subr.bf16.mxu0 0
    %1265 = vmatpush1.bf16.msra.mxu0 0
    %1266 = vmatprep.subr.bf16.mxu0 0
    %1267 = vmatpush1.bf16.msra.mxu0 0
    %1268 = vmatprep.mubr.bf16.mxu0 0
    %1269 = vmatmul.mubr.bf16.gmra.mrb[0].mxu0 0
    %v1270 = vpop.f32.mrb[0].mxu0
    %v1271 = vadd.f32 0.0, %v1270
    %v1272 = vpop.f32.mrb[0].mxu0
    %v1273 = vadd.f32 0.0, %v1272
    %v1274 = vpop.f32.mrb[0].mxu0
    %v1275 = vpop.f32.mrb[0].mxu0
    %1276 = vdwg.mxu0
    %1277 = vmatprep.subr.bf16.mxu0 %v1175
    %1278 = vmatpush1.bf16.msra.mxu0 %v1174
    %1279 = vmatprep.subr.bf16.mxu0 %v1179
    %1280 = vmatpush1.bf16.msra.mxu0 %v1178
    %1281 = vmatprep.subr.bf16.mxu0 %v1183
    %1282 = vmatpush1.bf16.msra.mxu0 %v1182
    %1283 = vmatprep.subr.bf16.mxu0 %v1187
    %1284 = vmatpush1.bf16.msra.mxu0 %v1186
    %1285 = vmatprep.subr.bf16.mxu0 %v1191
    %1286 = vmatpush1.bf16.msra.mxu0 %v1190
    %1287 = vmatprep.subr.bf16.mxu0 %v1195
    %1288 = vmatpush1.bf16.msra.mxu0 %v1194
    %1289 = vmatprep.subr.bf16.mxu0 %v1199
    %1290 = vmatpush1.bf16.msra.mxu0 %v1198
    %1291 = vmatprep.subr.bf16.mxu0 %v1203
    %1292 = vmatpush1.bf16.msra.mxu0 %v1202
    %1293 = vmatprep.subr.bf16.mxu0 0
    %1294 = vmatpush1.bf16.msra.mxu0 0
    %1295 = vmatprep.subr.bf16.mxu0 0
    %1296 = vmatpush1.bf16.msra.mxu0 0
    %1297 = vmatprep.subr.bf16.mxu0 0
    %1298 = vmatpush1.bf16.msra.mxu0 0
    %1299 = vmatprep.subr.bf16.mxu0 0
    %1300 = vmatpush1.bf16.msra.mxu0 0
    %1301 = vmatprep.subr.bf16.mxu0 0
    %1302 = vmatpush1.bf16.msra.mxu0 0
    %1303 = vmatprep.subr.bf16.mxu0 0
    %1304 = vmatpush1.bf16.msra.mxu0 0
    %1305 = vmatprep.subr.bf16.mxu0 0
    %1306 = vmatpush1.bf16.msra.mxu0 0
    %1307 = vmatprep.subr.bf16.mxu0 0
    %1308 = vmatpush1.bf16.msra.mxu0 0
    %1309 = vmatprep.mubr.bf16.mxu0 0
    %1310 = vmatmul.mubr.bf16.gmra.mrb[0].mxu0 0
    %v1311 = vpop.f32.mrb[0].mxu0
    %v1312 = vadd.f32 0.0, %v1311
    %v1313 = vpop.f32.mrb[0].mxu0
    %v1314 = vadd.f32 0.0, %v1313
    %v1315 = vpop.f32.mrb[0].mxu0
    %v1316 = vpop.f32.mrb[0].mxu0
    %1317 = vdwg.mxu0
    %v1318 = vadd.f32 %v996, %v1271
    %v1319 = vadd.f32 %v998, %v1273
    %v1320 = vadd.f32 %v1037, %v1312
    %v1321 = vadd.f32 %v1039, %v1314
    %v1322 = vxor.u32 %v1318, 2147483648
    %v1323 = vxor.u32 %v1319, 2147483648
    %v1324 = vxor.u32 %v1320, 2147483648
    %v1325 = vmul.f32 %v1322, 1.442695
    %v1326 = vpow.pop %v1325
    %v1327 = vmul.f32 %v1323, 1.442695
    %v1328 = vpow.pop %v1327
    %v1329 = vmul.f32 %v1324, 1.442695
    %v1330 = vpow.pop %v1329
    %v1331 = vadd.f32 %v1326, 1.0
    %v1332 = vadd.f32 %v1328, 1.0
    %v1333 = vadd.f32 %v1330, 1.0
    %v1334 = vrcp.pop %v1331
    %v1335 = vmul.f32 1.0, %v1334
    %v1336 = vrcp.pop %v1332
    %v1337 = vmul.f32 1.0, %v1336
    %v1338 = vrcp.pop %v1333
    %v1339 = vmul.f32 1.0, %v1338
    %v1340 = vtanh.pop %v1321
    %v1341 = vmul.f32 %v1337, 0.0
    %v1342 = vmul.f32 %v1335, %v1340
    %v1343 = vadd.f32 %v1341, %v1342
    %v1344 = vtanh.pop %v1343
    %v1345 = vmul.f32 %v1339, %v1344
    %1346 = vmatprep.subr.bf16.mxu0 %v571
    %1347 = vmatpush1.bf16.msra.mxu0 %v570
    %1348 = vmatprep.subr.bf16.mxu0 %v575
    %1349 = vmatpush1.bf16.msra.mxu0 %v574
    %1350 = vmatprep.subr.bf16.mxu0 %v579
    %1351 = vmatpush1.bf16.msra.mxu0 %v578
    %1352 = vmatprep.subr.bf16.mxu0 %v583
    %1353 = vmatpush1.bf16.msra.mxu0 %v582
    %1354 = vmatprep.subr.bf16.mxu0 %v587
    %1355 = vmatpush1.bf16.msra.mxu0 %v586
    %1356 = vmatprep.subr.bf16.mxu0 %v591
    %1357 = vmatpush1.bf16.msra.mxu0 %v590
    %1358 = vmatprep.subr.bf16.mxu0 %v595
    %1359 = vmatpush1.bf16.msra.mxu0 %v594
    %1360 = vmatprep.subr.bf16.mxu0 %v599
    %1361 = vmatpush1.bf16.msra.mxu0 %v598
    %1362 = vmatprep.subr.bf16.mxu0 0
    %1363 = vmatpush1.bf16.msra.mxu0 0
    %1364 = vmatprep.subr.bf16.mxu0 0
    %1365 = vmatpush1.bf16.msra.mxu0 0
    %1366 = vmatprep.subr.bf16.mxu0 0
    %1367 = vmatpush1.bf16.msra.mxu0 0
    %1368 = vmatprep.subr.bf16.mxu0 0
    %1369 = vmatpush1.bf16.msra.mxu0 0
    %1370 = vmatprep.subr.bf16.mxu0 0
    %1371 = vmatpush1.bf16.msra.mxu0 0
    %1372 = vmatprep.subr.bf16.mxu0 0
    %1373 = vmatpush1.bf16.msra.mxu0 0
    %1374 = vmatprep.subr.bf16.mxu0 0
    %1375 = vmatpush1.bf16.msra.mxu0 0
    %1376 = vmatprep.subr.bf16.mxu0 0
    %1377 = vmatpush1.bf16.msra.mxu0 0
    %1378 = vmatprep.mubr.bf16.mxu0 0
    %1379 = vmatmul.mubr.bf16.gmra.mrb[0].mxu0 %v744
    %v1380 = vpop.f32.mrb[0].mxu0
    %v1381 = vadd.f32 0.0, %v1380
    %v1382 = vpop.f32.mrb[0].mxu0
    %v1383 = vadd.f32 0.0, %v1382
    %v1384 = vpop.f32.mrb[0].mxu0
    %v1385 = vpop.f32.mrb[0].mxu0
    %1386 = vdwg.mxu0
    %1387 = vmatprep.subr.bf16.mxu0 %v573
    %1388 = vmatpush1.bf16.msra.mxu0 %v572
    %1389 = vmatprep.subr.bf16.mxu0 %v577
    %1390 = vmatpush1.bf16.msra.mxu0 %v576
    %1391 = vmatprep.subr.bf16.mxu0 %v581
    %1392 = vmatpush1.bf16.msra.mxu0 %v580
    %1393 = vmatprep.subr.bf16.mxu0 %v585
    %1394 = vmatpush1.bf16.msra.mxu0 %v584
    %1395 = vmatprep.subr.bf16.mxu0 %v589
    %1396 = vmatpush1.bf16.msra.mxu0 %v588
    %1397 = vmatprep.subr.bf16.mxu0 %v593
    %1398 = vmatpush1.bf16.msra.mxu0 %v592
    %1399 = vmatprep.subr.bf16.mxu0 %v597
    %1400 = vmatpush1.bf16.msra.mxu0 %v596
    %1401 = vmatprep.subr.bf16.mxu0 %v601
    %1402 = vmatpush1.bf16.msra.mxu0 %v600
    %1403 = vmatprep.subr.bf16.mxu0 0
    %1404 = vmatpush1.bf16.msra.mxu0 0
    %1405 = vmatprep.subr.bf16.mxu0 0
    %1406 = vmatpush1.bf16.msra.mxu0 0
    %1407 = vmatprep.subr.bf16.mxu0 0
    %1408 = vmatpush1.bf16.msra.mxu0 0
    %1409 = vmatprep.subr.bf16.mxu0 0
    %1410 = vmatpush1.bf16.msra.mxu0 0
    %1411 = vmatprep.subr.bf16.mxu0 0
    %1412 = vmatpush1.bf16.msra.mxu0 0
    %1413 = vmatprep.subr.bf16.mxu0 0
    %1414 = vmatpush1.bf16.msra.mxu0 0
    %1415 = vmatprep.subr.bf16.mxu0 0
    %1416 = vmatpush1.bf16.msra.mxu0 0
    %1417 = vmatprep.subr.bf16.mxu0 0
    %1418 = vmatpush1.bf16.msra.mxu0 0
    %1419 = vmatprep.mubr.bf16.mxu0 0
    %1420 = vmatmul.mubr.bf16.gmra.mrb[0].mxu0 %v744
    %v1421 = vpop.f32.mrb[0].mxu0
    %v1422 = vadd.f32 0.0, %v1421
    %v1423 = vpop.f32.mrb[0].mxu0
    %v1424 = vadd.f32 0.0, %v1423
    %v1425 = vpop.f32.mrb[0].mxu0
    %v1426 = vpop.f32.mrb[0].mxu0
    %1427 = vdwg.mxu0
    %v1432 = vrot.slane %v1381, 6
    %v1433 = vrot.slane %v1383, 6
    %v1434 = vrot.slane %v1422, 6
    %v1435 = vrot.slane %v1424, 6
    %v1440 = vadd.f32 %v391, %v1432
    %v1441 = vadd.f32 %v393, %v1433
    %v1442 = vadd.f32 %v434, %v1434
    %v1443 = vadd.f32 %v436, %v1435
    %v1444 = vxor.u32 %v1440, 2147483648
    %v1445 = vxor.u32 %v1441, 2147483648
    %v1446 = vxor.u32 %v1442, 2147483648
    %v1447 = vmul.f32 %v1444, 1.442695
    %v1448 = vpow.pop %v1447
    %v1449 = vmul.f32 %v1445, 1.442695
    %v1450 = vpow.pop %v1449
    %v1451 = vmul.f32 %v1446, 1.442695
    %v1452 = vpow.pop %v1451
    %v1453 = vadd.f32 %v1448, 1.0
    %v1454 = vadd.f32 %v1450, 1.0
    %v1455 = vadd.f32 %v1452, 1.0
    %v1456 = vrcp.pop %v1453
    %v1457 = vmul.f32 1.0, %v1456
    %v1458 = vrcp.pop %v1454
    %v1459 = vmul.f32 1.0, %v1458
    %v1460 = vrcp.pop %v1455
    %v1461 = vmul.f32 1.0, %v1460
    %v1462 = vtanh.pop %v1443
    %v1464 = vrot.slane %v741, 6
    %v1466 = vmul.f32 %v1459, %v1464
    %v1467 = vmul.f32 %v1457, %v1462
    %v1468 = vadd.f32 %v1466, %v1467
    %v1469 = vtanh.pop %v1468
    %v1470 = vmul.f32 %v1461, %v1469
    %v1471 = vpack.c.bf16 %v1470, %v1470
    %v1473 = vrot.slane %v1471, 1
    %1475 = vmatprep.subr.bf16.mxu0 %v898
    %1476 = vmatpush1.bf16.msra.mxu0 %v897
    %1477 = vmatprep.subr.bf16.mxu0 %v902
    %1478 = vmatpush1.bf16.msra.mxu0 %v901
    %1479 = vmatprep.subr.bf16.mxu0 %v906
    %1480 = vmatpush1.bf16.msra.mxu0 %v905
    %1481 = vmatprep.subr.bf16.mxu0 %v910
    %1482 = vmatpush1.bf16.msra.mxu0 %v909
    %1483 = vmatprep.subr.bf16.mxu0 %v914
    %1484 = vmatpush1.bf16.msra.mxu0 %v913
    %1485 = vmatprep.subr.bf16.mxu0 %v918
    %1486 = vmatpush1.bf16.msra.mxu0 %v917
    %1487 = vmatprep.subr.bf16.mxu0 %v922
    %1488 = vmatpush1.bf16.msra.mxu0 %v921
    %1489 = vmatprep.subr.bf16.mxu0 %v926
    %1490 = vmatpush1.bf16.msra.mxu0 %v925
    %1491 = vmatprep.subr.bf16.mxu0 0
    %1492 = vmatpush1.bf16.msra.mxu0 0
    %1493 = vmatprep.subr.bf16.mxu0 0
    %1494 = vmatpush1.bf16.msra.mxu0 0
    %1495 = vmatprep.subr.bf16.mxu0 0
    %1496 = vmatpush1.bf16.msra.mxu0 0
    %1497 = vmatprep.subr.bf16.mxu0 0
    %1498 = vmatpush1.bf16.msra.mxu0 0
    %1499 = vmatprep.subr.bf16.mxu0 0
    %1500 = vmatpush1.bf16.msra.mxu0 0
    %1501 = vmatprep.subr.bf16.mxu0 0
    %1502 = vmatpush1.bf16.msra.mxu0 0
    %1503 = vmatprep.subr.bf16.mxu0 0
    %1504 = vmatpush1.bf16.msra.mxu0 0
    %1505 = vmatprep.subr.bf16.mxu0 0
    %1506 = vmatpush1.bf16.msra.mxu0 0
    %1507 = vmatprep.mubr.bf16.mxu0 0
    %1508 = vmatmul.mubr.bf16.gmra.mrb[0].mxu0 %v1473
    %v1509 = vpop.f32.mrb[0].mxu0
    %v1510 = vadd.f32 %v784, %v1509
    %v1511 = vpop.f32.mrb[0].mxu0
    %v1512 = vadd.f32 %v788, %v1511
    %v1513 = vpop.f32.mrb[0].mxu0
    %v1514 = vpop.f32.mrb[0].mxu0
    %1515 = vdwg.mxu0
    %1516 = vmatprep.subr.bf16.mxu0 %v900
    %1517 = vmatpush1.bf16.msra.mxu0 %v899
    %1518 = vmatprep.subr.bf16.mxu0 %v904
    %1519 = vmatpush1.bf16.msra.mxu0 %v903
    %1520 = vmatprep.subr.bf16.mxu0 %v908
    %1521 = vmatpush1.bf16.msra.mxu0 %v907
    %1522 = vmatprep.subr.bf16.mxu0 %v912
    %1523 = vmatpush1.bf16.msra.mxu0 %v911
    %1524 = vmatprep.subr.bf16.mxu0 %v916
    %1525 = vmatpush1.bf16.msra.mxu0 %v915
    %1526 = vmatprep.subr.bf16.mxu0 %v920
    %1527 = vmatpush1.bf16.msra.mxu0 %v919
    %1528 = vmatprep.subr.bf16.mxu0 %v924
    %1529 = vmatpush1.bf16.msra.mxu0 %v923
    %1530 = vmatprep.subr.bf16.mxu0 %v928
    %1531 = vmatpush1.bf16.msra.mxu0 %v927
    %1532 = vmatprep.subr.bf16.mxu0 0
    %1533 = vmatpush1.bf16.msra.mxu0 0
    %1534 = vmatprep.subr.bf16.mxu0 0
    %1535 = vmatpush1.bf16.msra.mxu0 0
    %1536 = vmatprep.subr.bf16.mxu0 0
    %1537 = vmatpush1.bf16.msra.mxu0 0
    %1538 = vmatprep.subr.bf16.mxu0 0
    %1539 = vmatpush1.bf16.msra.mxu0 0
    %1540 = vmatprep.subr.bf16.mxu0 0
    %1541 = vmatpush1.bf16.msra.mxu0 0
    %1542 = vmatprep.subr.bf16.mxu0 0
    %1543 = vmatpush1.bf16.msra.mxu0 0
    %1544 = vmatprep.subr.bf16.mxu0 0
    %1545 = vmatpush1.bf16.msra.mxu0 0
    %1546 = vmatprep.subr.bf16.mxu0 0
    %1547 = vmatpush1.bf16.msra.mxu0 0
    %1548 = vmatprep.mubr.bf16.mxu0 0
    %1549 = vmatmul.mubr.bf16.gmra.mrb[0].mxu0 %v1473
    %v1550 = vpop.f32.mrb[0].mxu0
    %v1551 = vadd.f32 %v792, %v1550
    %v1552 = vpop.f32.mrb[0].mxu0
    %v1553 = vadd.f32 %v796, %v1552
    %v1554 = vpop.f32.mrb[0].mxu0
    %v1555 = vpop.f32.mrb[0].mxu0
    %1556 = vdwg.mxu0
    %v1557 = vpack.c.bf16 %v1345, %v1345
    %1558 = vmatprep.subr.bf16.mxu0 %v1173
    %1559 = vmatpush1.bf16.msra.mxu0 %v1172
    %1560 = vmatprep.subr.bf16.mxu0 %v1177
    %1561 = vmatpush1.bf16.msra.mxu0 %v1176
    %1562 = vmatprep.subr.bf16.mxu0 %v1181
    %1563 = vmatpush1.bf16.msra.mxu0 %v1180
    %1564 = vmatprep.subr.bf16.mxu0 %v1185
    %1565 = vmatpush1.bf16.msra.mxu0 %v1184
    %1566 = vmatprep.subr.bf16.mxu0 %v1189
    %1567 = vmatpush1.bf16.msra.mxu0 %v1188
    %1568 = vmatprep.subr.bf16.mxu0 %v1193
    %1569 = vmatpush1.bf16.msra.mxu0 %v1192
    %1570 = vmatprep.subr.bf16.mxu0 %v1197
    %1571 = vmatpush1.bf16.msra.mxu0 %v1196
    %1572 = vmatprep.subr.bf16.mxu0 %v1201
    %1573 = vmatpush1.bf16.msra.mxu0 %v1200
    %1574 = vmatprep.subr.bf16.mxu0 0
    %1575 = vmatpush1.bf16.msra.mxu0 0
    %1576 = vmatprep.subr.bf16.mxu0 0
    %1577 = vmatpush1.bf16.msra.mxu0 0
    %1578 = vmatprep.subr.bf16.mxu0 0
    %1579 = vmatpush1.bf16.msra.mxu0 0
    %1580 = vmatprep.subr.bf16.mxu0 0
    %1581 = vmatpush1.bf16.msra.mxu0 0
    %1582 = vmatprep.subr.bf16.mxu0 0
    %1583 = vmatpush1.bf16.msra.mxu0 0
    %1584 = vmatprep.subr.bf16.mxu0 0
    %1585 = vmatpush1.bf16.msra.mxu0 0
    %1586 = vmatprep.subr.bf16.mxu0 0
    %1587 = vmatpush1.bf16.msra.mxu0 0
    %1588 = vmatprep.subr.bf16.mxu0 0
    %1589 = vmatpush1.bf16.msra.mxu0 0
    %1590 = vmatprep.mubr.bf16.mxu0 0
    %1591 = vmatmul.mubr.bf16.gmra.mrb[0].mxu0 %v1557
    %v1592 = vpop.f32.mrb[0].mxu0
    %v1593 = vadd.f32 0.0, %v1592
    %v1594 = vpop.f32.mrb[0].mxu0
    %v1595 = vadd.f32 0.0, %v1594
    %v1596 = vpop.f32.mrb[0].mxu0
    %v1597 = vpop.f32.mrb[0].mxu0
    %1598 = vdwg.mxu0
    %1599 = vmatprep.subr.bf16.mxu0 %v1175
    %1600 = vmatpush1.bf16.msra.mxu0 %v1174
    %1601 = vmatprep.subr.bf16.mxu0 %v1179
    %1602 = vmatpush1.bf16.msra.mxu0 %v1178
    %1603 = vmatprep.subr.bf16.mxu0 %v1183
    %1604 = vmatpush1.bf16.msra.mxu0 %v1182
    %1605 = vmatprep.subr.bf16.mxu0 %v1187
    %1606 = vmatpush1.bf16.msra.mxu0 %v1186
    %1607 = vmatprep.subr.bf16.mxu0 %v1191
    %1608 = vmatpush1.bf16.msra.mxu0 %v1190
    %1609 = vmatprep.subr.bf16.mxu0 %v1195
    %1610 = vmatpush1.bf16.msra.mxu0 %v1194
    %1611 = vmatprep.subr.bf16.mxu0 %v1199
    %1612 = vmatpush1.bf16.msra.mxu0 %v1198
    %1613 = vmatprep.subr.bf16.mxu0 %v1203
    %1614 = vmatpush1.bf16.msra.mxu0 %v1202
    %1615 = vmatprep.subr.bf16.mxu0 0
    %1616 = vmatpush1.bf16.msra.mxu0 0
    %1617 = vmatprep.subr.bf16.mxu0 0
    %1618 = vmatpush1.bf16.msra.mxu0 0
    %1619 = vmatprep.subr.bf16.mxu0 0
    %1620 = vmatpush1.bf16.msra.mxu0 0
    %1621 = vmatprep.subr.bf16.mxu0 0
    %1622 = vmatpush1.bf16.msra.mxu0 0
    %1623 = vmatprep.subr.bf16.mxu0 0
    %1624 = vmatpush1.bf16.msra.mxu0 0
    %1625 = vmatprep.subr.bf16.mxu0 0
    %1626 = vmatpush1.bf16.msra.mxu0 0
    %1627 = vmatprep.subr.bf16.mxu0 0
    %1628 = vmatpush1.bf16.msra.mxu0 0
    %1629 = vmatprep.subr.bf16.mxu0 0
    %1630 = vmatpush1.bf16.msra.mxu0 0
    %1631 = vmatprep.mubr.bf16.mxu0 0
    %1632 = vmatmul.mubr.bf16.gmra.mrb[0].mxu0 %v1557
    %v1633 = vpop.f32.mrb[0].mxu0
    %v1634 = vadd.f32 0.0, %v1633
    %v1635 = vpop.f32.mrb[0].mxu0
    %v1636 = vadd.f32 0.0, %v1635
    %v1637 = vpop.f32.mrb[0].mxu0
    %v1638 = vpop.f32.mrb[0].mxu0
    %1639 = vdwg.mxu0
    %v1640 = vadd.f32 %v1510, %v1593
    %v1641 = vadd.f32 %v1512, %v1595
    %v1642 = vadd.f32 %v1551, %v1634
    %v1643 = vadd.f32 %v1553, %v1636
    %v1644 = vxor.u32 %v1640, 2147483648
    %v1645 = vxor.u32 %v1641, 2147483648
    %v1646 = vxor.u32 %v1642, 2147483648
    %v1647 = vmul.f32 %v1644, 1.442695
    %v1648 = vpow.pop %v1647
    %v1649 = vmul.f32 %v1645, 1.442695
    %v1650 = vpow.pop %v1649
    %v1651 = vmul.f32 %v1646, 1.442695
    %v1652 = vpow.pop %v1651
    %v1653 = vadd.f32 %v1648, 1.0
    %v1654 = vadd.f32 %v1650, 1.0
    %v1655 = vadd.f32 %v1652, 1.0
    %v1656 = vrcp.pop %v1653
    %v1657 = vmul.f32 1.0, %v1656
    %v1658 = vrcp.pop %v1654
    %v1659 = vmul.f32 1.0, %v1658
    %v1660 = vrcp.pop %v1655
    %v1661 = vmul.f32 1.0, %v1660
    %v1662 = vtanh.pop %v1643
    %v1663 = vmul.f32 %v1659, %v1343
    %v1664 = vmul.f32 %v1657, %v1662
    %v1665 = vadd.f32 %v1663, %v1664
    %v1666 = vtanh.pop %v1665
    %v1667 = vmul.f32 %v1661, %v1666
    %1668 = vmatprep.subr.bf16.mxu0 %v571
    %1669 = vmatpush1.bf16.msra.mxu0 %v570
    %1670 = vmatprep.subr.bf16.mxu0 %v575
    %1671 = vmatpush1.bf16.msra.mxu0 %v574
    %1672 = vmatprep.subr.bf16.mxu0 %v579
    %1673 = vmatpush1.bf16.msra.mxu0 %v578
    %1674 = vmatprep.subr.bf16.mxu0 %v583
    %1675 = vmatpush1.bf16.msra.mxu0 %v582
    %1676 = vmatprep.subr.bf16.mxu0 %v587
    %1677 = vmatpush1.bf16.msra.mxu0 %v586
    %1678 = vmatprep.subr.bf16.mxu0 %v591
    %1679 = vmatpush1.bf16.msra.mxu0 %v590
    %1680 = vmatprep.subr.bf16.mxu0 %v595
    %1681 = vmatpush1.bf16.msra.mxu0 %v594
    %1682 = vmatprep.subr.bf16.mxu0 %v599
    %1683 = vmatpush1.bf16.msra.mxu0 %v598
    %1684 = vmatprep.subr.bf16.mxu0 0
    %1685 = vmatpush1.bf16.msra.mxu0 0
    %1686 = vmatprep.subr.bf16.mxu0 0
    %1687 = vmatpush1.bf16.msra.mxu0 0
    %1688 = vmatprep.subr.bf16.mxu0 0
    %1689 = vmatpush1.bf16.msra.mxu0 0
    %1690 = vmatprep.subr.bf16.mxu0 0
    %1691 = vmatpush1.bf16.msra.mxu0 0
    %1692 = vmatprep.subr.bf16.mxu0 0
    %1693 = vmatpush1.bf16.msra.mxu0 0
    %1694 = vmatprep.subr.bf16.mxu0 0
    %1695 = vmatpush1.bf16.msra.mxu0 0
    %1696 = vmatprep.subr.bf16.mxu0 0
    %1697 = vmatpush1.bf16.msra.mxu0 0
    %1698 = vmatprep.subr.bf16.mxu0 0
    %1699 = vmatpush1.bf16.msra.mxu0 0
    %1700 = vmatprep.mubr.bf16.mxu0 0
    %1701 = vmatmul.mubr.bf16.gmra.mrb[0].mxu0 %v1473
    %v1702 = vpop.f32.mrb[0].mxu0
    %v1703 = vadd.f32 0.0, %v1702
    %v1704 = vpop.f32.mrb[0].mxu0
    %v1705 = vadd.f32 0.0, %v1704
    %v1706 = vpop.f32.mrb[0].mxu0
    %v1707 = vpop.f32.mrb[0].mxu0
    %1708 = vdwg.mxu0
    %1709 = vmatprep.subr.bf16.mxu0 %v573
    %1710 = vmatpush1.bf16.msra.mxu0 %v572
    %1711 = vmatprep.subr.bf16.mxu0 %v577
    %1712 = vmatpush1.bf16.msra.mxu0 %v576
    %1713 = vmatprep.subr.bf16.mxu0 %v581
    %1714 = vmatpush1.bf16.msra.mxu0 %v580
    %1715 = vmatprep.subr.bf16.mxu0 %v585
    %1716 = vmatpush1.bf16.msra.mxu0 %v584
    %1717 = vmatprep.subr.bf16.mxu0 %v589
    %1718 = vmatpush1.bf16.msra.mxu0 %v588
    %1719 = vmatprep.subr.bf16.mxu0 %v593
    %1720 = vmatpush1.bf16.msra.mxu0 %v592
    %1721 = vmatprep.subr.bf16.mxu0 %v597
    %1722 = vmatpush1.bf16.msra.mxu0 %v596
    %1723 = vmatprep.subr.bf16.mxu0 %v601
    %1724 = vmatpush1.bf16.msra.mxu0 %v600
    %1725 = vmatprep.subr.bf16.mxu0 0
    %1726 = vmatpush1.bf16.msra.mxu0 0
    %1727 = vmatprep.subr.bf16.mxu0 0
    %1728 = vmatpush1.bf16.msra.mxu0 0
    %1729 = vmatprep.subr.bf16.mxu0 0
    %1730 = vmatpush1.bf16.msra.mxu0 0
    %1731 = vmatprep.subr.bf16.mxu0 0
    %1732 = vmatpush1.bf16.msra.mxu0 0
    %1733 = vmatprep.subr.bf16.mxu0 0
    %1734 = vmatpush1.bf16.msra.mxu0 0
    %1735 = vmatprep.subr.bf16.mxu0 0
    %1736 = vmatpush1.bf16.msra.mxu0 0
    %1737 = vmatprep.subr.bf16.mxu0 0
    %1738 = vmatpush1.bf16.msra.mxu0 0
    %1739 = vmatprep.subr.bf16.mxu0 0
    %1740 = vmatpush1.bf16.msra.mxu0 0
    %1741 = vmatprep.mubr.bf16.mxu0 0
    %1742 = vmatmul.mubr.bf16.gmra.mrb[0].mxu0 %v1473
    %v1743 = vpop.f32.mrb[0].mxu0
    %v1744 = vadd.f32 0.0, %v1743
    %v1745 = vpop.f32.mrb[0].mxu0
    %v1746 = vadd.f32 0.0, %v1745
    %v1747 = vpop.f32.mrb[0].mxu0
    %v1748 = vpop.f32.mrb[0].mxu0
    %1749 = vdwg.mxu0
    %v1754 = vrot.slane %v1703, 4
    %v1755 = vrot.slane %v1705, 4
    %v1756 = vrot.slane %v1744, 4
    %v1757 = vrot.slane %v1746, 4
    %v1762 = vadd.f32 %v391, %v1754
    %v1763 = vadd.f32 %v393, %v1755
    %v1764 = vadd.f32 %v434, %v1756
    %v1765 = vadd.f32 %v436, %v1757
    %v1766 = vxor.u32 %v1762, 2147483648
    %v1767 = vxor.u32 %v1763, 2147483648
    %v1768 = vxor.u32 %v1764, 2147483648
    %v1769 = vmul.f32 %v1766, 1.442695
    %v1770 = vpow.pop %v1769
    %v1771 = vmul.f32 %v1767, 1.442695
    %v1772 = vpow.pop %v1771
    %v1773 = vmul.f32 %v1768, 1.442695
    %v1774 = vpow.pop %v1773
    %v1775 = vadd.f32 %v1770, 1.0
    %v1776 = vadd.f32 %v1772, 1.0
    %v1777 = vadd.f32 %v1774, 1.0
    %v1778 = vrcp.pop %v1775
    %v1779 = vmul.f32 1.0, %v1778
    %v1780 = vrcp.pop %v1776
    %v1781 = vmul.f32 1.0, %v1780
    %v1782 = vrcp.pop %v1777
    %v1783 = vmul.f32 1.0, %v1782
    %v1784 = vtanh.pop %v1765
    %v1786 = vrot.slane %v1468, 6
    %v1788 = vmul.f32 %v1781, %v1786
    %v1789 = vmul.f32 %v1779, %v1784
    %v1790 = vadd.f32 %v1788, %v1789
    %v1791 = vtanh.pop %v1790
    %v1792 = vmul.f32 %v1783, %v1791
    %v1793 = vpack.c.bf16 %v1792, %v1792
    %v1795 = vrot.slane %v1793, 2
    %1797 = vmatprep.subr.bf16.mxu0 %v898
    %1798 = vmatpush1.bf16.msra.mxu0 %v897
    %1799 = vmatprep.subr.bf16.mxu0 %v902
    %1800 = vmatpush1.bf16.msra.mxu0 %v901
    %1801 = vmatprep.subr.bf16.mxu0 %v906
    %1802 = vmatpush1.bf16.msra.mxu0 %v905
    %1803 = vmatprep.subr.bf16.mxu0 %v910
    %1804 = vmatpush1.bf16.msra.mxu0 %v909
    %1805 = vmatprep.subr.bf16.mxu0 %v914
    %1806 = vmatpush1.bf16.msra.mxu0 %v913
    %1807 = vmatprep.subr.bf16.mxu0 %v918
    %1808 = vmatpush1.bf16.msra.mxu0 %v917
    %1809 = vmatprep.subr.bf16.mxu0 %v922
    %1810 = vmatpush1.bf16.msra.mxu0 %v921
    %1811 = vmatprep.subr.bf16.mxu0 %v926
    %1812 = vmatpush1.bf16.msra.mxu0 %v925
    %1813 = vmatprep.subr.bf16.mxu0 0
    %1814 = vmatpush1.bf16.msra.mxu0 0
    %1815 = vmatprep.subr.bf16.mxu0 0
    %1816 = vmatpush1.bf16.msra.mxu0 0
    %1817 = vmatprep.subr.bf16.mxu0 0
    %1818 = vmatpush1.bf16.msra.mxu0 0
    %1819 = vmatprep.subr.bf16.mxu0 0
    %1820 = vmatpush1.bf16.msra.mxu0 0
    %1821 = vmatprep.subr.bf16.mxu0 0
    %1822 = vmatpush1.bf16.msra.mxu0 0
    %1823 = vmatprep.subr.bf16.mxu0 0
    %1824 = vmatpush1.bf16.msra.mxu0 0
    %1825 = vmatprep.subr.bf16.mxu0 0
    %1826 = vmatpush1.bf16.msra.mxu0 0
    %1827 = vmatprep.subr.bf16.mxu0 0
    %1828 = vmatpush1.bf16.msra.mxu0 0
    %1829 = vmatprep.mubr.bf16.mxu0 0
    %1830 = vmatmul.mubr.bf16.gmra.mrb[0].mxu0 %v1795
    %v1831 = vpop.f32.mrb[0].mxu0
    %v1832 = vadd.f32 %v784, %v1831
    %v1833 = vpop.f32.mrb[0].mxu0
    %v1834 = vadd.f32 %v788, %v1833
    %v1835 = vpop.f32.mrb[0].mxu0
    %v1836 = vpop.f32.mrb[0].mxu0
    %1837 = vdwg.mxu0
    %1838 = vmatprep.subr.bf16.mxu0 %v900
    %1839 = vmatpush1.bf16.msra.mxu0 %v899
    %1840 = vmatprep.subr.bf16.mxu0 %v904
    %1841 = vmatpush1.bf16.msra.mxu0 %v903
    %1842 = vmatprep.subr.bf16.mxu0 %v908
    %1843 = vmatpush1.bf16.msra.mxu0 %v907
    %1844 = vmatprep.subr.bf16.mxu0 %v912
    %1845 = vmatpush1.bf16.msra.mxu0 %v911
    %1846 = vmatprep.subr.bf16.mxu0 %v916
    %1847 = vmatpush1.bf16.msra.mxu0 %v915
    %1848 = vmatprep.subr.bf16.mxu0 %v920
    %1849 = vmatpush1.bf16.msra.mxu0 %v919
    %1850 = vmatprep.subr.bf16.mxu0 %v924
    %1851 = vmatpush1.bf16.msra.mxu0 %v923
    %1852 = vmatprep.subr.bf16.mxu0 %v928
    %1853 = vmatpush1.bf16.msra.mxu0 %v927
    %1854 = vmatprep.subr.bf16.mxu0 0
    %1855 = vmatpush1.bf16.msra.mxu0 0
    %1856 = vmatprep.subr.bf16.mxu0 0
    %1857 = vmatpush1.bf16.msra.mxu0 0
    %1858 = vmatprep.subr.bf16.mxu0 0
    %1859 = vmatpush1.bf16.msra.mxu0 0
    %1860 = vmatprep.subr.bf16.mxu0 0
    %1861 = vmatpush1.bf16.msra.mxu0 0
    %1862 = vmatprep.subr.bf16.mxu0 0
    %1863 = vmatpush1.bf16.msra.mxu0 0
    %1864 = vmatprep.subr.bf16.mxu0 0
    %1865 = vmatpush1.bf16.msra.mxu0 0
    %1866 = vmatprep.subr.bf16.mxu0 0
    %1867 = vmatpush1.bf16.msra.mxu0 0
    %1868 = vmatprep.subr.bf16.mxu0 0
    %1869 = vmatpush1.bf16.msra.mxu0 0
    %1870 = vmatprep.mubr.bf16.mxu0 0
    %1871 = vmatmul.mubr.bf16.gmra.mrb[0].mxu0 %v1795
    %v1872 = vpop.f32.mrb[0].mxu0
    %v1873 = vadd.f32 %v792, %v1872
    %v1874 = vpop.f32.mrb[0].mxu0
    %v1875 = vadd.f32 %v796, %v1874
    %v1876 = vpop.f32.mrb[0].mxu0
    %v1877 = vpop.f32.mrb[0].mxu0
    %1878 = vdwg.mxu0
    %v1879 = vpack.c.bf16 %v1667, %v1667
    %1880 = vmatprep.subr.bf16.mxu0 %v1173
    %1881 = vmatpush1.bf16.msra.mxu0 %v1172
    %1882 = vmatprep.subr.bf16.mxu0 %v1177
    %1883 = vmatpush1.bf16.msra.mxu0 %v1176
    %1884 = vmatprep.subr.bf16.mxu0 %v1181
    %1885 = vmatpush1.bf16.msra.mxu0 %v1180
    %1886 = vmatprep.subr.bf16.mxu0 %v1185
    %1887 = vmatpush1.bf16.msra.mxu0 %v1184
    %1888 = vmatprep.subr.bf16.mxu0 %v1189
    %1889 = vmatpush1.bf16.msra.mxu0 %v1188
    %1890 = vmatprep.subr.bf16.mxu0 %v1193
    %1891 = vmatpush1.bf16.msra.mxu0 %v1192
    %1892 = vmatprep.subr.bf16.mxu0 %v1197
    %1893 = vmatpush1.bf16.msra.mxu0 %v1196
    %1894 = vmatprep.subr.bf16.mxu0 %v1201
    %1895 = vmatpush1.bf16.msra.mxu0 %v1200
    %1896 = vmatprep.subr.bf16.mxu0 0
    %1897 = vmatpush1.bf16.msra.mxu0 0
    %1898 = vmatprep.subr.bf16.mxu0 0
    %1899 = vmatpush1.bf16.msra.mxu0 0
    %1900 = vmatprep.subr.bf16.mxu0 0
    %1901 = vmatpush1.bf16.msra.mxu0 0
    %1902 = vmatprep.subr.bf16.mxu0 0
    %1903 = vmatpush1.bf16.msra.mxu0 0
    %1904 = vmatprep.subr.bf16.mxu0 0
    %1905 = vmatpush1.bf16.msra.mxu0 0
    %1906 = vmatprep.subr.bf16.mxu0 0
    %1907 = vmatpush1.bf16.msra.mxu0 0
    %1908 = vmatprep.subr.bf16.mxu0 0
    %1909 = vmatpush1.bf16.msra.mxu0 0
    %1910 = vmatprep.subr.bf16.mxu0 0
    %1911 = vmatpush1.bf16.msra.mxu0 0
    %1912 = vmatprep.mubr.bf16.mxu0 0
    %1913 = vmatmul.mubr.bf16.gmra.mrb[0].mxu0 %v1879
    %v1914 = vpop.f32.mrb[0].mxu0
    %v1915 = vadd.f32 0.0, %v1914
    %v1916 = vpop.f32.mrb[0].mxu0
    %v1917 = vadd.f32 0.0, %v1916
    %v1918 = vpop.f32.mrb[0].mxu0
    %v1919 = vpop.f32.mrb[0].mxu0
    %1920 = vdwg.mxu0
    %1921 = vmatprep.subr.bf16.mxu0 %v1175
    %1922 = vmatpush1.bf16.msra.mxu0 %v1174
    %1923 = vmatprep.subr.bf16.mxu0 %v1179
    %1924 = vmatpush1.bf16.msra.mxu0 %v1178
    %1925 = vmatprep.subr.bf16.mxu0 %v1183
    %1926 = vmatpush1.bf16.msra.mxu0 %v1182
    %1927 = vmatprep.subr.bf16.mxu0 %v1187
    %1928 = vmatpush1.bf16.msra.mxu0 %v1186
    %1929 = vmatprep.subr.bf16.mxu0 %v1191
    %1930 = vmatpush1.bf16.msra.mxu0 %v1190
    %1931 = vmatprep.subr.bf16.mxu0 %v1195
    %1932 = vmatpush1.bf16.msra.mxu0 %v1194
    %1933 = vmatprep.subr.bf16.mxu0 %v1199
    %1934 = vmatpush1.bf16.msra.mxu0 %v1198
    %1935 = vmatprep.subr.bf16.mxu0 %v1203
    %1936 = vmatpush1.bf16.msra.mxu0 %v1202
    %1937 = vmatprep.subr.bf16.mxu0 0
    %1938 = vmatpush1.bf16.msra.mxu0 0
    %1939 = vmatprep.subr.bf16.mxu0 0
    %1940 = vmatpush1.bf16.msra.mxu0 0
    %1941 = vmatprep.subr.bf16.mxu0 0
    %1942 = vmatpush1.bf16.msra.mxu0 0
    %1943 = vmatprep.subr.bf16.mxu0 0
    %1944 = vmatpush1.bf16.msra.mxu0 0
    %1945 = vmatprep.subr.bf16.mxu0 0
    %1946 = vmatpush1.bf16.msra.mxu0 0
    %1947 = vmatprep.subr.bf16.mxu0 0
    %1948 = vmatpush1.bf16.msra.mxu0 0
    %1949 = vmatprep.subr.bf16.mxu0 0
    %1950 = vmatpush1.bf16.msra.mxu0 0
    %1951 = vmatprep.subr.bf16.mxu0 0
    %1952 = vmatpush1.bf16.msra.mxu0 0
    %1953 = vmatprep.mubr.bf16.mxu0 0
    %1954 = vmatmul.mubr.bf16.gmra.mrb[0].mxu0 %v1879
    %v1955 = vpop.f32.mrb[0].mxu0
    %v1956 = vadd.f32 0.0, %v1955
    %v1957 = vpop.f32.mrb[0].mxu0
    %v1958 = vadd.f32 0.0, %v1957
    %v1959 = vpop.f32.mrb[0].mxu0
    %v1960 = vpop.f32.mrb[0].mxu0
    %1961 = vdwg.mxu0
    %v1962 = vadd.f32 %v1832, %v1915
    %v1963 = vadd.f32 %v1834, %v1917
    %v1964 = vadd.f32 %v1873, %v1956
    %v1965 = vadd.f32 %v1875, %v1958
    %v1966 = vxor.u32 %v1962, 2147483648
    %v1967 = vxor.u32 %v1963, 2147483648
    %v1968 = vxor.u32 %v1964, 2147483648
    %v1969 = vmul.f32 %v1966, 1.442695
    %v1970 = vpow.pop %v1969
    %v1971 = vmul.f32 %v1967, 1.442695
    %v1972 = vpow.pop %v1971
    %v1973 = vmul.f32 %v1968, 1.442695
    %v1974 = vpow.pop %v1973
    %v1975 = vadd.f32 %v1970, 1.0
    %v1976 = vadd.f32 %v1972, 1.0
    %v1977 = vadd.f32 %v1974, 1.0
    %v1978 = vrcp.pop %v1975
    %v1979 = vmul.f32 1.0, %v1978
    %v1980 = vrcp.pop %v1976
    %v1981 = vmul.f32 1.0, %v1980
    %v1982 = vrcp.pop %v1977
    %v1983 = vmul.f32 1.0, %v1982
    %v1984 = vtanh.pop %v1965
    %v1985 = vmul.f32 %v1981, %v1665
    %v1986 = vmul.f32 %v1979, %v1984
    %v1987 = vadd.f32 %v1985, %v1986
    %v1988 = vtanh.pop %v1987
    %v1989 = vmul.f32 %v1983, %v1988
    %1990 = vmatprep.subr.bf16.mxu0 %v571
    %1991 = vmatpush1.bf16.msra.mxu0 %v570
    %1992 = vmatprep.subr.bf16.mxu0 %v575
    %1993 = vmatpush1.bf16.msra.mxu0 %v574
    %1994 = vmatprep.subr.bf16.mxu0 %v579
    %1995 = vmatpush1.bf16.msra.mxu0 %v578
    %1996 = vmatprep.subr.bf16.mxu0 %v583
    %1997 = vmatpush1.bf16.msra.mxu0 %v582
    %1998 = vmatprep.subr.bf16.mxu0 %v587
    %1999 = vmatpush1.bf16.msra.mxu0 %v586
    %2000 = vmatprep.subr.bf16.mxu0 %v591
    %2001 = vmatpush1.bf16.msra.mxu0 %v590
    %2002 = vmatprep.subr.bf16.mxu0 %v595
    %2003 = vmatpush1.bf16.msra.mxu0 %v594
    %2004 = vmatprep.subr.bf16.mxu0 %v599
    %2005 = vmatpush1.bf16.msra.mxu0 %v598
    %2006 = vmatprep.subr.bf16.mxu0 0
    %2007 = vmatpush1.bf16.msra.mxu0 0
    %2008 = vmatprep.subr.bf16.mxu0 0
    %2009 = vmatpush1.bf16.msra.mxu0 0
    %2010 = vmatprep.subr.bf16.mxu0 0
    %2011 = vmatpush1.bf16.msra.mxu0 0
    %2012 = vmatprep.subr.bf16.mxu0 0
    %2013 = vmatpush1.bf16.msra.mxu0 0
    %2014 = vmatprep.subr.bf16.mxu0 0
    %2015 = vmatpush1.bf16.msra.mxu0 0
    %2016 = vmatprep.subr.bf16.mxu0 0
    %2017 = vmatpush1.bf16.msra.mxu0 0
    %2018 = vmatprep.subr.bf16.mxu0 0
    %2019 = vmatpush1.bf16.msra.mxu0 0
    %2020 = vmatprep.subr.bf16.mxu0 0
    %2021 = vmatpush1.bf16.msra.mxu0 0
    %2022 = vmatprep.mubr.bf16.mxu0 0
    %2023 = vmatmul.mubr.bf16.gmra.mrb[0].mxu0 %v1795
    %v2024 = vpop.f32.mrb[0].mxu0
    %v2025 = vadd.f32 0.0, %v2024
    %v2026 = vpop.f32.mrb[0].mxu0
    %v2027 = vadd.f32 0.0, %v2026
    %v2028 = vpop.f32.mrb[0].mxu0
    %v2029 = vpop.f32.mrb[0].mxu0
    %2030 = vdwg.mxu0
    %2031 = vmatprep.subr.bf16.mxu0 %v573
    %2032 = vmatpush1.bf16.msra.mxu0 %v572
    %2033 = vmatprep.subr.bf16.mxu0 %v577
    %2034 = vmatpush1.bf16.msra.mxu0 %v576
    %2035 = vmatprep.subr.bf16.mxu0 %v581
    %2036 = vmatpush1.bf16.msra.mxu0 %v580
    %2037 = vmatprep.subr.bf16.mxu0 %v585
    %2038 = vmatpush1.bf16.msra.mxu0 %v584
    %2039 = vmatprep.subr.bf16.mxu0 %v589
    %2040 = vmatpush1.bf16.msra.mxu0 %v588
    %2041 = vmatprep.subr.bf16.mxu0 %v593
    %2042 = vmatpush1.bf16.msra.mxu0 %v592
    %2043 = vmatprep.subr.bf16.mxu0 %v597
    %2044 = vmatpush1.bf16.msra.mxu0 %v596
    %2045 = vmatprep.subr.bf16.mxu0 %v601
    %2046 = vmatpush1.bf16.msra.mxu0 %v600
    %2047 = vmatprep.subr.bf16.mxu0 0
    %2048 = vmatpush1.bf16.msra.mxu0 0
    %2049 = vmatprep.subr.bf16.mxu0 0
    %2050 = vmatpush1.bf16.msra.mxu0 0
    %2051 = vmatprep.subr.bf16.mxu0 0
    %2052 = vmatpush1.bf16.msra.mxu0 0
    %2053 = vmatprep.subr.bf16.mxu0 0
    %2054 = vmatpush1.bf16.msra.mxu0 0
    %2055 = vmatprep.subr.bf16.mxu0 0
    %2056 = vmatpush1.bf16.msra.mxu0 0
    %2057 = vmatprep.subr.bf16.mxu0 0
    %2058 = vmatpush1.bf16.msra.mxu0 0
    %2059 = vmatprep.subr.bf16.mxu0 0
    %2060 = vmatpush1.bf16.msra.mxu0 0
    %2061 = vmatprep.subr.bf16.mxu0 0
    %2062 = vmatpush1.bf16.msra.mxu0 0
    %2063 = vmatprep.mubr.bf16.mxu0 0
    %2064 = vmatmul.mubr.bf16.gmra.mrb[0].mxu0 %v1795
    %v2065 = vpop.f32.mrb[0].mxu0
    %v2066 = vadd.f32 0.0, %v2065
    %v2067 = vpop.f32.mrb[0].mxu0
    %v2068 = vadd.f32 0.0, %v2067
    %v2069 = vpop.f32.mrb[0].mxu0
    %v2070 = vpop.f32.mrb[0].mxu0
    %2071 = vdwg.mxu0
    %v2076 = vrot.slane %v2025, 2
    %v2077 = vrot.slane %v2027, 2
    %v2078 = vrot.slane %v2066, 2
    %v2079 = vrot.slane %v2068, 2
    %v2084 = vadd.f32 %v391, %v2076
    %v2085 = vadd.f32 %v393, %v2077
    %v2086 = vadd.f32 %v434, %v2078
    %v2087 = vadd.f32 %v436, %v2079
    %v2088 = vxor.u32 %v2084, 2147483648
    %v2089 = vxor.u32 %v2085, 2147483648
    %v2090 = vxor.u32 %v2086, 2147483648
    %v2091 = vmul.f32 %v2088, 1.442695
    %v2092 = vpow.pop %v2091
    %v2093 = vmul.f32 %v2089, 1.442695
    %v2094 = vpow.pop %v2093
    %v2095 = vmul.f32 %v2090, 1.442695
    %v2096 = vpow.pop %v2095
    %v2097 = vadd.f32 %v2092, 1.0
    %v2098 = vadd.f32 %v2094, 1.0
    %v2099 = vadd.f32 %v2096, 1.0
    %v2100 = vrcp.pop %v2097
    %v2101 = vmul.f32 1.0, %v2100
    %v2102 = vrcp.pop %v2098
    %v2103 = vmul.f32 1.0, %v2102
    %v2104 = vrcp.pop %v2099
    %v2105 = vmul.f32 1.0, %v2104
    %v2106 = vtanh.pop %v2087
    %v2108 = vrot.slane %v1790, 6
    %v2110 = vmul.f32 %v2103, %v2108
    %v2111 = vmul.f32 %v2101, %v2106
    %v2112 = vadd.f32 %v2110, %v2111
    %v2113 = vtanh.pop %v2112
    %v2114 = vmul.f32 %v2105, %v2113
    %v2115 = vpack.c.bf16 %v2114, %v2114
    %v2117 = vrot.slane %v2115, 3
    %2119 = vmatprep.subr.bf16.mxu0 %v898
    %2120 = vmatpush1.bf16.msra.mxu0 %v897
    %2121 = vmatprep.subr.bf16.mxu0 %v902
    %2122 = vmatpush1.bf16.msra.mxu0 %v901
    %2123 = vmatprep.subr.bf16.mxu0 %v906
    %2124 = vmatpush1.bf16.msra.mxu0 %v905
    %2125 = vmatprep.subr.bf16.mxu0 %v910
    %2126 = vmatpush1.bf16.msra.mxu0 %v909
    %2127 = vmatprep.subr.bf16.mxu0 %v914
    %2128 = vmatpush1.bf16.msra.mxu0 %v913
    %2129 = vmatprep.subr.bf16.mxu0 %v918
    %2130 = vmatpush1.bf16.msra.mxu0 %v917
    %2131 = vmatprep.subr.bf16.mxu0 %v922
    %2132 = vmatpush1.bf16.msra.mxu0 %v921
    %2133 = vmatprep.subr.bf16.mxu0 %v926
    %2134 = vmatpush1.bf16.msra.mxu0 %v925
    %2135 = vmatprep.subr.bf16.mxu0 0
    %2136 = vmatpush1.bf16.msra.mxu0 0
    %2137 = vmatprep.subr.bf16.mxu0 0
    %2138 = vmatpush1.bf16.msra.mxu0 0
    %2139 = vmatprep.subr.bf16.mxu0 0
    %2140 = vmatpush1.bf16.msra.mxu0 0
    %2141 = vmatprep.subr.bf16.mxu0 0
    %2142 = vmatpush1.bf16.msra.mxu0 0
    %2143 = vmatprep.subr.bf16.mxu0 0
    %2144 = vmatpush1.bf16.msra.mxu0 0
    %2145 = vmatprep.subr.bf16.mxu0 0
    %2146 = vmatpush1.bf16.msra.mxu0 0
    %2147 = vmatprep.subr.bf16.mxu0 0
    %2148 = vmatpush1.bf16.msra.mxu0 0
    %2149 = vmatprep.subr.bf16.mxu0 0
    %2150 = vmatpush1.bf16.msra.mxu0 0
    %2151 = vmatprep.mubr.bf16.mxu0 0
    %2152 = vmatmul.mubr.bf16.gmra.mrb[0].mxu0 %v2117
    %v2153 = vpop.f32.mrb[0].mxu0
    %v2154 = vadd.f32 %v784, %v2153
    %v2155 = vpop.f32.mrb[0].mxu0
    %v2156 = vadd.f32 %v788, %v2155
    %v2157 = vpop.f32.mrb[0].mxu0
    %v2158 = vpop.f32.mrb[0].mxu0
    %2159 = vdwg.mxu0
    %2160 = vmatprep.subr.bf16.mxu0 %v900
    %2161 = vmatpush1.bf16.msra.mxu0 %v899
    %2162 = vmatprep.subr.bf16.mxu0 %v904
    %2163 = vmatpush1.bf16.msra.mxu0 %v903
    %2164 = vmatprep.subr.bf16.mxu0 %v908
    %2165 = vmatpush1.bf16.msra.mxu0 %v907
    %2166 = vmatprep.subr.bf16.mxu0 %v912
    %2167 = vmatpush1.bf16.msra.mxu0 %v911
    %2168 = vmatprep.subr.bf16.mxu0 %v916
    %2169 = vmatpush1.bf16.msra.mxu0 %v915
    %2170 = vmatprep.subr.bf16.mxu0 %v920
    %2171 = vmatpush1.bf16.msra.mxu0 %v919
    %2172 = vmatprep.subr.bf16.mxu0 %v924
    %2173 = vmatpush1.bf16.msra.mxu0 %v923
    %2174 = vmatprep.subr.bf16.mxu0 %v928
    %2175 = vmatpush1.bf16.msra.mxu0 %v927
    %2176 = vmatprep.subr.bf16.mxu0 0
    %2177 = vmatpush1.bf16.msra.mxu0 0
    %2178 = vmatprep.subr.bf16.mxu0 0
    %2179 = vmatpush1.bf16.msra.mxu0 0
    %2180 = vmatprep.subr.bf16.mxu0 0
    %2181 = vmatpush1.bf16.msra.mxu0 0
    %2182 = vmatprep.subr.bf16.mxu0 0
    %2183 = vmatpush1.bf16.msra.mxu0 0
    %2184 = vmatprep.subr.bf16.mxu0 0
    %2185 = vmatpush1.bf16.msra.mxu0 0
    %2186 = vmatprep.subr.bf16.mxu0 0
    %2187 = vmatpush1.bf16.msra.mxu0 0
    %2188 = vmatprep.subr.bf16.mxu0 0
    %2189 = vmatpush1.bf16.msra.mxu0 0
    %2190 = vmatprep.subr.bf16.mxu0 0
    %2191 = vmatpush1.bf16.msra.mxu0 0
    %2192 = vmatprep.mubr.bf16.mxu0 0
    %2193 = vmatmul.mubr.bf16.gmra.mrb[0].mxu0 %v2117
    %v2194 = vpop.f32.mrb[0].mxu0
    %v2195 = vadd.f32 %v792, %v2194
    %v2196 = vpop.f32.mrb[0].mxu0
    %v2197 = vadd.f32 %v796, %v2196
    %v2198 = vpop.f32.mrb[0].mxu0
    %v2199 = vpop.f32.mrb[0].mxu0
    %2200 = vdwg.mxu0
    %v2201 = vpack.c.bf16 %v1989, %v1989
    %2202 = vmatprep.subr.bf16.mxu0 %v1173
    %2203 = vmatpush1.bf16.msra.mxu0 %v1172
    %2204 = vmatprep.subr.bf16.mxu0 %v1177
    %2205 = vmatpush1.bf16.msra.mxu0 %v1176
    %2206 = vmatprep.subr.bf16.mxu0 %v1181
    %2207 = vmatpush1.bf16.msra.mxu0 %v1180
    %2208 = vmatprep.subr.bf16.mxu0 %v1185
    %2209 = vmatpush1.bf16.msra.mxu0 %v1184
    %2210 = vmatprep.subr.bf16.mxu0 %v1189
    %2211 = vmatpush1.bf16.msra.mxu0 %v1188
    %2212 = vmatprep.subr.bf16.mxu0 %v1193
    %2213 = vmatpush1.bf16.msra.mxu0 %v1192
    %2214 = vmatprep.subr.bf16.mxu0 %v1197
    %2215 = vmatpush1.bf16.msra.mxu0 %v1196
    %2216 = vmatprep.subr.bf16.mxu0 %v1201
    %2217 = vmatpush1.bf16.msra.mxu0 %v1200
    %2218 = vmatprep.subr.bf16.mxu0 0
    %2219 = vmatpush1.bf16.msra.mxu0 0
    %2220 = vmatprep.subr.bf16.mxu0 0
    %2221 = vmatpush1.bf16.msra.mxu0 0
    %2222 = vmatprep.subr.bf16.mxu0 0
    %2223 = vmatpush1.bf16.msra.mxu0 0
    %2224 = vmatprep.subr.bf16.mxu0 0
    %2225 = vmatpush1.bf16.msra.mxu0 0
    %2226 = vmatprep.subr.bf16.mxu0 0
    %2227 = vmatpush1.bf16.msra.mxu0 0
    %2228 = vmatprep.subr.bf16.mxu0 0
    %2229 = vmatpush1.bf16.msra.mxu0 0
    %2230 = vmatprep.subr.bf16.mxu0 0
    %2231 = vmatpush1.bf16.msra.mxu0 0
    %2232 = vmatprep.subr.bf16.mxu0 0
    %2233 = vmatpush1.bf16.msra.mxu0 0
    %2234 = vmatprep.mubr.bf16.mxu0 0
    %2235 = vmatmul.mubr.bf16.gmra.mrb[0].mxu0 %v2201
    %v2236 = vpop.f32.mrb[0].mxu0
    %v2237 = vadd.f32 0.0, %v2236
    %v2238 = vpop.f32.mrb[0].mxu0
    %v2239 = vadd.f32 0.0, %v2238
    %v2240 = vpop.f32.mrb[0].mxu0
    %v2241 = vpop.f32.mrb[0].mxu0
    %2242 = vdwg.mxu0
    %2243 = vmatprep.subr.bf16.mxu0 %v1175
    %2244 = vmatpush1.bf16.msra.mxu0 %v1174
    %2245 = vmatprep.subr.bf16.mxu0 %v1179
    %2246 = vmatpush1.bf16.msra.mxu0 %v1178
    %2247 = vmatprep.subr.bf16.mxu0 %v1183
    %2248 = vmatpush1.bf16.msra.mxu0 %v1182
    %2249 = vmatprep.subr.bf16.mxu0 %v1187
    %2250 = vmatpush1.bf16.msra.mxu0 %v1186
    %2251 = vmatprep.subr.bf16.mxu0 %v1191
    %2252 = vmatpush1.bf16.msra.mxu0 %v1190
    %2253 = vmatprep.subr.bf16.mxu0 %v1195
    %2254 = vmatpush1.bf16.msra.mxu0 %v1194
    %2255 = vmatprep.subr.bf16.mxu0 %v1199
    %2256 = vmatpush1.bf16.msra.mxu0 %v1198
    %2257 = vmatprep.subr.bf16.mxu0 %v1203
    %2258 = vmatpush1.bf16.msra.mxu0 %v1202
    %2259 = vmatprep.subr.bf16.mxu0 0
    %2260 = vmatpush1.bf16.msra.mxu0 0
    %2261 = vmatprep.subr.bf16.mxu0 0
    %2262 = vmatpush1.bf16.msra.mxu0 0
    %2263 = vmatprep.subr.bf16.mxu0 0
    %2264 = vmatpush1.bf16.msra.mxu0 0
    %2265 = vmatprep.subr.bf16.mxu0 0
    %2266 = vmatpush1.bf16.msra.mxu0 0
    %2267 = vmatprep.subr.bf16.mxu0 0
    %2268 = vmatpush1.bf16.msra.mxu0 0
    %2269 = vmatprep.subr.bf16.mxu0 0
    %2270 = vmatpush1.bf16.msra.mxu0 0
    %2271 = vmatprep.subr.bf16.mxu0 0
    %2272 = vmatpush1.bf16.msra.mxu0 0
    %2273 = vmatprep.subr.bf16.mxu0 0
    %2274 = vmatpush1.bf16.msra.mxu0 0
    %2275 = vmatprep.mubr.bf16.mxu0 0
    %2276 = vmatmul.mubr.bf16.gmra.mrb[0].mxu0 %v2201
    %v2277 = vpop.f32.mrb[0].mxu0
    %v2278 = vadd.f32 0.0, %v2277
    %v2279 = vpop.f32.mrb[0].mxu0
    %v2280 = vadd.f32 0.0, %v2279
    %v2281 = vpop.f32.mrb[0].mxu0
    %v2282 = vpop.f32.mrb[0].mxu0
    %2283 = vdwg.mxu0
    %v2284 = vadd.f32 %v2154, %v2237
    %v2285 = vadd.f32 %v2156, %v2239
    %v2286 = vadd.f32 %v2195, %v2278
    %v2287 = vadd.f32 %v2197, %v2280
    %v2288 = vxor.u32 %v2284, 2147483648
    %v2289 = vxor.u32 %v2285, 2147483648
    %v2290 = vxor.u32 %v2286, 2147483648
    %v2291 = vmul.f32 %v2288, 1.442695
    %v2292 = vpow.pop %v2291
    %v2293 = vmul.f32 %v2289, 1.442695
    %v2294 = vpow.pop %v2293
    %v2295 = vmul.f32 %v2290, 1.442695
    %v2296 = vpow.pop %v2295
    %v2297 = vadd.f32 %v2292, 1.0
    %v2298 = vadd.f32 %v2294, 1.0
    %v2299 = vadd.f32 %v2296, 1.0
    %v2300 = vrcp.pop %v2297
    %v2301 = vmul.f32 1.0, %v2300
    %v2302 = vrcp.pop %v2298
    %v2303 = vmul.f32 1.0, %v2302
    %v2304 = vrcp.pop %v2299
    %v2305 = vmul.f32 1.0, %v2304
    %v2306 = vtanh.pop %v2287
    %v2307 = vmul.f32 %v2303, %v1987
    %v2308 = vmul.f32 %v2301, %v2306
    %v2309 = vadd.f32 %v2307, %v2308
    %v2310 = vtanh.pop %v2309
    %v2311 = vmul.f32 %v2305, %v2310
    %2312 = vmatprep.subr.bf16.mxu0 %v571
    %2313 = vmatpush1.bf16.msra.mxu0 %v570
    %2314 = vmatprep.subr.bf16.mxu0 %v575
    %2315 = vmatpush1.bf16.msra.mxu0 %v574
    %2316 = vmatprep.subr.bf16.mxu0 %v579
    %2317 = vmatpush1.bf16.msra.mxu0 %v578
    %2318 = vmatprep.subr.bf16.mxu0 %v583
    %2319 = vmatpush1.bf16.msra.mxu0 %v582
    %2320 = vmatprep.subr.bf16.mxu0 %v587
    %2321 = vmatpush1.bf16.msra.mxu0 %v586
    %2322 = vmatprep.subr.bf16.mxu0 %v591
    %2323 = vmatpush1.bf16.msra.mxu0 %v590
    %2324 = vmatprep.subr.bf16.mxu0 %v595
    %2325 = vmatpush1.bf16.msra.mxu0 %v594
    %2326 = vmatprep.subr.bf16.mxu0 %v599
    %2327 = vmatpush1.bf16.msra.mxu0 %v598
    %2328 = vmatprep.subr.bf16.mxu0 0
    %2329 = vmatpush1.bf16.msra.mxu0 0
    %2330 = vmatprep.subr.bf16.mxu0 0
    %2331 = vmatpush1.bf16.msra.mxu0 0
    %2332 = vmatprep.subr.bf16.mxu0 0
    %2333 = vmatpush1.bf16.msra.mxu0 0
    %2334 = vmatprep.subr.bf16.mxu0 0
    %2335 = vmatpush1.bf16.msra.mxu0 0
    %2336 = vmatprep.subr.bf16.mxu0 0
    %2337 = vmatpush1.bf16.msra.mxu0 0
    %2338 = vmatprep.subr.bf16.mxu0 0
    %2339 = vmatpush1.bf16.msra.mxu0 0
    %2340 = vmatprep.subr.bf16.mxu0 0
    %2341 = vmatpush1.bf16.msra.mxu0 0
    %2342 = vmatprep.subr.bf16.mxu0 0
    %2343 = vmatpush1.bf16.msra.mxu0 0
    %2344 = vmatprep.mubr.bf16.mxu0 0
    %2345 = vmatmul.mubr.bf16.gmra.mrb[0].mxu0 %v2117
    %v2346 = vpop.f32.mrb[0].mxu0
    %v2347 = vadd.f32 0.0, %v2346
    %v2348 = vpop.f32.mrb[0].mxu0
    %v2349 = vadd.f32 0.0, %v2348
    %v2350 = vpop.f32.mrb[0].mxu0
    %v2351 = vpop.f32.mrb[0].mxu0
    %2352 = vdwg.mxu0
    %2353 = vmatprep.subr.bf16.mxu0 %v573
    %2354 = vmatpush1.bf16.msra.mxu0 %v572
    %2355 = vmatprep.subr.bf16.mxu0 %v577
    %2356 = vmatpush1.bf16.msra.mxu0 %v576
    %2357 = vmatprep.subr.bf16.mxu0 %v581
    %2358 = vmatpush1.bf16.msra.mxu0 %v580
    %2359 = vmatprep.subr.bf16.mxu0 %v585
    %2360 = vmatpush1.bf16.msra.mxu0 %v584
    %2361 = vmatprep.subr.bf16.mxu0 %v589
    %2362 = vmatpush1.bf16.msra.mxu0 %v588
    %2363 = vmatprep.subr.bf16.mxu0 %v593
    %2364 = vmatpush1.bf16.msra.mxu0 %v592
    %2365 = vmatprep.subr.bf16.mxu0 %v597
    %2366 = vmatpush1.bf16.msra.mxu0 %v596
    %2367 = vmatprep.subr.bf16.mxu0 %v601
    %2368 = vmatpush1.bf16.msra.mxu0 %v600
    %2369 = vmatprep.subr.bf16.mxu0 0
    %2370 = vmatpush1.bf16.msra.mxu0 0
    %2371 = vmatprep.subr.bf16.mxu0 0
    %2372 = vmatpush1.bf16.msra.mxu0 0
    %2373 = vmatprep.subr.bf16.mxu0 0
    %2374 = vmatpush1.bf16.msra.mxu0 0
    %2375 = vmatprep.subr.bf16.mxu0 0
    %2376 = vmatpush1.bf16.msra.mxu0 0
    %2377 = vmatprep.subr.bf16.mxu0 0
    %2378 = vmatpush1.bf16.msra.mxu0 0
    %2379 = vmatprep.subr.bf16.mxu0 0
    %2380 = vmatpush1.bf16.msra.mxu0 0
    %2381 = vmatprep.subr.bf16.mxu0 0
    %2382 = vmatpush1.bf16.msra.mxu0 0
    %2383 = vmatprep.subr.bf16.mxu0 0
    %2384 = vmatpush1.bf16.msra.mxu0 0
    %2385 = vmatprep.mubr.bf16.mxu0 0
    %2386 = vmatmul.mubr.bf16.gmra.mrb[0].mxu0 %v2117
    %v2387 = vpop.f32.mrb[0].mxu0
    %v2388 = vadd.f32 0.0, %v2387
    %v2389 = vpop.f32.mrb[0].mxu0
    %v2390 = vadd.f32 0.0, %v2389
    %v2391 = vpop.f32.mrb[0].mxu0
    %v2392 = vpop.f32.mrb[0].mxu0
    %2393 = vdwg.mxu0
    %v2394 = vadd.f32 %v395, %v2347
    %v2395 = vadd.f32 %v397, %v2349
    %v2396 = vadd.f32 %v438, %v2388
    %v2397 = vadd.f32 %v440, %v2390
    %v2398 = vxor.u32 %v2394, 2147483648
    %v2399 = vxor.u32 %v2395, 2147483648
    %v2400 = vxor.u32 %v2396, 2147483648
    %v2401 = vmul.f32 %v2398, 1.442695
    %v2402 = vpow.pop %v2401
    %v2403 = vmul.f32 %v2399, 1.442695
    %v2404 = vpow.pop %v2403
    %v2405 = vmul.f32 %v2400, 1.442695
    %v2406 = vpow.pop %v2405
    %v2407 = vadd.f32 %v2402, 1.0
    %v2408 = vadd.f32 %v2404, 1.0
    %v2409 = vadd.f32 %v2406, 1.0
    %v2410 = vrcp.pop %v2407
    %v2411 = vmul.f32 1.0, %v2410
    %v2412 = vrcp.pop %v2408
    %v2413 = vmul.f32 1.0, %v2412
    %v2414 = vrcp.pop %v2409
    %v2415 = vmul.f32 1.0, %v2414
    %v2416 = vtanh.pop %v2397
    %v2418 = vrot.slane %v2112, 6
    %v2420 = vmul.f32 %v2413, %v2418
    %v2421 = vmul.f32 %v2411, %v2416
    %v2422 = vadd.f32 %v2420, %v2421
    %v2423 = vtanh.pop %v2422
    %v2424 = vmul.f32 %v2415, %v2423
    %v2425 = vpack.c.bf16 %v2424, %v2424
    %2426 = vmatprep.subr.bf16.mxu0 %v898
    %2427 = vmatpush1.bf16.msra.mxu0 %v897
    %2428 = vmatprep.subr.bf16.mxu0 %v902
    %2429 = vmatpush1.bf16.msra.mxu0 %v901
    %2430 = vmatprep.subr.bf16.mxu0 %v906
    %2431 = vmatpush1.bf16.msra.mxu0 %v905
    %2432 = vmatprep.subr.bf16.mxu0 %v910
    %2433 = vmatpush1.bf16.msra.mxu0 %v909
    %2434 = vmatprep.subr.bf16.mxu0 %v914
    %2435 = vmatpush1.bf16.msra.mxu0 %v913
    %2436 = vmatprep.subr.bf16.mxu0 %v918
    %2437 = vmatpush1.bf16.msra.mxu0 %v917
    %2438 = vmatprep.subr.bf16.mxu0 %v922
    %2439 = vmatpush1.bf16.msra.mxu0 %v921
    %2440 = vmatprep.subr.bf16.mxu0 %v926
    %2441 = vmatpush1.bf16.msra.mxu0 %v925
    %2442 = vmatprep.subr.bf16.mxu0 0
    %2443 = vmatpush1.bf16.msra.mxu0 0
    %2444 = vmatprep.subr.bf16.mxu0 0
    %2445 = vmatpush1.bf16.msra.mxu0 0
    %2446 = vmatprep.subr.bf16.mxu0 0
    %2447 = vmatpush1.bf16.msra.mxu0 0
    %2448 = vmatprep.subr.bf16.mxu0 0
    %2449 = vmatpush1.bf16.msra.mxu0 0
    %2450 = vmatprep.subr.bf16.mxu0 0
    %2451 = vmatpush1.bf16.msra.mxu0 0
    %2452 = vmatprep.subr.bf16.mxu0 0
    %2453 = vmatpush1.bf16.msra.mxu0 0
    %2454 = vmatprep.subr.bf16.mxu0 0
    %2455 = vmatpush1.bf16.msra.mxu0 0
    %2456 = vmatprep.subr.bf16.mxu0 0
    %2457 = vmatpush1.bf16.msra.mxu0 0
    %2458 = vmatprep.mubr.bf16.mxu0 0
    %2459 = vmatmul.mubr.bf16.gmra.mrb[0].mxu0 %v2425
    %v2460 = vpop.f32.mrb[0].mxu0
    %v2461 = vadd.f32 %v784, %v2460
    %v2462 = vpop.f32.mrb[0].mxu0
    %v2463 = vadd.f32 %v788, %v2462
    %v2464 = vpop.f32.mrb[0].mxu0
    %v2465 = vpop.f32.mrb[0].mxu0
    %2466 = vdwg.mxu0
    %2467 = vmatprep.subr.bf16.mxu0 %v900
    %2468 = vmatpush1.bf16.msra.mxu0 %v899
    %2469 = vmatprep.subr.bf16.mxu0 %v904
    %2470 = vmatpush1.bf16.msra.mxu0 %v903
    %2471 = vmatprep.subr.bf16.mxu0 %v908
    %2472 = vmatpush1.bf16.msra.mxu0 %v907
    %2473 = vmatprep.subr.bf16.mxu0 %v912
    %2474 = vmatpush1.bf16.msra.mxu0 %v911
    %2475 = vmatprep.subr.bf16.mxu0 %v916
    %2476 = vmatpush1.bf16.msra.mxu0 %v915
    %2477 = vmatprep.subr.bf16.mxu0 %v920
    %2478 = vmatpush1.bf16.msra.mxu0 %v919
    %2479 = vmatprep.subr.bf16.mxu0 %v924
    %2480 = vmatpush1.bf16.msra.mxu0 %v923
    %2481 = vmatprep.subr.bf16.mxu0 %v928
    %2482 = vmatpush1.bf16.msra.mxu0 %v927
    %2483 = vmatprep.subr.bf16.mxu0 0
    %2484 = vmatpush1.bf16.msra.mxu0 0
    %2485 = vmatprep.subr.bf16.mxu0 0
    %2486 = vmatpush1.bf16.msra.mxu0 0
    %2487 = vmatprep.subr.bf16.mxu0 0
    %2488 = vmatpush1.bf16.msra.mxu0 0
    %2489 = vmatprep.subr.bf16.mxu0 0
    %2490 = vmatpush1.bf16.msra.mxu0 0
    %2491 = vmatprep.subr.bf16.mxu0 0
    %2492 = vmatpush1.bf16.msra.mxu0 0
    %2493 = vmatprep.subr.bf16.mxu0 0
    %2494 = vmatpush1.bf16.msra.mxu0 0
    %2495 = vmatprep.subr.bf16.mxu0 0
    %2496 = vmatpush1.bf16.msra.mxu0 0
    %2497 = vmatprep.subr.bf16.mxu0 0
    %2498 = vmatpush1.bf16.msra.mxu0 0
    %2499 = vmatprep.mubr.bf16.mxu0 0
    %2500 = vmatmul.mubr.bf16.gmra.mrb[0].mxu0 %v2425
    %v2501 = vpop.f32.mrb[0].mxu0
    %v2502 = vadd.f32 %v792, %v2501
    %v2503 = vpop.f32.mrb[0].mxu0
    %v2504 = vadd.f32 %v796, %v2503
    %v2505 = vpop.f32.mrb[0].mxu0
    %v2506 = vpop.f32.mrb[0].mxu0
    %2507 = vdwg.mxu0
    %v2508 = vpack.c.bf16 %v2311, %v2311
    %2509 = vmatprep.subr.bf16.mxu0 %v1173
    %2510 = vmatpush1.bf16.msra.mxu0 %v1172
    %2511 = vmatprep.subr.bf16.mxu0 %v1177
    %2512 = vmatpush1.bf16.msra.mxu0 %v1176
    %2513 = vmatprep.subr.bf16.mxu0 %v1181
    %2514 = vmatpush1.bf16.msra.mxu0 %v1180
    %2515 = vmatprep.subr.bf16.mxu0 %v1185
    %2516 = vmatpush1.bf16.msra.mxu0 %v1184
    %2517 = vmatprep.subr.bf16.mxu0 %v1189
    %2518 = vmatpush1.bf16.msra.mxu0 %v1188
    %2519 = vmatprep.subr.bf16.mxu0 %v1193
    %2520 = vmatpush1.bf16.msra.mxu0 %v1192
    %2521 = vmatprep.subr.bf16.mxu0 %v1197
    %2522 = vmatpush1.bf16.msra.mxu0 %v1196
    %2523 = vmatprep.subr.bf16.mxu0 %v1201
    %2524 = vmatpush1.bf16.msra.mxu0 %v1200
    %2525 = vmatprep.subr.bf16.mxu0 0
    %2526 = vmatpush1.bf16.msra.mxu0 0
    %2527 = vmatprep.subr.bf16.mxu0 0
    %2528 = vmatpush1.bf16.msra.mxu0 0
    %2529 = vmatprep.subr.bf16.mxu0 0
    %2530 = vmatpush1.bf16.msra.mxu0 0
    %2531 = vmatprep.subr.bf16.mxu0 0
    %2532 = vmatpush1.bf16.msra.mxu0 0
    %2533 = vmatprep.subr.bf16.mxu0 0
    %2534 = vmatpush1.bf16.msra.mxu0 0
    %2535 = vmatprep.subr.bf16.mxu0 0
    %2536 = vmatpush1.bf16.msra.mxu0 0
    %2537 = vmatprep.subr.bf16.mxu0 0
    %2538 = vmatpush1.bf16.msra.mxu0 0
    %2539 = vmatprep.subr.bf16.mxu0 0
    %2540 = vmatpush1.bf16.msra.mxu0 0
    %2541 = vmatprep.mubr.bf16.mxu0 0
    %2542 = vmatmul.mubr.bf16.gmra.mrb[0].mxu0 %v2508
    %v2543 = vpop.f32.mrb[0].mxu0
    %v2544 = vadd.f32 0.0, %v2543
    %v2545 = vpop.f32.mrb[0].mxu0
    %v2546 = vadd.f32 0.0, %v2545
    %v2547 = vpop.f32.mrb[0].mxu0
    %v2548 = vpop.f32.mrb[0].mxu0
    %2549 = vdwg.mxu0
    %2550 = vmatprep.subr.bf16.mxu0 %v1175
    %2551 = vmatpush1.bf16.msra.mxu0 %v1174
    %2552 = vmatprep.subr.bf16.mxu0 %v1179
    %2553 = vmatpush1.bf16.msra.mxu0 %v1178
    %2554 = vmatprep.subr.bf16.mxu0 %v1183
    %2555 = vmatpush1.bf16.msra.mxu0 %v1182
    %2556 = vmatprep.subr.bf16.mxu0 %v1187
    %2557 = vmatpush1.bf16.msra.mxu0 %v1186
    %2558 = vmatprep.subr.bf16.mxu0 %v1191
    %2559 = vmatpush1.bf16.msra.mxu0 %v1190
    %2560 = vmatprep.subr.bf16.mxu0 %v1195
    %2561 = vmatpush1.bf16.msra.mxu0 %v1194
    %2562 = vmatprep.subr.bf16.mxu0 %v1199
    %2563 = vmatpush1.bf16.msra.mxu0 %v1198
    %2564 = vmatprep.subr.bf16.mxu0 %v1203
    %2565 = vmatpush1.bf16.msra.mxu0 %v1202
    %2566 = vmatprep.subr.bf16.mxu0 0
    %2567 = vmatpush1.bf16.msra.mxu0 0
    %2568 = vmatprep.subr.bf16.mxu0 0
    %2569 = vmatpush1.bf16.msra.mxu0 0
    %2570 = vmatprep.subr.bf16.mxu0 0
    %2571 = vmatpush1.bf16.msra.mxu0 0
    %2572 = vmatprep.subr.bf16.mxu0 0
    %2573 = vmatpush1.bf16.msra.mxu0 0
    %2574 = vmatprep.subr.bf16.mxu0 0
    %2575 = vmatpush1.bf16.msra.mxu0 0
    %2576 = vmatprep.subr.bf16.mxu0 0
    %2577 = vmatpush1.bf16.msra.mxu0 0
    %2578 = vmatprep.subr.bf16.mxu0 0
    %2579 = vmatpush1.bf16.msra.mxu0 0
    %2580 = vmatprep.subr.bf16.mxu0 0
    %2581 = vmatpush1.bf16.msra.mxu0 0
    %2582 = vmatprep.mubr.bf16.mxu0 0
    %2583 = vmatmul.mubr.bf16.gmra.mrb[0].mxu0 %v2508
    %v2584 = vpop.f32.mrb[0].mxu0
    %v2585 = vadd.f32 0.0, %v2584
    %v2586 = vpop.f32.mrb[0].mxu0
    %v2587 = vadd.f32 0.0, %v2586
    %v2588 = vpop.f32.mrb[0].mxu0
    %v2589 = vpop.f32.mrb[0].mxu0
    %2590 = vdwg.mxu0
    %v2591 = vadd.f32 %v2461, %v2544
    %v2592 = vadd.f32 %v2463, %v2546
    %v2593 = vadd.f32 %v2502, %v2585
    %v2594 = vadd.f32 %v2504, %v2587
    %v2595 = vxor.u32 %v2591, 2147483648
    %v2596 = vxor.u32 %v2592, 2147483648
    %v2597 = vxor.u32 %v2593, 2147483648
    %v2598 = vmul.f32 %v2595, 1.442695
    %v2599 = vpow.pop %v2598
    %v2600 = vmul.f32 %v2596, 1.442695
    %v2601 = vpow.pop %v2600
    %v2602 = vmul.f32 %v2597, 1.442695
    %v2603 = vpow.pop %v2602
    %v2604 = vadd.f32 %v2599, 1.0
    %v2605 = vadd.f32 %v2601, 1.0
    %v2606 = vadd.f32 %v2603, 1.0
    %v2607 = vrcp.pop %v2604
    %v2608 = vmul.f32 1.0, %v2607
    %v2609 = vrcp.pop %v2605
    %v2610 = vmul.f32 1.0, %v2609
    %v2611 = vrcp.pop %v2606
    %v2612 = vmul.f32 1.0, %v2611
    %v2613 = vtanh.pop %v2594
    %v2614 = vmul.f32 %v2610, %v2309
    %v2615 = vmul.f32 %v2608, %v2613
    %v2616 = vadd.f32 %v2614, %v2615
    %v2617 = vtanh.pop %v2616
    %v2618 = vmul.f32 %v2612, %v2617
    %2619 = vmatprep.subr.bf16.mxu0 %v571
    %2620 = vmatpush1.bf16.msra.mxu0 %v570
    %2621 = vmatprep.subr.bf16.mxu0 %v575
    %2622 = vmatpush1.bf16.msra.mxu0 %v574
    %2623 = vmatprep.subr.bf16.mxu0 %v579
    %2624 = vmatpush1.bf16.msra.mxu0 %v578
    %2625 = vmatprep.subr.bf16.mxu0 %v583
    %2626 = vmatpush1.bf16.msra.mxu0 %v582
    %2627 = vmatprep.subr.bf16.mxu0 %v587
    %2628 = vmatpush1.bf16.msra.mxu0 %v586
    %2629 = vmatprep.subr.bf16.mxu0 %v591
    %2630 = vmatpush1.bf16.msra.mxu0 %v590
    %2631 = vmatprep.subr.bf16.mxu0 %v595
    %2632 = vmatpush1.bf16.msra.mxu0 %v594
    %2633 = vmatprep.subr.bf16.mxu0 %v599
    %2634 = vmatpush1.bf16.msra.mxu0 %v598
    %2635 = vmatprep.subr.bf16.mxu0 0
    %2636 = vmatpush1.bf16.msra.mxu0 0
    %2637 = vmatprep.subr.bf16.mxu0 0
    %2638 = vmatpush1.bf16.msra.mxu0 0
    %2639 = vmatprep.subr.bf16.mxu0 0
    %2640 = vmatpush1.bf16.msra.mxu0 0
    %2641 = vmatprep.subr.bf16.mxu0 0
    %2642 = vmatpush1.bf16.msra.mxu0 0
    %2643 = vmatprep.subr.bf16.mxu0 0
    %2644 = vmatpush1.bf16.msra.mxu0 0
    %2645 = vmatprep.subr.bf16.mxu0 0
    %2646 = vmatpush1.bf16.msra.mxu0 0
    %2647 = vmatprep.subr.bf16.mxu0 0
    %2648 = vmatpush1.bf16.msra.mxu0 0
    %2649 = vmatprep.subr.bf16.mxu0 0
    %2650 = vmatpush1.bf16.msra.mxu0 0
    %2651 = vmatprep.mubr.bf16.mxu0 0
    %2652 = vmatmul.mubr.bf16.gmra.mrb[0].mxu0 %v2425
    %v2653 = vpop.f32.mrb[0].mxu0
    %v2654 = vadd.f32 0.0, %v2653
    %v2655 = vpop.f32.mrb[0].mxu0
    %v2656 = vadd.f32 0.0, %v2655
    %v2657 = vpop.f32.mrb[0].mxu0
    %v2658 = vpop.f32.mrb[0].mxu0
    %2659 = vdwg.mxu0
    %2660 = vmatprep.subr.bf16.mxu0 %v573
    %2661 = vmatpush1.bf16.msra.mxu0 %v572
    %2662 = vmatprep.subr.bf16.mxu0 %v577
    %2663 = vmatpush1.bf16.msra.mxu0 %v576
    %2664 = vmatprep.subr.bf16.mxu0 %v581
    %2665 = vmatpush1.bf16.msra.mxu0 %v580
    %2666 = vmatprep.subr.bf16.mxu0 %v585
    %2667 = vmatpush1.bf16.msra.mxu0 %v584
    %2668 = vmatprep.subr.bf16.mxu0 %v589
    %2669 = vmatpush1.bf16.msra.mxu0 %v588
    %2670 = vmatprep.subr.bf16.mxu0 %v593
    %2671 = vmatpush1.bf16.msra.mxu0 %v592
    %2672 = vmatprep.subr.bf16.mxu0 %v597
    %2673 = vmatpush1.bf16.msra.mxu0 %v596
    %2674 = vmatprep.subr.bf16.mxu0 %v601
    %2675 = vmatpush1.bf16.msra.mxu0 %v600
    %2676 = vmatprep.subr.bf16.mxu0 0
    %2677 = vmatpush1.bf16.msra.mxu0 0
    %2678 = vmatprep.subr.bf16.mxu0 0
    %2679 = vmatpush1.bf16.msra.mxu0 0
    %2680 = vmatprep.subr.bf16.mxu0 0
    %2681 = vmatpush1.bf16.msra.mxu0 0
    %2682 = vmatprep.subr.bf16.mxu0 0
    %2683 = vmatpush1.bf16.msra.mxu0 0
    %2684 = vmatprep.subr.bf16.mxu0 0
    %2685 = vmatpush1.bf16.msra.mxu0 0
    %2686 = vmatprep.subr.bf16.mxu0 0
    %2687 = vmatpush1.bf16.msra.mxu0 0
    %2688 = vmatprep.subr.bf16.mxu0 0
    %2689 = vmatpush1.bf16.msra.mxu0 0
    %2690 = vmatprep.subr.bf16.mxu0 0
    %2691 = vmatpush1.bf16.msra.mxu0 0
    %2692 = vmatprep.mubr.bf16.mxu0 0
    %2693 = vmatmul.mubr.bf16.gmra.mrb[0].mxu0 %v2425
    %v2694 = vpop.f32.mrb[0].mxu0
    %v2695 = vadd.f32 0.0, %v2694
    %v2696 = vpop.f32.mrb[0].mxu0
    %v2697 = vadd.f32 0.0, %v2696
    %v2698 = vpop.f32.mrb[0].mxu0
    %v2699 = vpop.f32.mrb[0].mxu0
    %2700 = vdwg.mxu0
    %v2705 = vrot.slane %v2654, 6
    %v2706 = vrot.slane %v2656, 6
    %v2707 = vrot.slane %v2695, 6
    %v2708 = vrot.slane %v2697, 6
    %v2713 = vadd.f32 %v395, %v2705
    %v2714 = vadd.f32 %v397, %v2706
    %v2715 = vadd.f32 %v438, %v2707
    %v2716 = vadd.f32 %v440, %v2708
    %v2717 = vxor.u32 %v2713, 2147483648
    %v2718 = vxor.u32 %v2714, 2147483648
    %v2719 = vxor.u32 %v2715, 2147483648
    %v2720 = vmul.f32 %v2717, 1.442695
    %v2721 = vpow.pop %v2720
    %v2722 = vmul.f32 %v2718, 1.442695
    %v2723 = vpow.pop %v2722
    %v2724 = vmul.f32 %v2719, 1.442695
    %v2725 = vpow.pop %v2724
    %v2726 = vadd.f32 %v2721, 1.0
    %v2727 = vadd.f32 %v2723, 1.0
    %v2728 = vadd.f32 %v2725, 1.0
    %v2729 = vrcp.pop %v2726
    %v2730 = vmul.f32 1.0, %v2729
    %v2731 = vrcp.pop %v2727
    %v2732 = vmul.f32 1.0, %v2731
    %v2733 = vrcp.pop %v2728
    %v2734 = vmul.f32 1.0, %v2733
    %v2735 = vtanh.pop %v2716
    %v2737 = vrot.slane %v2422, 6
    %v2739 = vmul.f32 %v2732, %v2737
    %v2740 = vmul.f32 %v2730, %v2735
    %v2741 = vadd.f32 %v2739, %v2740
    %v2742 = vtanh.pop %v2741
    %v2743 = vmul.f32 %v2734, %v2742
    %v2744 = vpack.c.bf16 %v2743, %v2743
    %v2746 = vrot.slane %v2744, 1
    %2748 = vmatprep.subr.bf16.mxu0 %v898
    %2749 = vmatpush1.bf16.msra.mxu0 %v897
    %2750 = vmatprep.subr.bf16.mxu0 %v902
    %2751 = vmatpush1.bf16.msra.mxu0 %v901
    %2752 = vmatprep.subr.bf16.mxu0 %v906
    %2753 = vmatpush1.bf16.msra.mxu0 %v905
    %2754 = vmatprep.subr.bf16.mxu0 %v910
    %2755 = vmatpush1.bf16.msra.mxu0 %v909
    %2756 = vmatprep.subr.bf16.mxu0 %v914
    %2757 = vmatpush1.bf16.msra.mxu0 %v913
    %2758 = vmatprep.subr.bf16.mxu0 %v918
    %2759 = vmatpush1.bf16.msra.mxu0 %v917
    %2760 = vmatprep.subr.bf16.mxu0 %v922
    %2761 = vmatpush1.bf16.msra.mxu0 %v921
    %2762 = vmatprep.subr.bf16.mxu0 %v926
    %2763 = vmatpush1.bf16.msra.mxu0 %v925
    %2764 = vmatprep.subr.bf16.mxu0 0
    %2765 = vmatpush1.bf16.msra.mxu0 0
    %2766 = vmatprep.subr.bf16.mxu0 0
    %2767 = vmatpush1.bf16.msra.mxu0 0
    %2768 = vmatprep.subr.bf16.mxu0 0
    %2769 = vmatpush1.bf16.msra.mxu0 0
    %2770 = vmatprep.subr.bf16.mxu0 0
    %2771 = vmatpush1.bf16.msra.mxu0 0
    %2772 = vmatprep.subr.bf16.mxu0 0
    %2773 = vmatpush1.bf16.msra.mxu0 0
    %2774 = vmatprep.subr.bf16.mxu0 0
    %2775 = vmatpush1.bf16.msra.mxu0 0
    %2776 = vmatprep.subr.bf16.mxu0 0
    %2777 = vmatpush1.bf16.msra.mxu0 0
    %2778 = vmatprep.subr.bf16.mxu0 0
    %2779 = vmatpush1.bf16.msra.mxu0 0
    %2780 = vmatprep.mubr.bf16.mxu0 0
    %2781 = vmatmul.mubr.bf16.gmra.mrb[0].mxu0 %v2746
    %v2782 = vpop.f32.mrb[0].mxu0
    %v2783 = vadd.f32 %v784, %v2782
    %v2784 = vpop.f32.mrb[0].mxu0
    %v2785 = vadd.f32 %v788, %v2784
    %v2786 = vpop.f32.mrb[0].mxu0
    %v2787 = vpop.f32.mrb[0].mxu0
    %2788 = vdwg.mxu0
    %2789 = vmatprep.subr.bf16.mxu0 %v900
    %2790 = vmatpush1.bf16.msra.mxu0 %v899
    %2791 = vmatprep.subr.bf16.mxu0 %v904
    %2792 = vmatpush1.bf16.msra.mxu0 %v903
    %2793 = vmatprep.subr.bf16.mxu0 %v908
    %2794 = vmatpush1.bf16.msra.mxu0 %v907
    %2795 = vmatprep.subr.bf16.mxu0 %v912
    %2796 = vmatpush1.bf16.msra.mxu0 %v911
    %2797 = vmatprep.subr.bf16.mxu0 %v916
    %2798 = vmatpush1.bf16.msra.mxu0 %v915
    %2799 = vmatprep.subr.bf16.mxu0 %v920
    %2800 = vmatpush1.bf16.msra.mxu0 %v919
    %2801 = vmatprep.subr.bf16.mxu0 %v924
    %2802 = vmatpush1.bf16.msra.mxu0 %v923
    %2803 = vmatprep.subr.bf16.mxu0 %v928
    %2804 = vmatpush1.bf16.msra.mxu0 %v927
    %2805 = vmatprep.subr.bf16.mxu0 0
    %2806 = vmatpush1.bf16.msra.mxu0 0
    %2807 = vmatprep.subr.bf16.mxu0 0
    %2808 = vmatpush1.bf16.msra.mxu0 0
    %2809 = vmatprep.subr.bf16.mxu0 0
    %2810 = vmatpush1.bf16.msra.mxu0 0
    %2811 = vmatprep.subr.bf16.mxu0 0
    %2812 = vmatpush1.bf16.msra.mxu0 0
    %2813 = vmatprep.subr.bf16.mxu0 0
    %2814 = vmatpush1.bf16.msra.mxu0 0
    %2815 = vmatprep.subr.bf16.mxu0 0
    %2816 = vmatpush1.bf16.msra.mxu0 0
    %2817 = vmatprep.subr.bf16.mxu0 0
    %2818 = vmatpush1.bf16.msra.mxu0 0
    %2819 = vmatprep.subr.bf16.mxu0 0
    %2820 = vmatpush1.bf16.msra.mxu0 0
    %2821 = vmatprep.mubr.bf16.mxu0 0
    %2822 = vmatmul.mubr.bf16.gmra.mrb[0].mxu0 %v2746
    %v2823 = vpop.f32.mrb[0].mxu0
    %v2824 = vadd.f32 %v792, %v2823
    %v2825 = vpop.f32.mrb[0].mxu0
    %v2826 = vadd.f32 %v796, %v2825
    %v2827 = vpop.f32.mrb[0].mxu0
    %v2828 = vpop.f32.mrb[0].mxu0
    %2829 = vdwg.mxu0
    %v2830 = vpack.c.bf16 %v2618, %v2618
    %2831 = vmatprep.subr.bf16.mxu0 %v1173
    %2832 = vmatpush1.bf16.msra.mxu0 %v1172
    %2833 = vmatprep.subr.bf16.mxu0 %v1177
    %2834 = vmatpush1.bf16.msra.mxu0 %v1176
    %2835 = vmatprep.subr.bf16.mxu0 %v1181
    %2836 = vmatpush1.bf16.msra.mxu0 %v1180
    %2837 = vmatprep.subr.bf16.mxu0 %v1185
    %2838 = vmatpush1.bf16.msra.mxu0 %v1184
    %2839 = vmatprep.subr.bf16.mxu0 %v1189
    %2840 = vmatpush1.bf16.msra.mxu0 %v1188
    %2841 = vmatprep.subr.bf16.mxu0 %v1193
    %2842 = vmatpush1.bf16.msra.mxu0 %v1192
    %2843 = vmatprep.subr.bf16.mxu0 %v1197
    %2844 = vmatpush1.bf16.msra.mxu0 %v1196
    %2845 = vmatprep.subr.bf16.mxu0 %v1201
    %2846 = vmatpush1.bf16.msra.mxu0 %v1200
    %2847 = vmatprep.subr.bf16.mxu0 0
    %2848 = vmatpush1.bf16.msra.mxu0 0
    %2849 = vmatprep.subr.bf16.mxu0 0
    %2850 = vmatpush1.bf16.msra.mxu0 0
    %2851 = vmatprep.subr.bf16.mxu0 0
    %2852 = vmatpush1.bf16.msra.mxu0 0
    %2853 = vmatprep.subr.bf16.mxu0 0
    %2854 = vmatpush1.bf16.msra.mxu0 0
    %2855 = vmatprep.subr.bf16.mxu0 0
    %2856 = vmatpush1.bf16.msra.mxu0 0
    %2857 = vmatprep.subr.bf16.mxu0 0
    %2858 = vmatpush1.bf16.msra.mxu0 0
    %2859 = vmatprep.subr.bf16.mxu0 0
    %2860 = vmatpush1.bf16.msra.mxu0 0
    %2861 = vmatprep.subr.bf16.mxu0 0
    %2862 = vmatpush1.bf16.msra.mxu0 0
    %2863 = vmatprep.mubr.bf16.mxu0 0
    %2864 = vmatmul.mubr.bf16.gmra.mrb[0].mxu0 %v2830
    %v2865 = vpop.f32.mrb[0].mxu0
    %v2866 = vadd.f32 0.0, %v2865
    %v2867 = vpop.f32.mrb[0].mxu0
    %v2868 = vadd.f32 0.0, %v2867
    %v2869 = vpop.f32.mrb[0].mxu0
    %v2870 = vpop.f32.mrb[0].mxu0
    %2871 = vdwg.mxu0
    %2872 = vmatprep.subr.bf16.mxu0 %v1175
    %2873 = vmatpush1.bf16.msra.mxu0 %v1174
    %2874 = vmatprep.subr.bf16.mxu0 %v1179
    %2875 = vmatpush1.bf16.msra.mxu0 %v1178
    %2876 = vmatprep.subr.bf16.mxu0 %v1183
    %2877 = vmatpush1.bf16.msra.mxu0 %v1182
    %2878 = vmatprep.subr.bf16.mxu0 %v1187
    %2879 = vmatpush1.bf16.msra.mxu0 %v1186
    %2880 = vmatprep.subr.bf16.mxu0 %v1191
    %2881 = vmatpush1.bf16.msra.mxu0 %v1190
    %2882 = vmatprep.subr.bf16.mxu0 %v1195
    %2883 = vmatpush1.bf16.msra.mxu0 %v1194
    %2884 = vmatprep.subr.bf16.mxu0 %v1199
    %2885 = vmatpush1.bf16.msra.mxu0 %v1198
    %2886 = vmatprep.subr.bf16.mxu0 %v1203
    %2887 = vmatpush1.bf16.msra.mxu0 %v1202
    %2888 = vmatprep.subr.bf16.mxu0 0
    %2889 = vmatpush1.bf16.msra.mxu0 0
    %2890 = vmatprep.subr.bf16.mxu0 0
    %2891 = vmatpush1.bf16.msra.mxu0 0
    %2892 = vmatprep.subr.bf16.mxu0 0
    %2893 = vmatpush1.bf16.msra.mxu0 0
    %2894 = vmatprep.subr.bf16.mxu0 0
    %2895 = vmatpush1.bf16.msra.mxu0 0
    %2896 = vmatprep.subr.bf16.mxu0 0
    %2897 = vmatpush1.bf16.msra.mxu0 0
    %2898 = vmatprep.subr.bf16.mxu0 0
    %2899 = vmatpush1.bf16.msra.mxu0 0
    %2900 = vmatprep.subr.bf16.mxu0 0
    %2901 = vmatpush1.bf16.msra.mxu0 0
    %2902 = vmatprep.subr.bf16.mxu0 0
    %2903 = vmatpush1.bf16.msra.mxu0 0
    %2904 = vmatprep.mubr.bf16.mxu0 0
    %2905 = vmatmul.mubr.bf16.gmra.mrb[0].mxu0 %v2830
    %v2906 = vpop.f32.mrb[0].mxu0
    %v2907 = vadd.f32 0.0, %v2906
    %v2908 = vpop.f32.mrb[0].mxu0
    %v2909 = vadd.f32 0.0, %v2908
    %v2910 = vpop.f32.mrb[0].mxu0
    %v2911 = vpop.f32.mrb[0].mxu0
    %2912 = vdwg.mxu0
    %v2913 = vadd.f32 %v2783, %v2866
    %v2914 = vadd.f32 %v2785, %v2868
    %v2915 = vadd.f32 %v2824, %v2907
    %v2916 = vadd.f32 %v2826, %v2909
    %v2917 = vxor.u32 %v2913, 2147483648
    %v2918 = vxor.u32 %v2914, 2147483648
    %v2919 = vxor.u32 %v2915, 2147483648
    %v2920 = vmul.f32 %v2917, 1.442695
    %v2921 = vpow.pop %v2920
    %v2922 = vmul.f32 %v2918, 1.442695
    %v2923 = vpow.pop %v2922
    %v2924 = vmul.f32 %v2919, 1.442695
    %v2925 = vpow.pop %v2924
    %v2926 = vadd.f32 %v2921, 1.0
    %v2927 = vadd.f32 %v2923, 1.0
    %v2928 = vadd.f32 %v2925, 1.0
    %v2929 = vrcp.pop %v2926
    %v2930 = vmul.f32 1.0, %v2929
    %v2931 = vrcp.pop %v2927
    %v2932 = vmul.f32 1.0, %v2931
    %v2933 = vrcp.pop %v2928
    %v2934 = vmul.f32 1.0, %v2933
    %v2935 = vtanh.pop %v2916
    %v2936 = vmul.f32 %v2932, %v2616
    %v2937 = vmul.f32 %v2930, %v2935
    %v2938 = vadd.f32 %v2936, %v2937
    %v2939 = vtanh.pop %v2938
    %v2940 = vmul.f32 %v2934, %v2939
    %2941 = vmatprep.subr.bf16.mxu0 %v571
    %2942 = vmatpush1.bf16.msra.mxu0 %v570
    %2943 = vmatprep.subr.bf16.mxu0 %v575
    %2944 = vmatpush1.bf16.msra.mxu0 %v574
    %2945 = vmatprep.subr.bf16.mxu0 %v579
    %2946 = vmatpush1.bf16.msra.mxu0 %v578
    %2947 = vmatprep.subr.bf16.mxu0 %v583
    %2948 = vmatpush1.bf16.msra.mxu0 %v582
    %2949 = vmatprep.subr.bf16.mxu0 %v587
    %2950 = vmatpush1.bf16.msra.mxu0 %v586
    %2951 = vmatprep.subr.bf16.mxu0 %v591
    %2952 = vmatpush1.bf16.msra.mxu0 %v590
    %2953 = vmatprep.subr.bf16.mxu0 %v595
    %2954 = vmatpush1.bf16.msra.mxu0 %v594
    %2955 = vmatprep.subr.bf16.mxu0 %v599
    %2956 = vmatpush1.bf16.msra.mxu0 %v598
    %2957 = vmatprep.subr.bf16.mxu0 0
    %2958 = vmatpush1.bf16.msra.mxu0 0
    %2959 = vmatprep.subr.bf16.mxu0 0
    %2960 = vmatpush1.bf16.msra.mxu0 0
    %2961 = vmatprep.subr.bf16.mxu0 0
    %2962 = vmatpush1.bf16.msra.mxu0 0
    %2963 = vmatprep.subr.bf16.mxu0 0
    %2964 = vmatpush1.bf16.msra.mxu0 0
    %2965 = vmatprep.subr.bf16.mxu0 0
    %2966 = vmatpush1.bf16.msra.mxu0 0
    %2967 = vmatprep.subr.bf16.mxu0 0
    %2968 = vmatpush1.bf16.msra.mxu0 0
    %2969 = vmatprep.subr.bf16.mxu0 0
    %2970 = vmatpush1.bf16.msra.mxu0 0
    %2971 = vmatprep.subr.bf16.mxu0 0
    %2972 = vmatpush1.bf16.msra.mxu0 0
    %2973 = vmatprep.mubr.bf16.mxu0 0
    %2974 = vmatmul.mubr.bf16.gmra.mrb[0].mxu0 %v2746
    %v2975 = vpop.f32.mrb[0].mxu0
    %v2976 = vadd.f32 0.0, %v2975
    %v2977 = vpop.f32.mrb[0].mxu0
    %v2978 = vadd.f32 0.0, %v2977
    %v2979 = vpop.f32.mrb[0].mxu0
    %v2980 = vpop.f32.mrb[0].mxu0
    %2981 = vdwg.mxu0
    %2982 = vmatprep.subr.bf16.mxu0 %v573
    %2983 = vmatpush1.bf16.msra.mxu0 %v572
    %2984 = vmatprep.subr.bf16.mxu0 %v577
    %2985 = vmatpush1.bf16.msra.mxu0 %v576
    %2986 = vmatprep.subr.bf16.mxu0 %v581
    %2987 = vmatpush1.bf16.msra.mxu0 %v580
    %2988 = vmatprep.subr.bf16.mxu0 %v585
    %2989 = vmatpush1.bf16.msra.mxu0 %v584
    %2990 = vmatprep.subr.bf16.mxu0 %v589
    %2991 = vmatpush1.bf16.msra.mxu0 %v588
    %2992 = vmatprep.subr.bf16.mxu0 %v593
    %2993 = vmatpush1.bf16.msra.mxu0 %v592
    %2994 = vmatprep.subr.bf16.mxu0 %v597
    %2995 = vmatpush1.bf16.msra.mxu0 %v596
    %2996 = vmatprep.subr.bf16.mxu0 %v601
    %2997 = vmatpush1.bf16.msra.mxu0 %v600
    %2998 = vmatprep.subr.bf16.mxu0 0
    %2999 = vmatpush1.bf16.msra.mxu0 0
    %3000 = vmatprep.subr.bf16.mxu0 0
    %3001 = vmatpush1.bf16.msra.mxu0 0
    %3002 = vmatprep.subr.bf16.mxu0 0
    %3003 = vmatpush1.bf16.msra.mxu0 0
    %3004 = vmatprep.subr.bf16.mxu0 0
    %3005 = vmatpush1.bf16.msra.mxu0 0
    %3006 = vmatprep.subr.bf16.mxu0 0
    %3007 = vmatpush1.bf16.msra.mxu0 0
    %3008 = vmatprep.subr.bf16.mxu0 0
    %3009 = vmatpush1.bf16.msra.mxu0 0
    %3010 = vmatprep.subr.bf16.mxu0 0
    %3011 = vmatpush1.bf16.msra.mxu0 0
    %3012 = vmatprep.subr.bf16.mxu0 0
    %3013 = vmatpush1.bf16.msra.mxu0 0
    %3014 = vmatprep.mubr.bf16.mxu0 0
    %3015 = vmatmul.mubr.bf16.gmra.mrb[0].mxu0 %v2746
    %v3016 = vpop.f32.mrb[0].mxu0
    %v3017 = vadd.f32 0.0, %v3016
    %v3018 = vpop.f32.mrb[0].mxu0
    %v3019 = vadd.f32 0.0, %v3018
    %v3020 = vpop.f32.mrb[0].mxu0
    %v3021 = vpop.f32.mrb[0].mxu0
    %3022 = vdwg.mxu0
    %v3027 = vrot.slane %v2976, 4
    %v3028 = vrot.slane %v2978, 4
    %v3029 = vrot.slane %v3017, 4
    %v3030 = vrot.slane %v3019, 4
    %v3035 = vadd.f32 %v395, %v3027
    %v3036 = vadd.f32 %v397, %v3028
    %v3037 = vadd.f32 %v438, %v3029
    %v3038 = vadd.f32 %v440, %v3030
    %v3039 = vxor.u32 %v3035, 2147483648
    %v3040 = vxor.u32 %v3036, 2147483648
    %v3041 = vxor.u32 %v3037, 2147483648
    %v3042 = vmul.f32 %v3039, 1.442695
    %v3043 = vpow.pop %v3042
    %v3044 = vmul.f32 %v3040, 1.442695
    %v3045 = vpow.pop %v3044
    %v3046 = vmul.f32 %v3041, 1.442695
    %v3047 = vpow.pop %v3046
    %v3048 = vadd.f32 %v3043, 1.0
    %v3049 = vadd.f32 %v3045, 1.0
    %v3050 = vadd.f32 %v3047, 1.0
    %v3051 = vrcp.pop %v3048
    %v3052 = vmul.f32 1.0, %v3051
    %v3053 = vrcp.pop %v3049
    %v3054 = vmul.f32 1.0, %v3053
    %v3055 = vrcp.pop %v3050
    %v3056 = vmul.f32 1.0, %v3055
    %v3057 = vtanh.pop %v3038
    %v3059 = vrot.slane %v2741, 6
    %v3061 = vmul.f32 %v3054, %v3059
    %v3062 = vmul.f32 %v3052, %v3057
    %v3063 = vadd.f32 %v3061, %v3062
    %v3064 = vtanh.pop %v3063
    %v3065 = vmul.f32 %v3056, %v3064
    %v3066 = vpack.c.bf16 %v3065, %v3065
    %v3068 = vrot.slane %v3066, 2
    %3070 = vmatprep.subr.bf16.mxu0 %v898
    %3071 = vmatpush1.bf16.msra.mxu0 %v897
    %3072 = vmatprep.subr.bf16.mxu0 %v902
    %3073 = vmatpush1.bf16.msra.mxu0 %v901
    %3074 = vmatprep.subr.bf16.mxu0 %v906
    %3075 = vmatpush1.bf16.msra.mxu0 %v905
    %3076 = vmatprep.subr.bf16.mxu0 %v910
    %3077 = vmatpush1.bf16.msra.mxu0 %v909
    %3078 = vmatprep.subr.bf16.mxu0 %v914
    %3079 = vmatpush1.bf16.msra.mxu0 %v913
    %3080 = vmatprep.subr.bf16.mxu0 %v918
    %3081 = vmatpush1.bf16.msra.mxu0 %v917
    %3082 = vmatprep.subr.bf16.mxu0 %v922
    %3083 = vmatpush1.bf16.msra.mxu0 %v921
    %3084 = vmatprep.subr.bf16.mxu0 %v926
    %3085 = vmatpush1.bf16.msra.mxu0 %v925
    %3086 = vmatprep.subr.bf16.mxu0 0
    %3087 = vmatpush1.bf16.msra.mxu0 0
    %3088 = vmatprep.subr.bf16.mxu0 0
    %3089 = vmatpush1.bf16.msra.mxu0 0
    %3090 = vmatprep.subr.bf16.mxu0 0
    %3091 = vmatpush1.bf16.msra.mxu0 0
    %3092 = vmatprep.subr.bf16.mxu0 0
    %3093 = vmatpush1.bf16.msra.mxu0 0
    %3094 = vmatprep.subr.bf16.mxu0 0
    %3095 = vmatpush1.bf16.msra.mxu0 0
    %3096 = vmatprep.subr.bf16.mxu0 0
    %3097 = vmatpush1.bf16.msra.mxu0 0
    %3098 = vmatprep.subr.bf16.mxu0 0
    %3099 = vmatpush1.bf16.msra.mxu0 0
    %3100 = vmatprep.subr.bf16.mxu0 0
    %3101 = vmatpush1.bf16.msra.mxu0 0
    %3102 = vmatprep.mubr.bf16.mxu0 0
    %3103 = vmatmul.mubr.bf16.gmra.mrb[0].mxu0 %v3068
    %v3104 = vpop.f32.mrb[0].mxu0
    %v3105 = vadd.f32 %v784, %v3104
    %v3106 = vpop.f32.mrb[0].mxu0
    %v3107 = vadd.f32 %v788, %v3106
    %v3108 = vpop.f32.mrb[0].mxu0
    %v3109 = vpop.f32.mrb[0].mxu0
    %3110 = vdwg.mxu0
    %3111 = vmatprep.subr.bf16.mxu0 %v900
    %3112 = vmatpush1.bf16.msra.mxu0 %v899
    %3113 = vmatprep.subr.bf16.mxu0 %v904
    %3114 = vmatpush1.bf16.msra.mxu0 %v903
    %3115 = vmatprep.subr.bf16.mxu0 %v908
    %3116 = vmatpush1.bf16.msra.mxu0 %v907
    %3117 = vmatprep.subr.bf16.mxu0 %v912
    %3118 = vmatpush1.bf16.msra.mxu0 %v911
    %3119 = vmatprep.subr.bf16.mxu0 %v916
    %3120 = vmatpush1.bf16.msra.mxu0 %v915
    %3121 = vmatprep.subr.bf16.mxu0 %v920
    %3122 = vmatpush1.bf16.msra.mxu0 %v919
    %3123 = vmatprep.subr.bf16.mxu0 %v924
    %3124 = vmatpush1.bf16.msra.mxu0 %v923
    %3125 = vmatprep.subr.bf16.mxu0 %v928
    %3126 = vmatpush1.bf16.msra.mxu0 %v927
    %3127 = vmatprep.subr.bf16.mxu0 0
    %3128 = vmatpush1.bf16.msra.mxu0 0
    %3129 = vmatprep.subr.bf16.mxu0 0
    %3130 = vmatpush1.bf16.msra.mxu0 0
    %3131 = vmatprep.subr.bf16.mxu0 0
    %3132 = vmatpush1.bf16.msra.mxu0 0
    %3133 = vmatprep.subr.bf16.mxu0 0
    %3134 = vmatpush1.bf16.msra.mxu0 0
    %3135 = vmatprep.subr.bf16.mxu0 0
    %3136 = vmatpush1.bf16.msra.mxu0 0
    %3137 = vmatprep.subr.bf16.mxu0 0
    %3138 = vmatpush1.bf16.msra.mxu0 0
    %3139 = vmatprep.subr.bf16.mxu0 0
    %3140 = vmatpush1.bf16.msra.mxu0 0
    %3141 = vmatprep.subr.bf16.mxu0 0
    %3142 = vmatpush1.bf16.msra.mxu0 0
    %3143 = vmatprep.mubr.bf16.mxu0 0
    %3144 = vmatmul.mubr.bf16.gmra.mrb[0].mxu0 %v3068
    %v3145 = vpop.f32.mrb[0].mxu0
    %v3146 = vadd.f32 %v792, %v3145
    %v3147 = vpop.f32.mrb[0].mxu0
    %v3148 = vadd.f32 %v796, %v3147
    %v3149 = vpop.f32.mrb[0].mxu0
    %v3150 = vpop.f32.mrb[0].mxu0
    %3151 = vdwg.mxu0
    %v3152 = vpack.c.bf16 %v2940, %v2940
    %3153 = vmatprep.subr.bf16.mxu0 %v1173
    %3154 = vmatpush1.bf16.msra.mxu0 %v1172
    %3155 = vmatprep.subr.bf16.mxu0 %v1177
    %3156 = vmatpush1.bf16.msra.mxu0 %v1176
    %3157 = vmatprep.subr.bf16.mxu0 %v1181
    %3158 = vmatpush1.bf16.msra.mxu0 %v1180
    %3159 = vmatprep.subr.bf16.mxu0 %v1185
    %3160 = vmatpush1.bf16.msra.mxu0 %v1184
    %3161 = vmatprep.subr.bf16.mxu0 %v1189
    %3162 = vmatpush1.bf16.msra.mxu0 %v1188
    %3163 = vmatprep.subr.bf16.mxu0 %v1193
    %3164 = vmatpush1.bf16.msra.mxu0 %v1192
    %3165 = vmatprep.subr.bf16.mxu0 %v1197
    %3166 = vmatpush1.bf16.msra.mxu0 %v1196
    %3167 = vmatprep.subr.bf16.mxu0 %v1201
    %3168 = vmatpush1.bf16.msra.mxu0 %v1200
    %3169 = vmatprep.subr.bf16.mxu0 0
    %3170 = vmatpush1.bf16.msra.mxu0 0
    %3171 = vmatprep.subr.bf16.mxu0 0
    %3172 = vmatpush1.bf16.msra.mxu0 0
    %3173 = vmatprep.subr.bf16.mxu0 0
    %3174 = vmatpush1.bf16.msra.mxu0 0
    %3175 = vmatprep.subr.bf16.mxu0 0
    %3176 = vmatpush1.bf16.msra.mxu0 0
    %3177 = vmatprep.subr.bf16.mxu0 0
    %3178 = vmatpush1.bf16.msra.mxu0 0
    %3179 = vmatprep.subr.bf16.mxu0 0
    %3180 = vmatpush1.bf16.msra.mxu0 0
    %3181 = vmatprep.subr.bf16.mxu0 0
    %3182 = vmatpush1.bf16.msra.mxu0 0
    %3183 = vmatprep.subr.bf16.mxu0 0
    %3184 = vmatpush1.bf16.msra.mxu0 0
    %3185 = vmatprep.mubr.bf16.mxu0 0
    %3186 = vmatmul.mubr.bf16.gmra.mrb[0].mxu0 %v3152
    %v3187 = vpop.f32.mrb[0].mxu0
    %v3188 = vadd.f32 0.0, %v3187
    %v3189 = vpop.f32.mrb[0].mxu0
    %v3190 = vadd.f32 0.0, %v3189
    %v3191 = vpop.f32.mrb[0].mxu0
    %v3192 = vpop.f32.mrb[0].mxu0
    %3193 = vdwg.mxu0
    %3194 = vmatprep.subr.bf16.mxu0 %v1175
    %3195 = vmatpush1.bf16.msra.mxu0 %v1174
    %3196 = vmatprep.subr.bf16.mxu0 %v1179
    %3197 = vmatpush1.bf16.msra.mxu0 %v1178
    %3198 = vmatprep.subr.bf16.mxu0 %v1183
    %3199 = vmatpush1.bf16.msra.mxu0 %v1182
    %3200 = vmatprep.subr.bf16.mxu0 %v1187
    %3201 = vmatpush1.bf16.msra.mxu0 %v1186
    %3202 = vmatprep.subr.bf16.mxu0 %v1191
    %3203 = vmatpush1.bf16.msra.mxu0 %v1190
    %3204 = vmatprep.subr.bf16.mxu0 %v1195
    %3205 = vmatpush1.bf16.msra.mxu0 %v1194
    %3206 = vmatprep.subr.bf16.mxu0 %v1199
    %3207 = vmatpush1.bf16.msra.mxu0 %v1198
    %3208 = vmatprep.subr.bf16.mxu0 %v1203
    %3209 = vmatpush1.bf16.msra.mxu0 %v1202
    %3210 = vmatprep.subr.bf16.mxu0 0
    %3211 = vmatpush1.bf16.msra.mxu0 0
    %3212 = vmatprep.subr.bf16.mxu0 0
    %3213 = vmatpush1.bf16.msra.mxu0 0
    %3214 = vmatprep.subr.bf16.mxu0 0
    %3215 = vmatpush1.bf16.msra.mxu0 0
    %3216 = vmatprep.subr.bf16.mxu0 0
    %3217 = vmatpush1.bf16.msra.mxu0 0
    %3218 = vmatprep.subr.bf16.mxu0 0
    %3219 = vmatpush1.bf16.msra.mxu0 0
    %3220 = vmatprep.subr.bf16.mxu0 0
    %3221 = vmatpush1.bf16.msra.mxu0 0
    %3222 = vmatprep.subr.bf16.mxu0 0
    %3223 = vmatpush1.bf16.msra.mxu0 0
    %3224 = vmatprep.subr.bf16.mxu0 0
    %3225 = vmatpush1.bf16.msra.mxu0 0
    %3226 = vmatprep.mubr.bf16.mxu0 0
    %3227 = vmatmul.mubr.bf16.gmra.mrb[0].mxu0 %v3152
    %v3228 = vpop.f32.mrb[0].mxu0
    %v3229 = vadd.f32 0.0, %v3228
    %v3230 = vpop.f32.mrb[0].mxu0
    %v3231 = vadd.f32 0.0, %v3230
    %v3232 = vpop.f32.mrb[0].mxu0
    %v3233 = vpop.f32.mrb[0].mxu0
    %3234 = vdwg.mxu0
    %v3235 = vadd.f32 %v3105, %v3188
    %v3236 = vadd.f32 %v3107, %v3190
    %v3237 = vadd.f32 %v3146, %v3229
    %v3238 = vadd.f32 %v3148, %v3231
    %v3239 = vxor.u32 %v3235, 2147483648
    %v3240 = vxor.u32 %v3236, 2147483648
    %v3241 = vxor.u32 %v3237, 2147483648
    %v3242 = vmul.f32 %v3239, 1.442695
    %v3243 = vpow.pop %v3242
    %v3244 = vmul.f32 %v3240, 1.442695
    %v3245 = vpow.pop %v3244
    %v3246 = vmul.f32 %v3241, 1.442695
    %v3247 = vpow.pop %v3246
    %v3248 = vadd.f32 %v3243, 1.0
    %v3249 = vadd.f32 %v3245, 1.0
    %v3250 = vadd.f32 %v3247, 1.0
    %v3251 = vrcp.pop %v3248
    %v3252 = vmul.f32 1.0, %v3251
    %v3253 = vrcp.pop %v3249
    %v3254 = vmul.f32 1.0, %v3253
    %v3255 = vrcp.pop %v3250
    %v3256 = vmul.f32 1.0, %v3255
    %v3257 = vtanh.pop %v3238
    %v3258 = vmul.f32 %v3254, %v2938
    %v3259 = vmul.f32 %v3252, %v3257
    %v3260 = vadd.f32 %v3258, %v3259
    %v3261 = vtanh.pop %v3260
    %v3262 = vmul.f32 %v3256, %v3261
    %3263 = vmatprep.subr.bf16.mxu0 %v571
    %3264 = vmatpush1.bf16.msra.mxu0 %v570
    %3265 = vmatprep.subr.bf16.mxu0 %v575
    %3266 = vmatpush1.bf16.msra.mxu0 %v574
    %3267 = vmatprep.subr.bf16.mxu0 %v579
    %3268 = vmatpush1.bf16.msra.mxu0 %v578
    %3269 = vmatprep.subr.bf16.mxu0 %v583
    %3270 = vmatpush1.bf16.msra.mxu0 %v582
    %3271 = vmatprep.subr.bf16.mxu0 %v587
    %3272 = vmatpush1.bf16.msra.mxu0 %v586
    %3273 = vmatprep.subr.bf16.mxu0 %v591
    %3274 = vmatpush1.bf16.msra.mxu0 %v590
    %3275 = vmatprep.subr.bf16.mxu0 %v595
    %3276 = vmatpush1.bf16.msra.mxu0 %v594
    %3277 = vmatprep.subr.bf16.mxu0 %v599
    %3278 = vmatpush1.bf16.msra.mxu0 %v598
    %3279 = vmatprep.subr.bf16.mxu0 0
    %3280 = vmatpush1.bf16.msra.mxu0 0
    %3281 = vmatprep.subr.bf16.mxu0 0
    %3282 = vmatpush1.bf16.msra.mxu0 0
    %3283 = vmatprep.subr.bf16.mxu0 0
    %3284 = vmatpush1.bf16.msra.mxu0 0
    %3285 = vmatprep.subr.bf16.mxu0 0
    %3286 = vmatpush1.bf16.msra.mxu0 0
    %3287 = vmatprep.subr.bf16.mxu0 0
    %3288 = vmatpush1.bf16.msra.mxu0 0
    %3289 = vmatprep.subr.bf16.mxu0 0
    %3290 = vmatpush1.bf16.msra.mxu0 0
    %3291 = vmatprep.subr.bf16.mxu0 0
    %3292 = vmatpush1.bf16.msra.mxu0 0
    %3293 = vmatprep.subr.bf16.mxu0 0
    %3294 = vmatpush1.bf16.msra.mxu0 0
    %3295 = vmatprep.mubr.bf16.mxu0 0
    %3296 = vmatmul.mubr.bf16.gmra.mrb[0].mxu0 %v3068
    %v3297 = vpop.f32.mrb[0].mxu0
    %v3298 = vadd.f32 0.0, %v3297
    %v3299 = vpop.f32.mrb[0].mxu0
    %v3300 = vadd.f32 0.0, %v3299
    %v3301 = vpop.f32.mrb[0].mxu0
    %v3302 = vpop.f32.mrb[0].mxu0
    %3303 = vdwg.mxu0
    %3304 = vmatprep.subr.bf16.mxu0 %v573
    %3305 = vmatpush1.bf16.msra.mxu0 %v572
    %3306 = vmatprep.subr.bf16.mxu0 %v577
    %3307 = vmatpush1.bf16.msra.mxu0 %v576
    %3308 = vmatprep.subr.bf16.mxu0 %v581
    %3309 = vmatpush1.bf16.msra.mxu0 %v580
    %3310 = vmatprep.subr.bf16.mxu0 %v585
    %3311 = vmatpush1.bf16.msra.mxu0 %v584
    %3312 = vmatprep.subr.bf16.mxu0 %v589
    %3313 = vmatpush1.bf16.msra.mxu0 %v588
    %3314 = vmatprep.subr.bf16.mxu0 %v593
    %3315 = vmatpush1.bf16.msra.mxu0 %v592
    %3316 = vmatprep.subr.bf16.mxu0 %v597
    %3317 = vmatpush1.bf16.msra.mxu0 %v596
    %3318 = vmatprep.subr.bf16.mxu0 %v601
    %3319 = vmatpush1.bf16.msra.mxu0 %v600
    %3320 = vmatprep.subr.bf16.mxu0 0
    %3321 = vmatpush1.bf16.msra.mxu0 0
    %3322 = vmatprep.subr.bf16.mxu0 0
    %3323 = vmatpush1.bf16.msra.mxu0 0
    %3324 = vmatprep.subr.bf16.mxu0 0
    %3325 = vmatpush1.bf16.msra.mxu0 0
    %3326 = vmatprep.subr.bf16.mxu0 0
    %3327 = vmatpush1.bf16.msra.mxu0 0
    %3328 = vmatprep.subr.bf16.mxu0 0
    %3329 = vmatpush1.bf16.msra.mxu0 0
    %3330 = vmatprep.subr.bf16.mxu0 0
    %3331 = vmatpush1.bf16.msra.mxu0 0
    %3332 = vmatprep.subr.bf16.mxu0 0
    %3333 = vmatpush1.bf16.msra.mxu0 0
    %3334 = vmatprep.subr.bf16.mxu0 0
    %3335 = vmatpush1.bf16.msra.mxu0 0
    %3336 = vmatprep.mubr.bf16.mxu0 0
    %3337 = vmatmul.mubr.bf16.gmra.mrb[0].mxu0 %v3068
    %v3338 = vpop.f32.mrb[0].mxu0
    %v3339 = vadd.f32 0.0, %v3338
    %v3340 = vpop.f32.mrb[0].mxu0
    %v3341 = vadd.f32 0.0, %v3340
    %v3342 = vpop.f32.mrb[0].mxu0
    %v3343 = vpop.f32.mrb[0].mxu0
    %3344 = vdwg.mxu0
    %v3349 = vrot.slane %v3298, 2
    %v3350 = vrot.slane %v3300, 2
    %v3351 = vrot.slane %v3339, 2
    %v3352 = vrot.slane %v3341, 2
    %v3357 = vadd.f32 %v395, %v3349
    %v3358 = vadd.f32 %v397, %v3350
    %v3359 = vadd.f32 %v438, %v3351
    %v3360 = vadd.f32 %v440, %v3352
    %v3361 = vxor.u32 %v3357, 2147483648
    %v3362 = vxor.u32 %v3358, 2147483648
    %v3363 = vxor.u32 %v3359, 2147483648
    %v3364 = vmul.f32 %v3361, 1.442695
    %v3365 = vpow.pop %v3364
    %v3366 = vmul.f32 %v3362, 1.442695
    %v3367 = vpow.pop %v3366
    %v3368 = vmul.f32 %v3363, 1.442695
    %v3369 = vpow.pop %v3368
    %v3370 = vadd.f32 %v3365, 1.0
    %v3371 = vadd.f32 %v3367, 1.0
    %v3372 = vadd.f32 %v3369, 1.0
    %v3373 = vrcp.pop %v3370
    %v3374 = vmul.f32 1.0, %v3373
    %v3375 = vrcp.pop %v3371
    %v3376 = vmul.f32 1.0, %v3375
    %v3377 = vrcp.pop %v3372
    %v3378 = vmul.f32 1.0, %v3377
    %v3379 = vtanh.pop %v3360
    %v3381 = vrot.slane %v3063, 6
    %v3383 = vmul.f32 %v3376, %v3381
    %v3384 = vmul.f32 %v3374, %v3379
    %v3385 = vadd.f32 %v3383, %v3384
    %v3386 = vtanh.pop %v3385
    %v3387 = vmul.f32 %v3378, %v3386
    %v3388 = vpack.c.bf16 %v3387, %v3387
    %v3390 = vrot.slane %v3388, 3
    %3392 = vmatprep.subr.bf16.mxu0 %v898
    %3393 = vmatpush1.bf16.msra.mxu0 %v897
    %3394 = vmatprep.subr.bf16.mxu0 %v902
    %3395 = vmatpush1.bf16.msra.mxu0 %v901
    %3396 = vmatprep.subr.bf16.mxu0 %v906
    %3397 = vmatpush1.bf16.msra.mxu0 %v905
    %3398 = vmatprep.subr.bf16.mxu0 %v910
    %3399 = vmatpush1.bf16.msra.mxu0 %v909
    %3400 = vmatprep.subr.bf16.mxu0 %v914
    %3401 = vmatpush1.bf16.msra.mxu0 %v913
    %3402 = vmatprep.subr.bf16.mxu0 %v918
    %3403 = vmatpush1.bf16.msra.mxu0 %v917
    %3404 = vmatprep.subr.bf16.mxu0 %v922
    %3405 = vmatpush1.bf16.msra.mxu0 %v921
    %3406 = vmatprep.subr.bf16.mxu0 %v926
    %3407 = vmatpush1.bf16.msra.mxu0 %v925
    %3408 = vmatprep.subr.bf16.mxu0 0
    %3409 = vmatpush1.bf16.msra.mxu0 0
    %3410 = vmatprep.subr.bf16.mxu0 0
    %3411 = vmatpush1.bf16.msra.mxu0 0
    %3412 = vmatprep.subr.bf16.mxu0 0
    %3413 = vmatpush1.bf16.msra.mxu0 0
    %3414 = vmatprep.subr.bf16.mxu0 0
    %3415 = vmatpush1.bf16.msra.mxu0 0
    %3416 = vmatprep.subr.bf16.mxu0 0
    %3417 = vmatpush1.bf16.msra.mxu0 0
    %3418 = vmatprep.subr.bf16.mxu0 0
    %3419 = vmatpush1.bf16.msra.mxu0 0
    %3420 = vmatprep.subr.bf16.mxu0 0
    %3421 = vmatpush1.bf16.msra.mxu0 0
    %3422 = vmatprep.subr.bf16.mxu0 0
    %3423 = vmatpush1.bf16.msra.mxu0 0
    %3424 = vmatprep.mubr.bf16.mxu0 0
    %3425 = vmatmul.mubr.bf16.gmra.mrb[0].mxu0 %v3390
    %v3426 = vpop.f32.mrb[0].mxu0
    %v3427 = vadd.f32 %v784, %v3426
    %v3428 = vpop.f32.mrb[0].mxu0
    %v3429 = vadd.f32 %v788, %v3428
    %v3430 = vpop.f32.mrb[0].mxu0
    %v3431 = vpop.f32.mrb[0].mxu0
    %3432 = vdwg.mxu0
    %3433 = vmatprep.subr.bf16.mxu0 %v900
    %3434 = vmatpush1.bf16.msra.mxu0 %v899
    %3435 = vmatprep.subr.bf16.mxu0 %v904
    %3436 = vmatpush1.bf16.msra.mxu0 %v903
    %3437 = vmatprep.subr.bf16.mxu0 %v908
    %3438 = vmatpush1.bf16.msra.mxu0 %v907
    %3439 = vmatprep.subr.bf16.mxu0 %v912
    %3440 = vmatpush1.bf16.msra.mxu0 %v911
    %3441 = vmatprep.subr.bf16.mxu0 %v916
    %3442 = vmatpush1.bf16.msra.mxu0 %v915
    %3443 = vmatprep.subr.bf16.mxu0 %v920
    %3444 = vmatpush1.bf16.msra.mxu0 %v919
    %3445 = vmatprep.subr.bf16.mxu0 %v924
    %3446 = vmatpush1.bf16.msra.mxu0 %v923
    %3447 = vmatprep.subr.bf16.mxu0 %v928
    %3448 = vmatpush1.bf16.msra.mxu0 %v927
    %3449 = vmatprep.subr.bf16.mxu0 0
    %3450 = vmatpush1.bf16.msra.mxu0 0
    %3451 = vmatprep.subr.bf16.mxu0 0
    %3452 = vmatpush1.bf16.msra.mxu0 0
    %3453 = vmatprep.subr.bf16.mxu0 0
    %3454 = vmatpush1.bf16.msra.mxu0 0
    %3455 = vmatprep.subr.bf16.mxu0 0
    %3456 = vmatpush1.bf16.msra.mxu0 0
    %3457 = vmatprep.subr.bf16.mxu0 0
    %3458 = vmatpush1.bf16.msra.mxu0 0
    %3459 = vmatprep.subr.bf16.mxu0 0
    %3460 = vmatpush1.bf16.msra.mxu0 0
    %3461 = vmatprep.subr.bf16.mxu0 0
    %3462 = vmatpush1.bf16.msra.mxu0 0
    %3463 = vmatprep.subr.bf16.mxu0 0
    %3464 = vmatpush1.bf16.msra.mxu0 0
    %3465 = vmatprep.mubr.bf16.mxu0 0
    %3466 = vmatmul.mubr.bf16.gmra.mrb[0].mxu0 %v3390
    %v3467 = vpop.f32.mrb[0].mxu0
    %v3468 = vadd.f32 %v792, %v3467
    %v3469 = vpop.f32.mrb[0].mxu0
    %v3470 = vadd.f32 %v796, %v3469
    %v3471 = vpop.f32.mrb[0].mxu0
    %v3472 = vpop.f32.mrb[0].mxu0
    %3473 = vdwg.mxu0
    %v3474 = vpack.c.bf16 %v3262, %v3262
    %3475 = vmatprep.subr.bf16.mxu0 %v1173
    %3476 = vmatpush1.bf16.msra.mxu0 %v1172
    %3477 = vmatprep.subr.bf16.mxu0 %v1177
    %3478 = vmatpush1.bf16.msra.mxu0 %v1176
    %3479 = vmatprep.subr.bf16.mxu0 %v1181
    %3480 = vmatpush1.bf16.msra.mxu0 %v1180
    %3481 = vmatprep.subr.bf16.mxu0 %v1185
    %3482 = vmatpush1.bf16.msra.mxu0 %v1184
    %3483 = vmatprep.subr.bf16.mxu0 %v1189
    %3484 = vmatpush1.bf16.msra.mxu0 %v1188
    %3485 = vmatprep.subr.bf16.mxu0 %v1193
    %3486 = vmatpush1.bf16.msra.mxu0 %v1192
    %3487 = vmatprep.subr.bf16.mxu0 %v1197
    %3488 = vmatpush1.bf16.msra.mxu0 %v1196
    %3489 = vmatprep.subr.bf16.mxu0 %v1201
    %3490 = vmatpush1.bf16.msra.mxu0 %v1200
    %3491 = vmatprep.subr.bf16.mxu0 0
    %3492 = vmatpush1.bf16.msra.mxu0 0
    %3493 = vmatprep.subr.bf16.mxu0 0
    %3494 = vmatpush1.bf16.msra.mxu0 0
    %3495 = vmatprep.subr.bf16.mxu0 0
    %3496 = vmatpush1.bf16.msra.mxu0 0
    %3497 = vmatprep.subr.bf16.mxu0 0
    %3498 = vmatpush1.bf16.msra.mxu0 0
    %3499 = vmatprep.subr.bf16.mxu0 0
    %3500 = vmatpush1.bf16.msra.mxu0 0
    %3501 = vmatprep.subr.bf16.mxu0 0
    %3502 = vmatpush1.bf16.msra.mxu0 0
    %3503 = vmatprep.subr.bf16.mxu0 0
    %3504 = vmatpush1.bf16.msra.mxu0 0
    %3505 = vmatprep.subr.bf16.mxu0 0
    %3506 = vmatpush1.bf16.msra.mxu0 0
    %3507 = vmatprep.mubr.bf16.mxu0 0
    %3508 = vmatmul.mubr.bf16.gmra.mrb[0].mxu0 %v3474
    %v3509 = vpop.f32.mrb[0].mxu0
    %v3510 = vadd.f32 0.0, %v3509
    %v3511 = vpop.f32.mrb[0].mxu0
    %v3512 = vadd.f32 0.0, %v3511
    %v3513 = vpop.f32.mrb[0].mxu0
    %v3514 = vpop.f32.mrb[0].mxu0
    %3515 = vdwg.mxu0
    %3516 = vmatprep.subr.bf16.mxu0 %v1175
    %3517 = vmatpush1.bf16.msra.mxu0 %v1174
    %3518 = vmatprep.subr.bf16.mxu0 %v1179
    %3519 = vmatpush1.bf16.msra.mxu0 %v1178
    %3520 = vmatprep.subr.bf16.mxu0 %v1183
    %3521 = vmatpush1.bf16.msra.mxu0 %v1182
    %3522 = vmatprep.subr.bf16.mxu0 %v1187
    %3523 = vmatpush1.bf16.msra.mxu0 %v1186
    %3524 = vmatprep.subr.bf16.mxu0 %v1191
    %3525 = vmatpush1.bf16.msra.mxu0 %v1190
    %3526 = vmatprep.subr.bf16.mxu0 %v1195
    %3527 = vmatpush1.bf16.msra.mxu0 %v1194
    %3528 = vmatprep.subr.bf16.mxu0 %v1199
    %3529 = vmatpush1.bf16.msra.mxu0 %v1198
    %3530 = vmatprep.subr.bf16.mxu0 %v1203
    %3531 = vmatpush1.bf16.msra.mxu0 %v1202
    %3532 = vmatprep.subr.bf16.mxu0 0
    %3533 = vmatpush1.bf16.msra.mxu0 0
    %3534 = vmatprep.subr.bf16.mxu0 0
    %3535 = vmatpush1.bf16.msra.mxu0 0
    %3536 = vmatprep.subr.bf16.mxu0 0
    %3537 = vmatpush1.bf16.msra.mxu0 0
    %3538 = vmatprep.subr.bf16.mxu0 0
    %3539 = vmatpush1.bf16.msra.mxu0 0
    %3540 = vmatprep.subr.bf16.mxu0 0
    %3541 = vmatpush1.bf16.msra.mxu0 0
    %3542 = vmatprep.subr.bf16.mxu0 0
    %3543 = vmatpush1.bf16.msra.mxu0 0
    %3544 = vmatprep.subr.bf16.mxu0 0
    %3545 = vmatpush1.bf16.msra.mxu0 0
    %3546 = vmatprep.subr.bf16.mxu0 0
    %3547 = vmatpush1.bf16.msra.mxu0 0
    %3548 = vmatprep.mubr.bf16.mxu0 0
    %3549 = vmatmul.mubr.bf16.gmra.mrb[0].mxu0 %v3474
    %v3550 = vpop.f32.mrb[0].mxu0
    %v3551 = vadd.f32 0.0, %v3550
    %v3552 = vpop.f32.mrb[0].mxu0
    %v3553 = vadd.f32 0.0, %v3552
    %v3554 = vpop.f32.mrb[0].mxu0
    %v3555 = vpop.f32.mrb[0].mxu0
    %3556 = vdwg.mxu0
    %v3557 = vadd.f32 %v3427, %v3510
    %v3558 = vadd.f32 %v3429, %v3512
    %v3559 = vadd.f32 %v3468, %v3551
    %v3560 = vadd.f32 %v3470, %v3553
    %v3561 = vxor.u32 %v3557, 2147483648
    %v3562 = vxor.u32 %v3558, 2147483648
    %v3563 = vxor.u32 %v3559, 2147483648
    %v3564 = vmul.f32 %v3561, 1.442695
    %v3565 = vpow.pop %v3564
    %v3566 = vmul.f32 %v3562, 1.442695
    %v3567 = vpow.pop %v3566
    %v3568 = vmul.f32 %v3563, 1.442695
    %v3569 = vpow.pop %v3568
    %v3570 = vadd.f32 %v3565, 1.0
    %v3571 = vadd.f32 %v3567, 1.0
    %v3572 = vadd.f32 %v3569, 1.0
    %v3573 = vrcp.pop %v3570
    %v3574 = vmul.f32 1.0, %v3573
    %v3575 = vrcp.pop %v3571
    %v3576 = vmul.f32 1.0, %v3575
    %v3577 = vrcp.pop %v3572
    %v3578 = vmul.f32 1.0, %v3577
    %v3579 = vtanh.pop %v3560
    %v3580 = vmul.f32 %v3576, %v3260
    %v3581 = vmul.f32 %v3574, %v3579
    %v3582 = vadd.f32 %v3580, %v3581
    %v3583 = vtanh.pop %v3582
    %v3584 = vmul.f32 %v3578, %v3583
    %v3585 = vpack.c.bf16 %v3584, %v3584
    %v3586 = vld [vmem:[#allocation7] sm:$0xf]
    %v3587 = vld [vmem:[#allocation7 + $0x4] sm:$0xf]
    %v3588 = vld [vmem:[#allocation7 + $0x8] sm:$0xf]
    %v3589 = vld [vmem:[#allocation7 + $0xc] sm:$0xf]
    %v3590 = vld [vmem:[#allocation7 + $0x10] sm:$0xf]
    %v3591 = vld [vmem:[#allocation7 + $0x14] sm:$0xf]
    %v3592 = vld [vmem:[#allocation7 + $0x18] sm:$0xf]
    %v3593 = vld [vmem:[#allocation7 + $0x1c] sm:$0xf]
    %v3594 = vld [vmem:[#allocation7 + $0x20] sm:$0xf]
    %v3595 = vld [vmem:[#allocation7 + $0x24] sm:$0xf]
    %v3596 = vld [vmem:[#allocation7 + $0x28] sm:$0xf]
    %v3597 = vld [vmem:[#allocation7 + $0x2c] sm:$0xf]
    %v3598 = vld [vmem:[#allocation7 + $0x30] sm:$0xf]
    %v3599 = vld [vmem:[#allocation7 + $0x34] sm:$0xf]
    %v3600 = vld [vmem:[#allocation7 + $0x38] sm:$0xf]
    %v3601 = vld [vmem:[#allocation7 + $0x3c] sm:$0xf]
    %v3602 = vld [vmem:[%s7] sm:$0x1]
    %v3604 = vlaneseq
    %v3605 = vshrl.u32 %v3604, 7
    %v3606 = vsub.s32 0, %v3605
    %v3607 = vrot.slane %v3602, %v3606
    %v3625 = vunpack.c.l.b16 %v3586
    %v3626 = vunpack.c.l.b16 %v3587
    %v3627 = vunpack.c.l.b16 %v3588
    %v3628 = vunpack.c.l.b16 %v3589
    %v3629 = vunpack.c.l.b16 %v3590
    %v3630 = vunpack.c.l.b16 %v3591
    %v3631 = vunpack.c.l.b16 %v3592
    %v3632 = vunpack.c.l.b16 %v3593
    %v3633 = vunpack.c.l.b16 %v3594
    %v3634 = vunpack.c.l.b16 %v3595
    %v3635 = vunpack.c.l.b16 %v3596
    %v3636 = vunpack.c.l.b16 %v3597
    %v3637 = vunpack.c.l.b16 %v3598
    %v3638 = vunpack.c.l.b16 %v3599
    %v3639 = vunpack.c.l.b16 %v3600
    %v3640 = vunpack.c.l.b16 %v3601
    %v3641 = vpack.c.b16 %v3626, %v3625
    %v3642 = vpack.c.b16 %v3628, %v3627
    %v3643 = vpack.c.b16 %v3630, %v3629
    %v3644 = vpack.c.b16 %v3632, %v3631
    %v3645 = vpack.c.b16 %v3634, %v3633
    %v3646 = vpack.c.b16 %v3636, %v3635
    %v3647 = vpack.c.b16 %v3638, %v3637
    %v3648 = vpack.c.b16 %v3640, %v3639
    %3657 = vmatprep.subr.bf16.mxu0 0
    %3658 = vmatpush1.bf16.msra.mxu0 %v3641
    %3659 = vmatprep.subr.bf16.mxu0 0
    %3660 = vmatpush1.bf16.msra.mxu0 %v3642
    %3661 = vmatprep.subr.bf16.mxu0 0
    %3662 = vmatpush1.bf16.msra.mxu0 %v3643
    %3663 = vmatprep.subr.bf16.mxu0 0
    %3664 = vmatpush1.bf16.msra.mxu0 %v3644
    %3665 = vmatprep.subr.bf16.mxu0 0
    %3666 = vmatpush1.bf16.msra.mxu0 %v3645
    %3667 = vmatprep.subr.bf16.mxu0 0
    %3668 = vmatpush1.bf16.msra.mxu0 %v3646
    %3669 = vmatprep.subr.bf16.mxu0 0
    %3670 = vmatpush1.bf16.msra.mxu0 %v3647
    %3671 = vmatprep.subr.bf16.mxu0 0
    %3672 = vmatpush1.bf16.msra.mxu0 %v3648
    %3673 = vmatprep.subr.bf16.mxu0 0
    %3674 = vmatpush1.bf16.msra.mxu0 0
    %3675 = vmatprep.subr.bf16.mxu0 0
    %3676 = vmatpush1.bf16.msra.mxu0 0
    %3677 = vmatprep.subr.bf16.mxu0 0
    %3678 = vmatpush1.bf16.msra.mxu0 0
    %3679 = vmatprep.subr.bf16.mxu0 0
    %3680 = vmatpush1.bf16.msra.mxu0 0
    %3681 = vmatprep.subr.bf16.mxu0 0
    %3682 = vmatpush1.bf16.msra.mxu0 0
    %3683 = vmatprep.subr.bf16.mxu0 0
    %3684 = vmatpush1.bf16.msra.mxu0 0
    %3685 = vmatprep.subr.bf16.mxu0 0
    %3686 = vmatpush1.bf16.msra.mxu0 0
    %3687 = vmatprep.subr.bf16.mxu0 0
    %3688 = vmatpush1.bf16.msra.mxu0 0
    %3689 = vmatprep.mubr.bf16.mxu0 0
    %3690 = vmatmul.mubr.bf16.gmra.mrb[0].mxu0 %v3585
    %v3691 = vpop.f32.mrb[0].mxu0
    %v3692 = vadd.f32 %v3607, %v3691
    %v3693 = vpop.f32.mrb[0].mxu0
    %v3694 = vpop.f32.mrb[0].mxu0
    %v3695 = vpop.f32.mrb[0].mxu0
    %3696 = vdwg.mxu0
    %3697 = vst [vmem:[#allocation8] sm:$0x3] %v3692
    // Predicated region
    $region46: #{lstm_model_forward.1} parent=1 // pred_check
      _
    $region47: #{lstm_model_forward.1} parent=1 // pred_check_branch
      %3699 = sbr.rel (0) target = $region49
    $region48: #{lstm_model_forward.1} parent=1 // pred_region
      %s3701 = ssub.s32 32, 32
      %3702 = vsyncadd [#allocation4], %s3701
      %s3704 = sshll.u32 [#allocation8], 4
      %s3705 = int_to_ptr.vmem [resolvable:$true] %s3704
      %3707 = dma.vmem_to_hbm [thread:$0]  %s3705, 32, %s8, [#allocation4]
    $region49: #{lstm_model_forward.1} parent=1 // pred_fallthru
      _
    // Predicated region
    $region50: #{lstm_model_forward.1} parent=1 // pred_check
      _
    $region51: #{lstm_model_forward.1} parent=1 // pred_check_branch
      %3709 = sbr.rel (0) target = $region53
    $region52: #{lstm_model_forward.1} parent=1 // pred_region
      %3710 = dma.done [#allocation4], 32
    $region53: #{lstm_model_forward.1} parent=1 // pred_fallthru
      _
    %3711 = vsyncpa [#allocation3], 1
    %3712 = vsyncpa [#allocation6], 1
    %3713 = vsyncpa [#allocation4], 1

</llo_original>
